<compile_context>
chip_gen: v7x
topology: tpu7x:2x2x1
jax: 0.10.0
libtpu: 0.0.40
codegen_flags: <defaults>
</compile_context>

<pallas_src>
import jax
import jax.numpy as jnp
import numpy as np
from jax.experimental import pallas as pl
from jax.experimental.pallas import tpu as pltpu

K = 3  # every ConvTranspose2d in the module uses a 3x3 kernel

# (name, Ci, Co, stride, pad, output_padding, has_bn) -- fixed by the module.
_CONV_CFGS = [
    ("ct1", 64, 32, 2, 0, 0, True),
    ("ct2", 32, 16, 2, 0, 0, True),
    ("ct3", 16, 8, 2, 0, 1, True),
    ("ct4", 8, 1, 2, 1, 1, False),
]
# static per-layer metadata used inside the kernel: (Wout, has_bn)
_LAYER_META = ((7, True), (15, True), (32, True), (64, False))

_CPAD = 128  # padded per-channel vector width for BN stats


def _pad128(n):
    return ((n + 127) // 128) * 128


# ----------------------------- Pallas kernel --------------------------------

def _decoder_kernel(*refs):
    f32 = jnp.float32
    bf16 = jnp.bfloat16

    o_ref, f0_scr, stk_scr = refs[-3], refs[-2], refs[-1]
    x_ref, w1_ref, b1_ref, w2_ref, b2_ref = refs[:5]
    lrefs = refs[5:-3]

    # ---- decoder_lin: Linear -> ReLU -> Linear(fused 3 h-blocks) -> ReLU ----
    h = jnp.dot(x_ref[...].astype(bf16), w1_ref[...],
                preferred_element_type=f32) + b1_ref[...]
    h = jnp.maximum(h, 0.0).astype(bf16)                      # (B, 256)
    y0 = jnp.dot(h, w2_ref[...], preferred_element_type=f32) + b2_ref[...]
    y0 = jnp.maximum(y0, 0.0)                                 # (B, 3*256)

    # ---- Unflatten(64, 3, 3): place rows (b, h) via static row stores -------
    bsz = y0.shape[0]
    f0p = w2_ref.shape[1] // 3                                # 256
    for hh in range(3):
        blk = y0[:, hh * f0p:(hh + 1) * f0p]                  # (B, 256)
        for b in range(bsz):
            f0_scr[b * 3 + hh: b * 3 + hh + 1, :] = blk[b:b + 1, :]
    f = f0_scr[0:bsz * 3, :]                                  # (B*3, 256) f32

    # ---- four ConvTranspose2d layers (3x BN+ReLU, last: sigmoid) ------------
    idx = 0
    for wout, has_bn in _LAYER_META:
        if has_bn:
            (t_ref, s_ref, bv_ref, g_ref, gt_ref,
             gm_ref, bt_ref) = lrefs[idx:idx + 7]
            idx += 7
        else:
            t_ref, s_ref, bv_ref = lrefs[idx:idx + 3]
            idx += 3

        r = f.shape[0]                                        # B*Hin
        npad = t_ref.shape[1] // 3                            # padded Wout*Co

        # one fused matmul over all 3 W-taps (columns = [ki=0 | ki=1 | ki=2])
        a = jnp.dot(f.astype(bf16), t_ref[...],
                    preferred_element_type=f32)               # (r, 3*npad)

        # stack the 3 tap blocks vertically (static stores, no extra matmuls)
        for ki in range(K):
            stk_scr[ki * r:(ki + 1) * r, 0:npad] = a[:, ki * npad:(ki + 1) * npad]
        a_stk = stk_scr[0:K * r, 0:npad]                      # (3r, npad) f32

        # one fused 0/1 row-scatter matmul for the stride-2 placement along H
        y = jnp.dot(s_ref[...], a_stk,
                    preferred_element_type=f32) + bv_ref[...]  # (B*Hout, npad)

        if has_bn:
            # BatchNorm2d, training-mode batch statistics (2 matmuls + 1 FMA).
            inv_n = 1.0 / float(s_ref.shape[0] * wout)        # 1 / (B*Hout*Wout)
            sums = jnp.concatenate(
                [jnp.sum(y, axis=0, keepdims=True),
                 jnp.sum(y * y, axis=0, keepdims=True)], axis=0)      # (2, npad)
            st = jnp.dot(sums, g_ref[...],
                         preferred_element_type=f32) * inv_n          # (2, 128)
            mean = st[0:1, :]
            var = st[1:2, :] - mean * mean
            scale = gm_ref[...] * jax.lax.rsqrt(var + 1e-5)           # (1, 128)
            shift = bt_ref[...] - mean * scale                        # (1, 128)
            ssf = jnp.dot(jnp.concatenate([scale, shift], axis=0),
                          gt_ref[...], preferred_element_type=f32)    # (2, npad)
            f = jnp.maximum(y * ssf[0:1, :] + ssf[1:2, :], 0.0)
        else:
            # sigmoid via tanh (single EUP transcendental + FMA)
            f = 0.5 * jnp.tanh(0.5 * y) + 0.5

    # single unmasked lane-dense store (B*64, 128); wrapper slices lanes 0:64
    o_ref[...] = f


# --------------------- host-side operator construction ----------------------

def prepare_decoder(params, B):
    """Build all kernel-resident, lane-padded operator matrices once (numpy)."""
    f32 = np.float32
    bf16 = jnp.bfloat16
    p = {k: np.asarray(v, f32) for k, v in params.items()}
    C1, H1, W1 = 64, 3, 3
    F0 = W1 * C1                      # 192
    F0P = _pad128(F0)                 # 256

    # decoder_lin second layer: permute columns (c,h,w)->(h,w,c), split by h,
    # pad each 192-wide block to 256 and concatenate -> one (256, 768) matmul.
    perm = np.empty(C1 * H1 * W1, np.int64)
    for h in range(H1):
        for w in range(W1):
            for c in range(C1):
                perm[h * W1 * C1 + w * C1 + c] = c * H1 * W1 + h * W1 + w
    w2p = p["w2"][:, perm]
    b2p = p["b2"][perm]
    w2cat = np.zeros((256, H1 * F0P), f32)
    b2cat = np.zeros((1, H1 * F0P), f32)
    for h in range(H1):
        w2cat[:, h * F0P:h * F0P + F0] = w2p[:, h * F0:(h + 1) * F0]
        b2cat[0, h * F0P:h * F0P + F0] = b2p[h * F0:(h + 1) * F0]

    ops = [jnp.asarray(p["w1"], bf16),
           jnp.asarray(p["b1"].reshape(1, -1), jnp.float32),
           jnp.asarray(w2cat, bf16),
           jnp.asarray(b2cat, jnp.float32)]

    Hin = Win = H1
    inpad = F0P
    for (name, Ci, Co, stride, pad, opad, bn) in _CONV_CFGS:
        W = p[name + "_w"]            # (Ci, Co, K, K)
        bvec_raw = p[name + "_b"]     # (Co,)
        Hout = (Hin - 1) * stride - 2 * pad + K + opad
        Wout = (Win - 1) * stride - 2 * pad + K + opad
        NP = _pad128(Wout * Co)

        # T_cat: (inpad, 3*NP); block ki applies the W-axis taps + zero-insert
        T = np.zeros((inpad, K * NP), f32)
        for ki in range(K):
            for iw in range(Win):
                for kj in range(K):
                    ow = stride * iw - pad + kj
                    if 0 <= ow < Wout:
                        T[iw * Ci:(iw + 1) * Ci,
                          ki * NP + ow * Co: ki * NP + (ow + 1) * Co] = W[:, :, ki, kj]

        # S_cat: (B*Hout, 3*B*Hin) 0/1 row-placement for the H scatter
        S = np.zeros((B * Hout, K * B * Hin), f32)
        for ki in range(K):
            for bb in range(B):
                for ih in range(Hin):
                    oh = stride * ih - pad + ki
                    if 0 <= oh < Hout:
                        S[bb * Hout + oh, ki * B * Hin + bb * Hin + ih] = 1.0

        bvec = np.zeros((1, NP), f32)
        bvec[0, :Wout * Co] = np.tile(bvec_raw, Wout)

        ops += [jnp.asarray(T, bf16), jnp.asarray(S, jnp.float32),
                jnp.asarray(bvec, jnp.float32)]

        if bn:
            G = np.zeros((NP, _CPAD), f32)
            for ow in range(Wout):
                for co in range(Co):
                    G[ow * Co + co, co] = 1.0
            gv = np.zeros((1, _CPAD), f32)
            bev = np.zeros((1, _CPAD), f32)
            gv[0, :Co] = p[name + "_bn_g"]
            bev[0, :Co] = p[name + "_bn_b"]
            ops += [jnp.asarray(G, jnp.float32),
                    jnp.asarray(np.ascontiguousarray(G.T), jnp.float32),
                    jnp.asarray(gv, jnp.float32),
                    jnp.asarray(bev, jnp.float32)]

        Hin, Win = Hout, Wout
        inpad = NP

    return tuple(ops)


# ------------------------------- forward ------------------------------------

def decoder_ukbb_forward(x, ops):
    B = x.shape[0]
    Ho, Wo = 64, 64
    inputs = (x,) + tuple(ops)

    def fullspec(a):
        nd = a.ndim
        return pl.BlockSpec(a.shape, lambda i, nd=nd: (0,) * nd)

    out2d = pl.pallas_call(
        _decoder_kernel,
        out_shape=jax.ShapeDtypeStruct((B * Ho, 128), jnp.float32),
        grid=(1,),
        in_specs=[fullspec(a) for a in inputs],
        out_specs=pl.BlockSpec((B * Ho, 128), lambda i: (0, 0)),
        scratch_shapes=[
            pltpu.VMEM((3 * B, 256), jnp.float32),        # unflattened f0 rows
            pltpu.VMEM((3 * B * 32, 256), jnp.float32),   # per-layer tap stack
        ],
        compiler_params=pltpu.CompilerParams(
            dimension_semantics=("arbitrary",)),
    )(*inputs)

    # drop padded lanes, restore (B, 1, 64, 64)
    return out2d[:, :Wo].reshape(B, Ho, Wo)[:, None, :, :]


# --------------------------- deterministic params ---------------------------

def init_params(key, encoded_dim):
    keys = jax.random.split(key, 16)

    def rnd(k, shape, scale):
        return scale * jax.random.normal(k, shape, jnp.float32)

    p = {}
    p["w1"] = rnd(keys[0], (encoded_dim, 256), 0.10)
    p["b1"] = rnd(keys[1], (256,), 0.01)
    p["w2"] = rnd(keys[2], (256, 576), 0.05)
    p["b2"] = rnd(keys[3], (576,), 0.01)

    conv_shapes = [("ct1", 64, 32), ("ct2", 32, 16), ("ct3", 16, 8), ("ct4", 8, 1)]
    ki = 4
    for name, ci, co in conv_shapes:
        p[name + "_w"] = rnd(keys[ki], (ci, co, K, K), 0.05); ki += 1
        p[name + "_b"] = rnd(keys[ki], (co,), 0.01); ki += 1
        if name != "ct4":  # last ConvTranspose2d has no BatchNorm
            p[name + "_bn_g"] = 1.0 + 0.1 * jax.random.normal(keys[ki], (co,), jnp.float32)
            p[name + "_bn_b"] = 0.01 * jax.random.normal(keys[ki], (co,), jnp.float32)
            ki += 1
    return p


if __name__ == "__main__":
    B, ENCODED_DIM = 2, 32
    key = jax.random.PRNGKey(0)
    pkey, xkey = jax.random.split(key)
    params = init_params(pkey, ENCODED_DIM)
    x = jax.random.normal(xkey, (B, ENCODED_DIM), jnp.float32)

    ops = prepare_decoder(params, B)      # host-built, weight-dependent operators
    fwd = jax.jit(decoder_ukbb_forward)
    out = jax.block_until_ready(fwd(x, ops))

    assert out.shape == (B, 1, 64, 64), out.shape
    assert bool(jnp.all(jnp.isfinite(out)))
    assert bool(jnp.all((out >= 0.0) & (out <= 1.0)))  # sigmoid output range
    print("KERNEL_OK")
</pallas_src>

<mosaic_0001>
module attributes {stable_mosaic.version = 11 : i64} {
  func.func @_decoder_kernel(%arg0: i32, %arg1: memref<2x32xf32, #tpu.memory_space<vmem>>, %arg2: memref<32x256xbf16, #tpu.memory_space<vmem>>, %arg3: memref<1x256xf32, #tpu.memory_space<vmem>>, %arg4: memref<256x768xbf16, #tpu.memory_space<vmem>>, %arg5: memref<1x768xf32, #tpu.memory_space<vmem>>, %arg6: memref<256x768xbf16, #tpu.memory_space<vmem>>, %arg7: memref<14x18xf32, #tpu.memory_space<vmem>>, %arg8: memref<1x256xf32, #tpu.memory_space<vmem>>, %arg9: memref<256x128xf32, #tpu.memory_space<vmem>>, %arg10: memref<128x256xf32, #tpu.memory_space<vmem>>, %arg11: memref<1x128xf32, #tpu.memory_space<vmem>>, %arg12: memref<1x128xf32, #tpu.memory_space<vmem>>, %arg13: memref<256x768xbf16, #tpu.memory_space<vmem>>, %arg14: memref<30x42xf32, #tpu.memory_space<vmem>>, %arg15: memref<1x256xf32, #tpu.memory_space<vmem>>, %arg16: memref<256x128xf32, #tpu.memory_space<vmem>>, %arg17: memref<128x256xf32, #tpu.memory_space<vmem>>, %arg18: memref<1x128xf32, #tpu.memory_space<vmem>>, %arg19: memref<1x128xf32, #tpu.memory_space<vmem>>, %arg20: memref<256x768xbf16, #tpu.memory_space<vmem>>, %arg21: memref<64x90xf32, #tpu.memory_space<vmem>>, %arg22: memref<1x256xf32, #tpu.memory_space<vmem>>, %arg23: memref<256x128xf32, #tpu.memory_space<vmem>>, %arg24: memref<128x256xf32, #tpu.memory_space<vmem>>, %arg25: memref<1x128xf32, #tpu.memory_space<vmem>>, %arg26: memref<1x128xf32, #tpu.memory_space<vmem>>, %arg27: memref<256x384xbf16, #tpu.memory_space<vmem>>, %arg28: memref<128x192xf32, #tpu.memory_space<vmem>>, %arg29: memref<1x128xf32, #tpu.memory_space<vmem>>, %arg30: memref<128x128xf32, #tpu.memory_space<vmem>>, %arg31: memref<6x256xf32, #tpu.memory_space<vmem>>, %arg32: memref<192x256xf32, #tpu.memory_space<vmem>>) attributes {dimension_semantics = [#tpu.dimension_semantics<arbitrary>], iteration_bounds = array<i64: 1>, scalar_prefetch = 0 : i64, scratch_operands = 2 : i64, tpu.core_type = #tpu.core_type<tc>, window_params = [{pipeline_mode = #tpu.pipeline_mode<synchronous>, transform_indices = @transform_0, window_bounds = array<i64: 2, 32>}, {pipeline_mode = #tpu.pipeline_mode<synchronous>, transform_indices = @transform_1, window_bounds = array<i64: 32, 256>}, {pipeline_mode = #tpu.pipeline_mode<synchronous>, transform_indices = @transform_2, window_bounds = array<i64: 1, 256>}, {pipeline_mode = #tpu.pipeline_mode<synchronous>, transform_indices = @transform_3, window_bounds = array<i64: 256, 768>}, {pipeline_mode = #tpu.pipeline_mode<synchronous>, transform_indices = @transform_4, window_bounds = array<i64: 1, 768>}, {pipeline_mode = #tpu.pipeline_mode<synchronous>, transform_indices = @transform_5, window_bounds = array<i64: 256, 768>}, {pipeline_mode = #tpu.pipeline_mode<synchronous>, transform_indices = @transform_6, window_bounds = array<i64: 14, 18>}, {pipeline_mode = #tpu.pipeline_mode<synchronous>, transform_indices = @transform_7, window_bounds = array<i64: 1, 256>}, {pipeline_mode = #tpu.pipeline_mode<synchronous>, transform_indices = @transform_8, window_bounds = array<i64: 256, 128>}, {pipeline_mode = #tpu.pipeline_mode<synchronous>, transform_indices = @transform_9, window_bounds = array<i64: 128, 256>}, {pipeline_mode = #tpu.pipeline_mode<synchronous>, transform_indices = @transform_10, window_bounds = array<i64: 1, 128>}, {pipeline_mode = #tpu.pipeline_mode<synchronous>, transform_indices = @transform_11, window_bounds = array<i64: 1, 128>}, {pipeline_mode = #tpu.pipeline_mode<synchronous>, transform_indices = @transform_12, window_bounds = array<i64: 256, 768>}, {pipeline_mode = #tpu.pipeline_mode<synchronous>, transform_indices = @transform_13, window_bounds = array<i64: 30, 42>}, {pipeline_mode = #tpu.pipeline_mode<synchronous>, transform_indices = @transform_14, window_bounds = array<i64: 1, 256>}, {pipeline_mode = #tpu.pipeline_mode<synchronous>, transform_indices = @transform_15, window_bounds = array<i64: 256, 128>}, {pipeline_mode = #tpu.pipeline_mode<synchronous>, transform_indices = @transform_16, window_bounds = array<i64: 128, 256>}, {pipeline_mode = #tpu.pipeline_mode<synchronous>, transform_indices = @transform_17, window_bounds = array<i64: 1, 128>}, {pipeline_mode = #tpu.pipeline_mode<synchronous>, transform_indices = @transform_18, window_bounds = array<i64: 1, 128>}, {pipeline_mode = #tpu.pipeline_mode<synchronous>, transform_indices = @transform_19, window_bounds = array<i64: 256, 768>}, {pipeline_mode = #tpu.pipeline_mode<synchronous>, transform_indices = @transform_20, window_bounds = array<i64: 64, 90>}, {pipeline_mode = #tpu.pipeline_mode<synchronous>, transform_indices = @transform_21, window_bounds = array<i64: 1, 256>}, {pipeline_mode = #tpu.pipeline_mode<synchronous>, transform_indices = @transform_22, window_bounds = array<i64: 256, 128>}, {pipeline_mode = #tpu.pipeline_mode<synchronous>, transform_indices = @transform_23, window_bounds = array<i64: 128, 256>}, {pipeline_mode = #tpu.pipeline_mode<synchronous>, transform_indices = @transform_24, window_bounds = array<i64: 1, 128>}, {pipeline_mode = #tpu.pipeline_mode<synchronous>, transform_indices = @transform_25, window_bounds = array<i64: 1, 128>}, {pipeline_mode = #tpu.pipeline_mode<synchronous>, transform_indices = @transform_26, window_bounds = array<i64: 256, 384>}, {pipeline_mode = #tpu.pipeline_mode<synchronous>, transform_indices = @transform_27, window_bounds = array<i64: 128, 192>}, {pipeline_mode = #tpu.pipeline_mode<synchronous>, transform_indices = @transform_28, window_bounds = array<i64: 1, 128>}, {pipeline_mode = #tpu.pipeline_mode<synchronous>, transform_indices = @transform_29, window_bounds = array<i64: 128, 128>}]} {
    %c0 = arith.constant 0 : index
    %c0_0 = arith.constant 0 : index
    %0 = vector.load %arg1[%c0, %c0_0] : memref<2x32xf32, #tpu.memory_space<vmem>>, vector<2x32xf32>
    %1 = arith.truncf %0 : vector<2x32xf32> to vector<2x32xbf16>
    %c0_1 = arith.constant 0 : index
    %c0_2 = arith.constant 0 : index
    %2 = vector.load %arg2[%c0_1, %c0_2] : memref<32x256xbf16, #tpu.memory_space<vmem>>, vector<32x256xbf16>
    %cst = arith.constant dense<0.000000e+00> : vector<2x256xf32>
    %3 = tpu.matmul %1, %2, %cst {dimension_numbers = #tpu.dot_dimension_numbers<[1], [0], [0], [1], [0, 0, 1, 1], [], []>} : vector<2x32xbf16>, vector<32x256xbf16>, vector<2x256xf32> -> vector<2x256xf32>
    %c0_3 = arith.constant 0 : index
    %c0_4 = arith.constant 0 : index
    %4 = vector.load %arg3[%c0_3, %c0_4] : memref<1x256xf32, #tpu.memory_space<vmem>>, vector<1x256xf32>
    %5 = vector.broadcast %4 : vector<1x256xf32> to vector<2x256xf32>
    %6 = arith.addf %3, %5 : vector<2x256xf32>
    %cst_5 = arith.constant 0.000000e+00 : f32
    %7 = vector.broadcast %cst_5 : f32 to vector<2x256xf32>
    %8 = arith.maximumf %6, %7 : vector<2x256xf32>
    %9 = arith.truncf %8 : vector<2x256xf32> to vector<2x256xbf16>
    %c0_6 = arith.constant 0 : index
    %c0_7 = arith.constant 0 : index
    %10 = vector.load %arg4[%c0_6, %c0_7] : memref<256x768xbf16, #tpu.memory_space<vmem>>, vector<256x768xbf16>
    %cst_8 = arith.constant dense<0.000000e+00> : vector<2x768xf32>
    %11 = tpu.matmul %9, %10, %cst_8 {dimension_numbers = #tpu.dot_dimension_numbers<[1], [0], [0], [1], [0, 0, 1, 1], [], []>} : vector<2x256xbf16>, vector<256x768xbf16>, vector<2x768xf32> -> vector<2x768xf32>
    %c0_9 = arith.constant 0 : index
    %c0_10 = arith.constant 0 : index
    %12 = vector.load %arg5[%c0_9, %c0_10] : memref<1x768xf32, #tpu.memory_space<vmem>>, vector<1x768xf32>
    %13 = vector.broadcast %12 : vector<1x768xf32> to vector<2x768xf32>
    %14 = arith.addf %11, %13 : vector<2x768xf32>
    %cst_11 = arith.constant 0.000000e+00 : f32
    %15 = vector.broadcast %cst_11 : f32 to vector<2x768xf32>
    %16 = arith.maximumf %14, %15 : vector<2x768xf32>
    %17 = vector.extract_strided_slice %16 {offsets = [0, 0], sizes = [2, 256], strides = [1, 1]} : vector<2x768xf32> to vector<2x256xf32>
    %18 = vector.extract_strided_slice %17 {offsets = [0, 0], sizes = [1, 256], strides = [1, 1]} : vector<2x256xf32> to vector<1x256xf32>
    %c0_12 = arith.constant 0 : index
    %c0_13 = arith.constant 0 : index
    %19 = vector.load %arg31[%c0_12, %c0_13] : memref<6x256xf32, #tpu.memory_space<vmem>>, vector<1x256xf32>
    tpu.vector_store %arg31[%c0_12, %c0_13], %18 {strides = array<i32>} : memref<6x256xf32, #tpu.memory_space<vmem>>, vector<1x256xf32>,
    %20 = vector.extract_strided_slice %17 {offsets = [1, 0], sizes = [1, 256], strides = [1, 1]} : vector<2x256xf32> to vector<1x256xf32>
    %c3 = arith.constant 3 : index
    %c0_14 = arith.constant 0 : index
    %21 = vector.load %arg31[%c3, %c0_14] : memref<6x256xf32, #tpu.memory_space<vmem>>, vector<1x256xf32>
    tpu.vector_store %arg31[%c3, %c0_14], %20 {strides = array<i32>} : memref<6x256xf32, #tpu.memory_space<vmem>>, vector<1x256xf32>,
    %22 = vector.extract_strided_slice %16 {offsets = [0, 256], sizes = [2, 256], strides = [1, 1]} : vector<2x768xf32> to vector<2x256xf32>
    %23 = vector.extract_strided_slice %22 {offsets = [0, 0], sizes = [1, 256], strides = [1, 1]} : vector<2x256xf32> to vector<1x256xf32>
    %c1 = arith.constant 1 : index
    %c0_15 = arith.constant 0 : index
    %24 = vector.load %arg31[%c1, %c0_15] : memref<6x256xf32, #tpu.memory_space<vmem>>, vector<1x256xf32>
    tpu.vector_store %arg31[%c1, %c0_15], %23 {strides = array<i32>} : memref<6x256xf32, #tpu.memory_space<vmem>>, vector<1x256xf32>,
    %25 = vector.extract_strided_slice %22 {offsets = [1, 0], sizes = [1, 256], strides = [1, 1]} : vector<2x256xf32> to vector<1x256xf32>
    %c4 = arith.constant 4 : index
    %c0_16 = arith.constant 0 : index
    %26 = vector.load %arg31[%c4, %c0_16] : memref<6x256xf32, #tpu.memory_space<vmem>>, vector<1x256xf32>
    tpu.vector_store %arg31[%c4, %c0_16], %25 {strides = array<i32>} : memref<6x256xf32, #tpu.memory_space<vmem>>, vector<1x256xf32>,
    %27 = vector.extract_strided_slice %16 {offsets = [0, 512], sizes = [2, 256], strides = [1, 1]} : vector<2x768xf32> to vector<2x256xf32>
    %28 = vector.extract_strided_slice %27 {offsets = [0, 0], sizes = [1, 256], strides = [1, 1]} : vector<2x256xf32> to vector<1x256xf32>
    %c2 = arith.constant 2 : index
    %c0_17 = arith.constant 0 : index
    %29 = vector.load %arg31[%c2, %c0_17] : memref<6x256xf32, #tpu.memory_space<vmem>>, vector<1x256xf32>
    tpu.vector_store %arg31[%c2, %c0_17], %28 {strides = array<i32>} : memref<6x256xf32, #tpu.memory_space<vmem>>, vector<1x256xf32>,
    %30 = vector.extract_strided_slice %27 {offsets = [1, 0], sizes = [1, 256], strides = [1, 1]} : vector<2x256xf32> to vector<1x256xf32>
    %c5 = arith.constant 5 : index
    %c0_18 = arith.constant 0 : index
    %31 = vector.load %arg31[%c5, %c0_18] : memref<6x256xf32, #tpu.memory_space<vmem>>, vector<1x256xf32>
    tpu.vector_store %arg31[%c5, %c0_18], %30 {strides = array<i32>} : memref<6x256xf32, #tpu.memory_space<vmem>>, vector<1x256xf32>,
    %c0_19 = arith.constant 0 : index
    %c0_20 = arith.constant 0 : index
    %32 = vector.load %arg31[%c0_19, %c0_20] : memref<6x256xf32, #tpu.memory_space<vmem>>, vector<6x256xf32>
    %33 = arith.truncf %32 : vector<6x256xf32> to vector<6x256xbf16>
    %c0_21 = arith.constant 0 : index
    %c0_22 = arith.constant 0 : index
    %34 = vector.load %arg6[%c0_21, %c0_22] : memref<256x768xbf16, #tpu.memory_space<vmem>>, vector<256x768xbf16>
    %cst_23 = arith.constant dense<0.000000e+00> : vector<6x768xf32>
    %35 = tpu.matmul %33, %34, %cst_23 {dimension_numbers = #tpu.dot_dimension_numbers<[1], [0], [0], [1], [0, 0, 1, 1], [], []>} : vector<6x256xbf16>, vector<256x768xbf16>, vector<6x768xf32> -> vector<6x768xf32>
    %36 = vector.extract_strided_slice %35 {offsets = [0, 0], sizes = [6, 256], strides = [1, 1]} : vector<6x768xf32> to vector<6x256xf32>
    %c0_24 = arith.constant 0 : index
    %c0_25 = arith.constant 0 : index
    %37 = vector.load %arg32[%c0_24, %c0_25] : memref<192x256xf32, #tpu.memory_space<vmem>>, vector<6x256xf32>
    tpu.vector_store %arg32[%c0_24, %c0_25], %36 {strides = array<i32>} : memref<192x256xf32, #tpu.memory_space<vmem>>, vector<6x256xf32>,
    %38 = vector.extract_strided_slice %35 {offsets = [0, 256], sizes = [6, 256], strides = [1, 1]} : vector<6x768xf32> to vector<6x256xf32>
    %c6 = arith.constant 6 : index
    %c0_26 = arith.constant 0 : index
    %39 = vector.load %arg32[%c6, %c0_26] : memref<192x256xf32, #tpu.memory_space<vmem>>, vector<6x256xf32>
    tpu.vector_store %arg32[%c6, %c0_26], %38 {strides = array<i32>} : memref<192x256xf32, #tpu.memory_space<vmem>>, vector<6x256xf32>,
    %40 = vector.extract_strided_slice %35 {offsets = [0, 512], sizes = [6, 256], strides = [1, 1]} : vector<6x768xf32> to vector<6x256xf32>
    %c12 = arith.constant 12 : index
    %c0_27 = arith.constant 0 : index
    %41 = vector.load %arg32[%c12, %c0_27] : memref<192x256xf32, #tpu.memory_space<vmem>>, vector<6x256xf32>
    tpu.vector_store %arg32[%c12, %c0_27], %40 {strides = array<i32>} : memref<192x256xf32, #tpu.memory_space<vmem>>, vector<6x256xf32>,
    %c0_28 = arith.constant 0 : index
    %c0_29 = arith.constant 0 : index
    %42 = vector.load %arg32[%c0_28, %c0_29] : memref<192x256xf32, #tpu.memory_space<vmem>>, vector<18x256xf32>
    %c0_30 = arith.constant 0 : index
    %c0_31 = arith.constant 0 : index
    %43 = vector.load %arg7[%c0_30, %c0_31] : memref<14x18xf32, #tpu.memory_space<vmem>>, vector<14x18xf32>
    %cst_32 = arith.constant dense<0.000000e+00> : vector<14x256xf32>
    %44 = tpu.matmul %43, %42, %cst_32 {dimension_numbers = #tpu.dot_dimension_numbers<[1], [0], [0], [1], [0, 0, 1, 1], [], []>} : vector<14x18xf32>, vector<18x256xf32>, vector<14x256xf32> -> vector<14x256xf32>
    %c0_33 = arith.constant 0 : index
    %c0_34 = arith.constant 0 : index
    %45 = vector.load %arg8[%c0_33, %c0_34] : memref<1x256xf32, #tpu.memory_space<vmem>>, vector<1x256xf32>
    %46 = vector.broadcast %45 : vector<1x256xf32> to vector<14x256xf32>
    %47 = arith.addf %44, %46 : vector<14x256xf32>
    %cst_35 = arith.constant dense<0.000000e+00> : vector<256xf32>
    %48 = vector.multi_reduction <add>, %47, %cst_35 [0] : vector<14x256xf32> to vector<256xf32>
    %49 = vector.shape_cast %48 : vector<256xf32> to vector<1x256xf32>
    %50 = arith.mulf %47, %47 : vector<14x256xf32>
    %cst_36 = arith.constant dense<0.000000e+00> : vector<256xf32>
    %51 = vector.multi_reduction <add>, %50, %cst_36 [0] : vector<14x256xf32> to vector<256xf32>
    %52 = vector.shape_cast %51 : vector<256xf32> to vector<1x256xf32>
    %53 = tpu.concatenate %49, %52 in 0 : vector<1x256xf32>, vector<1x256xf32> -> vector<2x256xf32>
    %c0_37 = arith.constant 0 : index
    %c0_38 = arith.constant 0 : index
    %54 = vector.load %arg9[%c0_37, %c0_38] : memref<256x128xf32, #tpu.memory_space<vmem>>, vector<256x128xf32>
    %cst_39 = arith.constant dense<0.000000e+00> : vector<2x128xf32>
    %55 = tpu.matmul %53, %54, %cst_39 {dimension_numbers = #tpu.dot_dimension_numbers<[1], [0], [0], [1], [0, 0, 1, 1], [], []>} : vector<2x256xf32>, vector<256x128xf32>, vector<2x128xf32> -> vector<2x128xf32>
    %cst_40 = arith.constant 0.0102040814 : f32
    %56 = vector.broadcast %cst_40 : f32 to vector<2x128xf32>
    %57 = arith.mulf %55, %56 : vector<2x128xf32>
    %58 = vector.extract_strided_slice %57 {offsets = [0, 0], sizes = [1, 128], strides = [1, 1]} : vector<2x128xf32> to vector<1x128xf32>
    %59 = vector.extract_strided_slice %57 {offsets = [1, 0], sizes = [1, 128], strides = [1, 1]} : vector<2x128xf32> to vector<1x128xf32>
    %60 = arith.mulf %58, %58 : vector<1x128xf32>
    %61 = arith.subf %59, %60 : vector<1x128xf32>
    %c0_41 = arith.constant 0 : index
    %c0_42 = arith.constant 0 : index
    %62 = vector.load %arg11[%c0_41, %c0_42] : memref<1x128xf32, #tpu.memory_space<vmem>>, vector<1x128xf32>
    %cst_43 = arith.constant 9.99999974E-6 : f32
    %63 = vector.broadcast %cst_43 : f32 to vector<1x128xf32>
    %64 = arith.addf %61, %63 : vector<1x128xf32>
    %65 = math.rsqrt %64 : vector<1x128xf32>
    %66 = arith.mulf %62, %65 : vector<1x128xf32>
    %c0_44 = arith.constant 0 : index
    %c0_45 = arith.constant 0 : index
    %67 = vector.load %arg12[%c0_44, %c0_45] : memref<1x128xf32, #tpu.memory_space<vmem>>, vector<1x128xf32>
    %68 = arith.mulf %58, %66 : vector<1x128xf32>
    %69 = arith.subf %67, %68 : vector<1x128xf32>
    %70 = tpu.concatenate %66, %69 in 0 : vector<1x128xf32>, vector<1x128xf32> -> vector<2x128xf32>
    %c0_46 = arith.constant 0 : index
    %c0_47 = arith.constant 0 : index
    %71 = vector.load %arg10[%c0_46, %c0_47] : memref<128x256xf32, #tpu.memory_space<vmem>>, vector<128x256xf32>
    %cst_48 = arith.constant dense<0.000000e+00> : vector<2x256xf32>
    %72 = tpu.matmul %70, %71, %cst_48 {dimension_numbers = #tpu.dot_dimension_numbers<[1], [0], [0], [1], [0, 0, 1, 1], [], []>} : vector<2x128xf32>, vector<128x256xf32>, vector<2x256xf32> -> vector<2x256xf32>
    %73 = vector.extract_strided_slice %72 {offsets = [0, 0], sizes = [1, 256], strides = [1, 1]} : vector<2x256xf32> to vector<1x256xf32>
    %74 = vector.broadcast %73 : vector<1x256xf32> to vector<14x256xf32>
    %75 = arith.mulf %47, %74 : vector<14x256xf32>
    %76 = vector.extract_strided_slice %72 {offsets = [1, 0], sizes = [1, 256], strides = [1, 1]} : vector<2x256xf32> to vector<1x256xf32>
    %77 = vector.broadcast %76 : vector<1x256xf32> to vector<14x256xf32>
    %78 = arith.addf %75, %77 : vector<14x256xf32>
    %cst_49 = arith.constant 0.000000e+00 : f32
    %79 = vector.broadcast %cst_49 : f32 to vector<14x256xf32>
    %80 = arith.maximumf %78, %79 : vector<14x256xf32>
    %81 = arith.truncf %80 : vector<14x256xf32> to vector<14x256xbf16>
    %c0_50 = arith.constant 0 : index
    %c0_51 = arith.constant 0 : index
    %82 = vector.load %arg13[%c0_50, %c0_51] : memref<256x768xbf16, #tpu.memory_space<vmem>>, vector<256x768xbf16>
    %cst_52 = arith.constant dense<0.000000e+00> : vector<14x768xf32>
    %83 = tpu.matmul %81, %82, %cst_52 {dimension_numbers = #tpu.dot_dimension_numbers<[1], [0], [0], [1], [0, 0, 1, 1], [], []>} : vector<14x256xbf16>, vector<256x768xbf16>, vector<14x768xf32> -> vector<14x768xf32>
    %84 = vector.extract_strided_slice %83 {offsets = [0, 0], sizes = [14, 256], strides = [1, 1]} : vector<14x768xf32> to vector<14x256xf32>
    %c0_53 = arith.constant 0 : index
    %c0_54 = arith.constant 0 : index
    %85 = vector.load %arg32[%c0_53, %c0_54] : memref<192x256xf32, #tpu.memory_space<vmem>>, vector<14x256xf32>
    tpu.vector_store %arg32[%c0_53, %c0_54], %84 {strides = array<i32>} : memref<192x256xf32, #tpu.memory_space<vmem>>, vector<14x256xf32>,
    %86 = vector.extract_strided_slice %83 {offsets = [0, 256], sizes = [14, 256], strides = [1, 1]} : vector<14x768xf32> to vector<14x256xf32>
    %c14 = arith.constant 14 : index
    %c0_55 = arith.constant 0 : index
    %87 = vector.load %arg32[%c14, %c0_55] : memref<192x256xf32, #tpu.memory_space<vmem>>, vector<14x256xf32>
    tpu.vector_store %arg32[%c14, %c0_55], %86 {strides = array<i32>} : memref<192x256xf32, #tpu.memory_space<vmem>>, vector<14x256xf32>,
    %88 = vector.extract_strided_slice %83 {offsets = [0, 512], sizes = [14, 256], strides = [1, 1]} : vector<14x768xf32> to vector<14x256xf32>
    %c28 = arith.constant 28 : index
    %c0_56 = arith.constant 0 : index
    %89 = vector.load %arg32[%c28, %c0_56] : memref<192x256xf32, #tpu.memory_space<vmem>>, vector<14x256xf32>
    tpu.vector_store %arg32[%c28, %c0_56], %88 {strides = array<i32>} : memref<192x256xf32, #tpu.memory_space<vmem>>, vector<14x256xf32>,
    %c0_57 = arith.constant 0 : index
    %c0_58 = arith.constant 0 : index
    %90 = vector.load %arg32[%c0_57, %c0_58] : memref<192x256xf32, #tpu.memory_space<vmem>>, vector<42x256xf32>
    %c0_59 = arith.constant 0 : index
    %c0_60 = arith.constant 0 : index
    %91 = vector.load %arg14[%c0_59, %c0_60] : memref<30x42xf32, #tpu.memory_space<vmem>>, vector<30x42xf32>
    %cst_61 = arith.constant dense<0.000000e+00> : vector<30x256xf32>
    %92 = tpu.matmul %91, %90, %cst_61 {dimension_numbers = #tpu.dot_dimension_numbers<[1], [0], [0], [1], [0, 0, 1, 1], [], []>} : vector<30x42xf32>, vector<42x256xf32>, vector<30x256xf32> -> vector<30x256xf32>
    %c0_62 = arith.constant 0 : index
    %c0_63 = arith.constant 0 : index
    %93 = vector.load %arg15[%c0_62, %c0_63] : memref<1x256xf32, #tpu.memory_space<vmem>>, vector<1x256xf32>
    %94 = vector.broadcast %93 : vector<1x256xf32> to vector<30x256xf32>
    %95 = arith.addf %92, %94 : vector<30x256xf32>
    %cst_64 = arith.constant dense<0.000000e+00> : vector<256xf32>
    %96 = vector.multi_reduction <add>, %95, %cst_64 [0] : vector<30x256xf32> to vector<256xf32>
    %97 = vector.shape_cast %96 : vector<256xf32> to vector<1x256xf32>
    %98 = arith.mulf %95, %95 : vector<30x256xf32>
    %cst_65 = arith.constant dense<0.000000e+00> : vector<256xf32>
    %99 = vector.multi_reduction <add>, %98, %cst_65 [0] : vector<30x256xf32> to vector<256xf32>
    %100 = vector.shape_cast %99 : vector<256xf32> to vector<1x256xf32>
    %101 = tpu.concatenate %97, %100 in 0 : vector<1x256xf32>, vector<1x256xf32> -> vector<2x256xf32>
    %c0_66 = arith.constant 0 : index
    %c0_67 = arith.constant 0 : index
    %102 = vector.load %arg16[%c0_66, %c0_67] : memref<256x128xf32, #tpu.memory_space<vmem>>, vector<256x128xf32>
    %cst_68 = arith.constant dense<0.000000e+00> : vector<2x128xf32>
    %103 = tpu.matmul %101, %102, %cst_68 {dimension_numbers = #tpu.dot_dimension_numbers<[1], [0], [0], [1], [0, 0, 1, 1], [], []>} : vector<2x256xf32>, vector<256x128xf32>, vector<2x128xf32> -> vector<2x128xf32>
    %cst_69 = arith.constant 0.00222222228 : f32
    %104 = vector.broadcast %cst_69 : f32 to vector<2x128xf32>
    %105 = arith.mulf %103, %104 : vector<2x128xf32>
    %106 = vector.extract_strided_slice %105 {offsets = [0, 0], sizes = [1, 128], strides = [1, 1]} : vector<2x128xf32> to vector<1x128xf32>
    %107 = vector.extract_strided_slice %105 {offsets = [1, 0], sizes = [1, 128], strides = [1, 1]} : vector<2x128xf32> to vector<1x128xf32>
    %108 = arith.mulf %106, %106 : vector<1x128xf32>
    %109 = arith.subf %107, %108 : vector<1x128xf32>
    %c0_70 = arith.constant 0 : index
    %c0_71 = arith.constant 0 : index
    %110 = vector.load %arg18[%c0_70, %c0_71] : memref<1x128xf32, #tpu.memory_space<vmem>>, vector<1x128xf32>
    %cst_72 = arith.constant 9.99999974E-6 : f32
    %111 = vector.broadcast %cst_72 : f32 to vector<1x128xf32>
    %112 = arith.addf %109, %111 : vector<1x128xf32>
    %113 = math.rsqrt %112 : vector<1x128xf32>
    %114 = arith.mulf %110, %113 : vector<1x128xf32>
    %c0_73 = arith.constant 0 : index
    %c0_74 = arith.constant 0 : index
    %115 = vector.load %arg19[%c0_73, %c0_74] : memref<1x128xf32, #tpu.memory_space<vmem>>, vector<1x128xf32>
    %116 = arith.mulf %106, %114 : vector<1x128xf32>
    %117 = arith.subf %115, %116 : vector<1x128xf32>
    %118 = tpu.concatenate %114, %117 in 0 : vector<1x128xf32>, vector<1x128xf32> -> vector<2x128xf32>
    %c0_75 = arith.constant 0 : index
    %c0_76 = arith.constant 0 : index
    %119 = vector.load %arg17[%c0_75, %c0_76] : memref<128x256xf32, #tpu.memory_space<vmem>>, vector<128x256xf32>
    %cst_77 = arith.constant dense<0.000000e+00> : vector<2x256xf32>
    %120 = tpu.matmul %118, %119, %cst_77 {dimension_numbers = #tpu.dot_dimension_numbers<[1], [0], [0], [1], [0, 0, 1, 1], [], []>} : vector<2x128xf32>, vector<128x256xf32>, vector<2x256xf32> -> vector<2x256xf32>
    %121 = vector.extract_strided_slice %120 {offsets = [0, 0], sizes = [1, 256], strides = [1, 1]} : vector<2x256xf32> to vector<1x256xf32>
    %122 = vector.broadcast %121 : vector<1x256xf32> to vector<30x256xf32>
    %123 = arith.mulf %95, %122 : vector<30x256xf32>
    %124 = vector.extract_strided_slice %120 {offsets = [1, 0], sizes = [1, 256], strides = [1, 1]} : vector<2x256xf32> to vector<1x256xf32>
    %125 = vector.broadcast %124 : vector<1x256xf32> to vector<30x256xf32>
    %126 = arith.addf %123, %125 : vector<30x256xf32>
    %cst_78 = arith.constant 0.000000e+00 : f32
    %127 = vector.broadcast %cst_78 : f32 to vector<30x256xf32>
    %128 = arith.maximumf %126, %127 : vector<30x256xf32>
    %129 = arith.truncf %128 : vector<30x256xf32> to vector<30x256xbf16>
    %c0_79 = arith.constant 0 : index
    %c0_80 = arith.constant 0 : index
    %130 = vector.load %arg20[%c0_79, %c0_80] : memref<256x768xbf16, #tpu.memory_space<vmem>>, vector<256x768xbf16>
    %cst_81 = arith.constant dense<0.000000e+00> : vector<30x768xf32>
    %131 = tpu.matmul %129, %130, %cst_81 {dimension_numbers = #tpu.dot_dimension_numbers<[1], [0], [0], [1], [0, 0, 1, 1], [], []>} : vector<30x256xbf16>, vector<256x768xbf16>, vector<30x768xf32> -> vector<30x768xf32>
    %132 = vector.extract_strided_slice %131 {offsets = [0, 0], sizes = [30, 256], strides = [1, 1]} : vector<30x768xf32> to vector<30x256xf32>
    %c0_82 = arith.constant 0 : index
    %c0_83 = arith.constant 0 : index
    %133 = vector.load %arg32[%c0_82, %c0_83] : memref<192x256xf32, #tpu.memory_space<vmem>>, vector<30x256xf32>
    tpu.vector_store %arg32[%c0_82, %c0_83], %132 {strides = array<i32>} : memref<192x256xf32, #tpu.memory_space<vmem>>, vector<30x256xf32>,
    %134 = vector.extract_strided_slice %131 {offsets = [0, 256], sizes = [30, 256], strides = [1, 1]} : vector<30x768xf32> to vector<30x256xf32>
    %c30 = arith.constant 30 : index
    %c0_84 = arith.constant 0 : index
    %135 = vector.load %arg32[%c30, %c0_84] : memref<192x256xf32, #tpu.memory_space<vmem>>, vector<30x256xf32>
    tpu.vector_store %arg32[%c30, %c0_84], %134 {strides = array<i32>} : memref<192x256xf32, #tpu.memory_space<vmem>>, vector<30x256xf32>,
    %136 = vector.extract_strided_slice %131 {offsets = [0, 512], sizes = [30, 256], strides = [1, 1]} : vector<30x768xf32> to vector<30x256xf32>
    %c60 = arith.constant 60 : index
    %c0_85 = arith.constant 0 : index
    %137 = vector.load %arg32[%c60, %c0_85] : memref<192x256xf32, #tpu.memory_space<vmem>>, vector<30x256xf32>
    tpu.vector_store %arg32[%c60, %c0_85], %136 {strides = array<i32>} : memref<192x256xf32, #tpu.memory_space<vmem>>, vector<30x256xf32>,
    %c0_86 = arith.constant 0 : index
    %c0_87 = arith.constant 0 : index
    %138 = vector.load %arg32[%c0_86, %c0_87] : memref<192x256xf32, #tpu.memory_space<vmem>>, vector<90x256xf32>
    %c0_88 = arith.constant 0 : index
    %c0_89 = arith.constant 0 : index
    %139 = vector.load %arg21[%c0_88, %c0_89] : memref<64x90xf32, #tpu.memory_space<vmem>>, vector<64x90xf32>
    %cst_90 = arith.constant dense<0.000000e+00> : vector<64x256xf32>
    %140 = tpu.matmul %139, %138, %cst_90 {dimension_numbers = #tpu.dot_dimension_numbers<[1], [0], [0], [1], [0, 0, 1, 1], [], []>} : vector<64x90xf32>, vector<90x256xf32>, vector<64x256xf32> -> vector<64x256xf32>
    %c0_91 = arith.constant 0 : index
    %c0_92 = arith.constant 0 : index
    %141 = vector.load %arg22[%c0_91, %c0_92] : memref<1x256xf32, #tpu.memory_space<vmem>>, vector<1x256xf32>
    %142 = vector.broadcast %141 : vector<1x256xf32> to vector<64x256xf32>
    %143 = arith.addf %140, %142 : vector<64x256xf32>
    %cst_93 = arith.constant dense<0.000000e+00> : vector<256xf32>
    %144 = vector.multi_reduction <add>, %143, %cst_93 [0] : vector<64x256xf32> to vector<256xf32>
    %145 = vector.shape_cast %144 : vector<256xf32> to vector<1x256xf32>
    %146 = arith.mulf %143, %143 : vector<64x256xf32>
    %cst_94 = arith.constant dense<0.000000e+00> : vector<256xf32>
    %147 = vector.multi_reduction <add>, %146, %cst_94 [0] : vector<64x256xf32> to vector<256xf32>
    %148 = vector.shape_cast %147 : vector<256xf32> to vector<1x256xf32>
    %149 = tpu.concatenate %145, %148 in 0 : vector<1x256xf32>, vector<1x256xf32> -> vector<2x256xf32>
    %c0_95 = arith.constant 0 : index
    %c0_96 = arith.constant 0 : index
    %150 = vector.load %arg23[%c0_95, %c0_96] : memref<256x128xf32, #tpu.memory_space<vmem>>, vector<256x128xf32>
    %cst_97 = arith.constant dense<0.000000e+00> : vector<2x128xf32>
    %151 = tpu.matmul %149, %150, %cst_97 {dimension_numbers = #tpu.dot_dimension_numbers<[1], [0], [0], [1], [0, 0, 1, 1], [], []>} : vector<2x256xf32>, vector<256x128xf32>, vector<2x128xf32> -> vector<2x128xf32>
    %cst_98 = arith.constant 4.8828125E-4 : f32
    %152 = vector.broadcast %cst_98 : f32 to vector<2x128xf32>
    %153 = arith.mulf %151, %152 : vector<2x128xf32>
    %154 = vector.extract_strided_slice %153 {offsets = [0, 0], sizes = [1, 128], strides = [1, 1]} : vector<2x128xf32> to vector<1x128xf32>
    %155 = vector.extract_strided_slice %153 {offsets = [1, 0], sizes = [1, 128], strides = [1, 1]} : vector<2x128xf32> to vector<1x128xf32>
    %156 = arith.mulf %154, %154 : vector<1x128xf32>
    %157 = arith.subf %155, %156 : vector<1x128xf32>
    %c0_99 = arith.constant 0 : index
    %c0_100 = arith.constant 0 : index
    %158 = vector.load %arg25[%c0_99, %c0_100] : memref<1x128xf32, #tpu.memory_space<vmem>>, vector<1x128xf32>
    %cst_101 = arith.constant 9.99999974E-6 : f32
    %159 = vector.broadcast %cst_101 : f32 to vector<1x128xf32>
    %160 = arith.addf %157, %159 : vector<1x128xf32>
    %161 = math.rsqrt %160 : vector<1x128xf32>
    %162 = arith.mulf %158, %161 : vector<1x128xf32>
    %c0_102 = arith.constant 0 : index
    %c0_103 = arith.constant 0 : index
    %163 = vector.load %arg26[%c0_102, %c0_103] : memref<1x128xf32, #tpu.memory_space<vmem>>, vector<1x128xf32>
    %164 = arith.mulf %154, %162 : vector<1x128xf32>
    %165 = arith.subf %163, %164 : vector<1x128xf32>
    %166 = tpu.concatenate %162, %165 in 0 : vector<1x128xf32>, vector<1x128xf32> -> vector<2x128xf32>
    %c0_104 = arith.constant 0 : index
    %c0_105 = arith.constant 0 : index
    %167 = vector.load %arg24[%c0_104, %c0_105] : memref<128x256xf32, #tpu.memory_space<vmem>>, vector<128x256xf32>
    %cst_106 = arith.constant dense<0.000000e+00> : vector<2x256xf32>
    %168 = tpu.matmul %166, %167, %cst_106 {dimension_numbers = #tpu.dot_dimension_numbers<[1], [0], [0], [1], [0, 0, 1, 1], [], []>} : vector<2x128xf32>, vector<128x256xf32>, vector<2x256xf32> -> vector<2x256xf32>
    %169 = vector.extract_strided_slice %168 {offsets = [0, 0], sizes = [1, 256], strides = [1, 1]} : vector<2x256xf32> to vector<1x256xf32>
    %170 = vector.broadcast %169 : vector<1x256xf32> to vector<64x256xf32>
    %171 = arith.mulf %143, %170 : vector<64x256xf32>
    %172 = vector.extract_strided_slice %168 {offsets = [1, 0], sizes = [1, 256], strides = [1, 1]} : vector<2x256xf32> to vector<1x256xf32>
    %173 = vector.broadcast %172 : vector<1x256xf32> to vector<64x256xf32>
    %174 = arith.addf %171, %173 : vector<64x256xf32>
    %cst_107 = arith.constant 0.000000e+00 : f32
    %175 = vector.broadcast %cst_107 : f32 to vector<64x256xf32>
    %176 = arith.maximumf %174, %175 : vector<64x256xf32>
    %177 = arith.truncf %176 : vector<64x256xf32> to vector<64x256xbf16>
    %c0_108 = arith.constant 0 : index
    %c0_109 = arith.constant 0 : index
    %178 = vector.load %arg27[%c0_108, %c0_109] : memref<256x384xbf16, #tpu.memory_space<vmem>>, vector<256x384xbf16>
    %cst_110 = arith.constant dense<0.000000e+00> : vector<64x384xf32>
    %179 = tpu.matmul %177, %178, %cst_110 {dimension_numbers = #tpu.dot_dimension_numbers<[1], [0], [0], [1], [0, 0, 1, 1], [], []>} : vector<64x256xbf16>, vector<256x384xbf16>, vector<64x384xf32> -> vector<64x384xf32>
    %180 = vector.extract_strided_slice %179 {offsets = [0, 0], sizes = [64, 128], strides = [1, 1]} : vector<64x384xf32> to vector<64x128xf32>
    %c0_111 = arith.constant 0 : index
    %c0_112 = arith.constant 0 : index
    %181 = vector.load %arg32[%c0_111, %c0_112] : memref<192x256xf32, #tpu.memory_space<vmem>>, vector<64x128xf32>
    tpu.vector_store %arg32[%c0_111, %c0_112], %180 {strides = array<i32>} : memref<192x256xf32, #tpu.memory_space<vmem>>, vector<64x128xf32>,
    %182 = vector.extract_strided_slice %179 {offsets = [0, 128], sizes = [64, 128], strides = [1, 1]} : vector<64x384xf32> to vector<64x128xf32>
    %c64 = arith.constant 64 : index
    %c0_113 = arith.constant 0 : index
    %183 = vector.load %arg32[%c64, %c0_113] : memref<192x256xf32, #tpu.memory_space<vmem>>, vector<64x128xf32>
    tpu.vector_store %arg32[%c64, %c0_113], %182 {strides = array<i32>} : memref<192x256xf32, #tpu.memory_space<vmem>>, vector<64x128xf32>,
    %184 = vector.extract_strided_slice %179 {offsets = [0, 256], sizes = [64, 128], strides = [1, 1]} : vector<64x384xf32> to vector<64x128xf32>
    %c128 = arith.constant 128 : index
    %c0_114 = arith.constant 0 : index
    %185 = vector.load %arg32[%c128, %c0_114] : memref<192x256xf32, #tpu.memory_space<vmem>>, vector<64x128xf32>
    tpu.vector_store %arg32[%c128, %c0_114], %184 {strides = array<i32>} : memref<192x256xf32, #tpu.memory_space<vmem>>, vector<64x128xf32>,
    %c0_115 = arith.constant 0 : index
    %c0_116 = arith.constant 0 : index
    %186 = vector.load %arg32[%c0_115, %c0_116] : memref<192x256xf32, #tpu.memory_space<vmem>>, vector<192x128xf32>
    %c0_117 = arith.constant 0 : index
    %c0_118 = arith.constant 0 : index
    %187 = vector.load %arg28[%c0_117, %c0_118] : memref<128x192xf32, #tpu.memory_space<vmem>>, vector<128x192xf32>
    %cst_119 = arith.constant dense<0.000000e+00> : vector<128x128xf32>
    %188 = tpu.matmul %187, %186, %cst_119 {dimension_numbers = #tpu.dot_dimension_numbers<[1], [0], [0], [1], [0, 0, 1, 1], [], []>} : vector<128x192xf32>, vector<192x128xf32>, vector<128x128xf32> -> vector<128x128xf32>
    %c0_120 = arith.constant 0 : index
    %c0_121 = arith.constant 0 : index
    %189 = vector.load %arg29[%c0_120, %c0_121] : memref<1x128xf32, #tpu.memory_space<vmem>>, vector<1x128xf32>
    %190 = vector.broadcast %189 : vector<1x128xf32> to vector<128x128xf32>
    %191 = arith.addf %188, %190 : vector<128x128xf32>
    %cst_122 = arith.constant 5.000000e-01 : f32
    %192 = vector.broadcast %cst_122 : f32 to vector<128x128xf32>
    %193 = arith.mulf %192, %191 : vector<128x128xf32>
    %194 = math.tanh %193 : vector<128x128xf32>
    %cst_123 = arith.constant 5.000000e-01 : f32
    %195 = vector.broadcast %cst_123 : f32 to vector<128x128xf32>
    %196 = arith.mulf %195, %194 : vector<128x128xf32>
    %cst_124 = arith.constant 5.000000e-01 : f32
    %197 = vector.broadcast %cst_124 : f32 to vector<128x128xf32>
    %198 = arith.addf %196, %197 : vector<128x128xf32>
    %c0_125 = arith.constant 0 : index
    %c0_126 = arith.constant 0 : index
    %199 = vector.load %arg30[%c0_125, %c0_126] : memref<128x128xf32, #tpu.memory_space<vmem>>, vector<128x128xf32>
    tpu.vector_store %arg30[%c0_125, %c0_126], %198 {strides = array<i32>} : memref<128x128xf32, #tpu.memory_space<vmem>>, vector<128x128xf32>,
    return
  }
  func.func @transform_0(%arg0: i32) -> (i32, i32) {
    %c0_i32 = arith.constant 0 : i32
    %c0_i32_0 = arith.constant 0 : i32
    %c0_i32_1 = arith.constant 0 : i32
    return %c0_i32, %c0_i32_0 : i32, i32
  }
  func.func @transform_1(%arg0: i32) -> (i32, i32) {
    %c0_i32 = arith.constant 0 : i32
    %c0_i32_0 = arith.constant 0 : i32
    %c0_i32_1 = arith.constant 0 : i32
    return %c0_i32, %c0_i32_0 : i32, i32
  }
  func.func @transform_2(%arg0: i32) -> (i32, i32) {
    %c0_i32 = arith.constant 0 : i32
    %c0_i32_0 = arith.constant 0 : i32
    %c0_i32_1 = arith.constant 0 : i32
    return %c0_i32, %c0_i32_0 : i32, i32
  }
  func.func @transform_3(%arg0: i32) -> (i32, i32) {
    %c0_i32 = arith.constant 0 : i32
    %c0_i32_0 = arith.constant 0 : i32
    %c0_i32_1 = arith.constant 0 : i32
    return %c0_i32, %c0_i32_0 : i32, i32
  }
  func.func @transform_4(%arg0: i32) -> (i32, i32) {
    %c0_i32 = arith.constant 0 : i32
    %c0_i32_0 = arith.constant 0 : i32
    %c0_i32_1 = arith.constant 0 : i32
    return %c0_i32, %c0_i32_0 : i32, i32
  }
  func.func @transform_5(%arg0: i32) -> (i32, i32) {
    %c0_i32 = arith.constant 0 : i32
    %c0_i32_0 = arith.constant 0 : i32
    %c0_i32_1 = arith.constant 0 : i32
    return %c0_i32, %c0_i32_0 : i32, i32
  }
  func.func @transform_6(%arg0: i32) -> (i32, i32) {
    %c0_i32 = arith.constant 0 : i32
    %c0_i32_0 = arith.constant 0 : i32
    %c0_i32_1 = arith.constant 0 : i32
    return %c0_i32, %c0_i32_0 : i32, i32
  }
  func.func @transform_7(%arg0: i32) -> (i32, i32) {
    %c0_i32 = arith.constant 0 : i32
    %c0_i32_0 = arith.constant 0 : i32
    %c0_i32_1 = arith.constant 0 : i32
    return %c0_i32, %c0_i32_0 : i32, i32
  }
  func.func @transform_8(%arg0: i32) -> (i32, i32) {
    %c0_i32 = arith.constant 0 : i32
    %c0_i32_0 = arith.constant 0 : i32
    %c0_i32_1 = arith.constant 0 : i32
    return %c0_i32, %c0_i32_0 : i32, i32
  }
  func.func @transform_9(%arg0: i32) -> (i32, i32) {
    %c0_i32 = arith.constant 0 : i32
    %c0_i32_0 = arith.constant 0 : i32
    %c0_i32_1 = arith.constant 0 : i32
    return %c0_i32, %c0_i32_0 : i32, i32
  }
  func.func @transform_10(%arg0: i32) -> (i32, i32) {
    %c0_i32 = arith.constant 0 : i32
    %c0_i32_0 = arith.constant 0 : i32
    %c0_i32_1 = arith.constant 0 : i32
    return %c0_i32, %c0_i32_0 : i32, i32
  }
  func.func @transform_11(%arg0: i32) -> (i32, i32) {
    %c0_i32 = arith.constant 0 : i32
    %c0_i32_0 = arith.constant 0 : i32
    %c0_i32_1 = arith.constant 0 : i32
    return %c0_i32, %c0_i32_0 : i32, i32
  }
  func.func @transform_12(%arg0: i32) -> (i32, i32) {
    %c0_i32 = arith.constant 0 : i32
    %c0_i32_0 = arith.constant 0 : i32
    %c0_i32_1 = arith.constant 0 : i32
    return %c0_i32, %c0_i32_0 : i32, i32
  }
  func.func @transform_13(%arg0: i32) -> (i32, i32) {
    %c0_i32 = arith.constant 0 : i32
    %c0_i32_0 = arith.constant 0 : i32
    %c0_i32_1 = arith.constant 0 : i32
    return %c0_i32, %c0_i32_0 : i32, i32
  }
  func.func @transform_14(%arg0: i32) -> (i32, i32) {
    %c0_i32 = arith.constant 0 : i32
    %c0_i32_0 = arith.constant 0 : i32
    %c0_i32_1 = arith.constant 0 : i32
    return %c0_i32, %c0_i32_0 : i32, i32
  }
  func.func @transform_15(%arg0: i32) -> (i32, i32) {
    %c0_i32 = arith.constant 0 : i32
    %c0_i32_0 = arith.constant 0 : i32
    %c0_i32_1 = arith.constant 0 : i32
    return %c0_i32, %c0_i32_0 : i32, i32
  }
  func.func @transform_16(%arg0: i32) -> (i32, i32) {
    %c0_i32 = arith.constant 0 : i32
    %c0_i32_0 = arith.constant 0 : i32
    %c0_i32_1 = arith.constant 0 : i32
    return %c0_i32, %c0_i32_0 : i32, i32
  }
  func.func @transform_17(%arg0: i32) -> (i32, i32) {
    %c0_i32 = arith.constant 0 : i32
    %c0_i32_0 = arith.constant 0 : i32
    %c0_i32_1 = arith.constant 0 : i32
    return %c0_i32, %c0_i32_0 : i32, i32
  }
  func.func @transform_18(%arg0: i32) -> (i32, i32) {
    %c0_i32 = arith.constant 0 : i32
    %c0_i32_0 = arith.constant 0 : i32
    %c0_i32_1 = arith.constant 0 : i32
    return %c0_i32, %c0_i32_0 : i32, i32
  }
  func.func @transform_19(%arg0: i32) -> (i32, i32) {
    %c0_i32 = arith.constant 0 : i32
    %c0_i32_0 = arith.constant 0 : i32
    %c0_i32_1 = arith.constant 0 : i32
    return %c0_i32, %c0_i32_0 : i32, i32
  }
  func.func @transform_20(%arg0: i32) -> (i32, i32) {
    %c0_i32 = arith.constant 0 : i32
    %c0_i32_0 = arith.constant 0 : i32
    %c0_i32_1 = arith.constant 0 : i32
    return %c0_i32, %c0_i32_0 : i32, i32
  }
  func.func @transform_21(%arg0: i32) -> (i32, i32) {
    %c0_i32 = arith.constant 0 : i32
    %c0_i32_0 = arith.constant 0 : i32
    %c0_i32_1 = arith.constant 0 : i32
    return %c0_i32, %c0_i32_0 : i32, i32
  }
  func.func @transform_22(%arg0: i32) -> (i32, i32) {
    %c0_i32 = arith.constant 0 : i32
    %c0_i32_0 = arith.constant 0 : i32
    %c0_i32_1 = arith.constant 0 : i32
    return %c0_i32, %c0_i32_0 : i32, i32
  }
  func.func @transform_23(%arg0: i32) -> (i32, i32) {
    %c0_i32 = arith.constant 0 : i32
    %c0_i32_0 = arith.constant 0 : i32
    %c0_i32_1 = arith.constant 0 : i32
    return %c0_i32, %c0_i32_0 : i32, i32
  }
  func.func @transform_24(%arg0: i32) -> (i32, i32) {
    %c0_i32 = arith.constant 0 : i32
    %c0_i32_0 = arith.constant 0 : i32
    %c0_i32_1 = arith.constant 0 : i32
    return %c0_i32, %c0_i32_0 : i32, i32
  }
  func.func @transform_25(%arg0: i32) -> (i32, i32) {
    %c0_i32 = arith.constant 0 : i32
    %c0_i32_0 = arith.constant 0 : i32
    %c0_i32_1 = arith.constant 0 : i32
    return %c0_i32, %c0_i32_0 : i32, i32
  }
  func.func @transform_26(%arg0: i32) -> (i32, i32) {
    %c0_i32 = arith.constant 0 : i32
    %c0_i32_0 = arith.constant 0 : i32
    %c0_i32_1 = arith.constant 0 : i32
    return %c0_i32, %c0_i32_0 : i32, i32
  }
  func.func @transform_27(%arg0: i32) -> (i32, i32) {
    %c0_i32 = arith.constant 0 : i32
    %c0_i32_0 = arith.constant 0 : i32
    %c0_i32_1 = arith.constant 0 : i32
    return %c0_i32, %c0_i32_0 : i32, i32
  }
  func.func @transform_28(%arg0: i32) -> (i32, i32) {
    %c0_i32 = arith.constant 0 : i32
    %c0_i32_0 = arith.constant 0 : i32
    %c0_i32_1 = arith.constant 0 : i32
    return %c0_i32, %c0_i32_0 : i32, i32
  }
  func.func @transform_29(%arg0: i32) -> (i32, i32) {
    %c0_i32 = arith.constant 0 : i32
    %c0_i32_0 = arith.constant 0 : i32
    %c0_i32_1 = arith.constant 0 : i32
    return %c0_i32, %c0_i32_0 : i32, i32
  }
}

</mosaic_0001>

<llo_original>
// kernel: decoder_ukbb_forward.1
$region0: #{decoder_ukbb_forward.1}
  #allocation0 [shape = 'u32[]', space=smem, size = 0x4, offset = 0x4, fixed_abs, tag = 'smem constant byte address 0x4 - core index']
  #allocation1 [shape = 'u32[144,128]{1,0:T(1,128)}', space=vmem, size = 0x12000, scoped, tag = 'internal scratch']
  #allocation2 [shape = 'f32[6,256]{1,0:T(8,128)}', space=vmem, size = 0x2000, scoped, tag = 'scratch operand']
  #allocation3 [shape = 'f32[192,256]{1,0:T(8,128)}', space=vmem, size = 0x30000, scoped, tag = 'scratch operand']
  %s0 = inlined_call_operand.smem [shape: u32[30], index: -1, kind: input, shape index: {}]
  %s1 = sld [smem:[%s0]]
  %s2 = scalar_lea.smem %s0, 1
  %s3 = sld [smem:[%s2]]
  %s4 = scalar_lea.smem %s0, 2
  %s5 = sld [smem:[%s4]]
  %s6 = scalar_lea.smem %s0, 3
  %s7 = sld [smem:[%s6]]
  %s8 = scalar_lea.smem %s0, 4
  %s9 = sld [smem:[%s8]]
  %s10 = scalar_lea.smem %s0, 5
  %s11 = sld [smem:[%s10]]
  %s12 = scalar_lea.smem %s0, 6
  %s13 = sld [smem:[%s12]]
  %s14 = scalar_lea.smem %s0, 7
  %s15 = sld [smem:[%s14]]
  %s16 = scalar_lea.smem %s0, 8
  %s17 = sld [smem:[%s16]]
  %s18 = scalar_lea.smem %s0, 9
  %s19 = sld [smem:[%s18]]
  %s20 = scalar_lea.smem %s0, 10
  %s21 = sld [smem:[%s20]]
  %s22 = scalar_lea.smem %s0, 11
  %s23 = sld [smem:[%s22]]
  %s24 = scalar_lea.smem %s0, 12
  %s25 = sld [smem:[%s24]]
  %s26 = scalar_lea.smem %s0, 13
  %s27 = sld [smem:[%s26]]
  %s28 = scalar_lea.smem %s0, 14
  %s29 = sld [smem:[%s28]]
  %s30 = scalar_lea.smem %s0, 15
  %s31 = sld [smem:[%s30]]
  %s32 = scalar_lea.smem %s0, 16
  %s33 = sld [smem:[%s32]]
  %s34 = scalar_lea.smem %s0, 17
  %s35 = sld [smem:[%s34]]
  %s36 = scalar_lea.smem %s0, 18
  %s37 = sld [smem:[%s36]]
  %s38 = scalar_lea.smem %s0, 19
  %s39 = sld [smem:[%s38]]
  %s40 = scalar_lea.smem %s0, 20
  %s41 = sld [smem:[%s40]]
  %s42 = scalar_lea.smem %s0, 21
  %s43 = sld [smem:[%s42]]
  %s44 = scalar_lea.smem %s0, 22
  %s45 = sld [smem:[%s44]]
  %s46 = scalar_lea.smem %s0, 23
  %s47 = sld [smem:[%s46]]
  %s48 = scalar_lea.smem %s0, 24
  %s49 = sld [smem:[%s48]]
  %s50 = scalar_lea.smem %s0, 25
  %s51 = sld [smem:[%s50]]
  %s52 = scalar_lea.smem %s0, 26
  %s53 = sld [smem:[%s52]]
  %s54 = scalar_lea.smem %s0, 27
  %s55 = sld [smem:[%s54]]
  %s56 = scalar_lea.smem %s0, 28
  %s57 = sld [smem:[%s56]]
  %s58 = scalar_lea.smem %s0, 29
  %s59 = sld [smem:[%s58]]
  %s60 = sld [smem:[#allocation0]]
  $region182: #{decoder_ukbb_forward.1} parent=0
    _
  %s62 = ssub.s32 1, %s60
  %s63 = scalar_select 0, %s62, %s60
  $region1: #{decoder_ukbb_forward.1} parent=0
    #allocation4 [shape = 'u8[393216]{0}', space=vmem, size = 0x60000, scoped, tag = 'input window, operand 3, single buffered']
    #allocation5 [shape = 's32[1]{0}', space=sflag, size = 0x4, scoped, tag = 'scoped memory for decoder_ukbb_forward.1']
    #allocation6 [shape = 's32[1]{0}', space=sflag, size = 0x4, scoped, tag = 'scoped memory for decoder_ukbb_forward.1']
    #allocation7 [shape = 'u8[393216]{0}', space=vmem, size = 0x60000, scoped, tag = 'input window, operand 5, single buffered']
    #allocation8 [shape = 's32[1]{0}', space=sflag, size = 0x4, scoped, tag = 'scoped memory for decoder_ukbb_forward.1']
    #allocation9 [shape = 'u8[131072]{0}', space=vmem, size = 0x20000, scoped, tag = 'input window, operand 8, single buffered']
    #allocation10 [shape = 'u8[131072]{0}', space=vmem, size = 0x20000, scoped, tag = 'input window, operand 9, single buffered']
    #allocation11 [shape = 's32[1]{0}', space=sflag, size = 0x4, scoped, tag = 'scoped memory for decoder_ukbb_forward.1']
    #allocation12 [shape = 'u8[393216]{0}', space=vmem, size = 0x60000, scoped, tag = 'input window, operand 12, single buffered']
    #allocation13 [shape = 'u8[131072]{0}', space=vmem, size = 0x20000, scoped, tag = 'input window, operand 15, single buffered']
    #allocation14 [shape = 's32[1]{0}', space=sflag, size = 0x4, scoped, tag = 'scoped memory for decoder_ukbb_forward.1']
    #allocation15 [shape = 'u8[131072]{0}', space=vmem, size = 0x20000, scoped, tag = 'input window, operand 16, single buffered']
    #allocation16 [shape = 'u8[512]{0}', space=vmem, size = 0x400, scoped, tag = 'input window, operand 17, single buffered']
    #allocation17 [shape = 's32[1]{0}', space=sflag, size = 0x4, scoped, tag = 'scoped memory for decoder_ukbb_forward.1']
    #allocation18 [shape = 'u8[512]{0}', space=vmem, size = 0x400, scoped, tag = 'input window, operand 18, single buffered']
    #allocation19 [shape = 'u8[393216]{0}', space=vmem, size = 0x60000, scoped, tag = 'input window, operand 19, single buffered']
    #allocation20 [shape = 's32[1]{0}', space=sflag, size = 0x4, scoped, tag = 'scoped memory for decoder_ukbb_forward.1']
    #allocation21 [shape = 'u8[131072]{0}', space=vmem, size = 0x20000, scoped, tag = 'input window, operand 22, single buffered']
    #allocation22 [shape = 'u8[131072]{0}', space=vmem, size = 0x20000, scoped, tag = 'input window, operand 23, single buffered']
    #allocation23 [shape = 's32[1]{0}', space=sflag, size = 0x4, scoped, tag = 'scoped memory for decoder_ukbb_forward.1']
    #allocation24 [shape = 'u8[512]{0}', space=vmem, size = 0x400, scoped, tag = 'input window, operand 24, single buffered']
    #allocation25 [shape = 'u8[512]{0}', space=vmem, size = 0x400, scoped, tag = 'input window, operand 25, single buffered']
    #allocation26 [shape = 's32[1]{0}', space=sflag, size = 0x4, scoped, tag = 'scoped memory for decoder_ukbb_forward.1']
    #allocation27 [shape = 'u8[65536]{0}', space=vmem, size = 0x10000, scoped, tag = 'output window, operand 0, single buffered']
    %64 = vsyncpa [#allocation5], 0
    %65 = vsyncpa [#allocation8], 0
    %66 = vsyncpa [#allocation11], 0
    %67 = vsyncpa [#allocation14], 0
    %68 = vsyncpa [#allocation17], 0
    %69 = vsyncpa [#allocation20], 0
    %70 = vsyncpa [#allocation23], 0
    %71 = vsyncpa [#allocation26], 0
    %72 = vsyncpa [#allocation6], 0
    // Predicated region
    $region2: #{decoder_ukbb_forward.1} parent=1 // pred_check
      _
    $region3: #{decoder_ukbb_forward.1} parent=1 // pred_check_branch
      %74 = sbr.rel (0) target = $region5
    $region4: #{decoder_ukbb_forward.1} parent=1 // pred_region
      _
    $region5: #{decoder_ukbb_forward.1} parent=1 // pred_fallthru
      _
    // Predicated region
    $region6: #{decoder_ukbb_forward.1} parent=1 // pred_check
      _
    $region7: #{decoder_ukbb_forward.1} parent=1 // pred_check_branch
      %76 = sbr.rel (0) target = $region9
    $region8: #{decoder_ukbb_forward.1} parent=1 // pred_region
      _
    $region9: #{decoder_ukbb_forward.1} parent=1 // pred_fallthru
      _
    // Predicated region
    $region10: #{decoder_ukbb_forward.1} parent=1 // pred_check
      _
    $region11: #{decoder_ukbb_forward.1} parent=1 // pred_check_branch
      %78 = sbr.rel (0) target = $region13
    $region12: #{decoder_ukbb_forward.1} parent=1 // pred_region
      _
    $region13: #{decoder_ukbb_forward.1} parent=1 // pred_fallthru
      _
    // Predicated region
    $region14: #{decoder_ukbb_forward.1} parent=1 // pred_check
      _
    $region15: #{decoder_ukbb_forward.1} parent=1 // pred_check_branch
      %80 = sbr.rel (0) target = $region17
    $region16: #{decoder_ukbb_forward.1} parent=1 // pred_region
      %s82 = ssub.s32 12288, 12288
      %83 = vsyncadd [#allocation5], %s82
      %s84 = sshll.u32 [#allocation4], 4
      %s85 = int_to_ptr.vmem [resolvable:$true] %s84
      %90 = dma.hbm_to_vmem [thread:$0]  %s7, 12288, %s85, [#allocation5], 384, 384, 24
    $region17: #{decoder_ukbb_forward.1} parent=1 // pred_fallthru
      _
    // Predicated region
    $region18: #{decoder_ukbb_forward.1} parent=1 // pred_check
      _
    $region19: #{decoder_ukbb_forward.1} parent=1 // pred_check_branch
      %92 = sbr.rel (0) target = $region21
    $region20: #{decoder_ukbb_forward.1} parent=1 // pred_region
      _
    $region21: #{decoder_ukbb_forward.1} parent=1 // pred_fallthru
      _
    // Predicated region
    $region22: #{decoder_ukbb_forward.1} parent=1 // pred_check
      _
    $region23: #{decoder_ukbb_forward.1} parent=1 // pred_check_branch
      %94 = sbr.rel (0) target = $region25
    $region24: #{decoder_ukbb_forward.1} parent=1 // pred_region
      %s96 = ssub.s32 12288, 12288
      %97 = vsyncadd [#allocation8], %s96
      %s98 = sshll.u32 [#allocation7], 4
      %s99 = int_to_ptr.vmem [resolvable:$true] %s98
      %104 = dma.hbm_to_vmem [thread:$0]  %s11, 12288, %s99, [#allocation8], 384, 384, 24
    $region25: #{decoder_ukbb_forward.1} parent=1 // pred_fallthru
      _
    // Predicated region
    $region26: #{decoder_ukbb_forward.1} parent=1 // pred_check
      _
    $region27: #{decoder_ukbb_forward.1} parent=1 // pred_check_branch
      %106 = sbr.rel (0) target = $region29
    $region28: #{decoder_ukbb_forward.1} parent=1 // pred_region
      _
    $region29: #{decoder_ukbb_forward.1} parent=1 // pred_fallthru
      _
    // Predicated region
    $region30: #{decoder_ukbb_forward.1} parent=1 // pred_check
      _
    $region31: #{decoder_ukbb_forward.1} parent=1 // pred_check_branch
      %108 = sbr.rel (0) target = $region33
    $region32: #{decoder_ukbb_forward.1} parent=1 // pred_region
      _
    $region33: #{decoder_ukbb_forward.1} parent=1 // pred_fallthru
      _
    // Predicated region
    $region34: #{decoder_ukbb_forward.1} parent=1 // pred_check
      _
    $region35: #{decoder_ukbb_forward.1} parent=1 // pred_check_branch
      %110 = sbr.rel (0) target = $region37
    $region36: #{decoder_ukbb_forward.1} parent=1 // pred_region
      %s112 = ssub.s32 4096, 4096
      %113 = vsyncadd [#allocation8], %s112
      %s114 = sshll.u32 [#allocation9], 4
      %s115 = int_to_ptr.vmem [resolvable:$true] %s114
      %120 = dma.hbm_to_vmem [thread:$0]  %s17, 4096, %s115, [#allocation8], 128, 128, 8
    $region37: #{decoder_ukbb_forward.1} parent=1 // pred_fallthru
      _
    // Predicated region
    $region38: #{decoder_ukbb_forward.1} parent=1 // pred_check
      _
    $region39: #{decoder_ukbb_forward.1} parent=1 // pred_check_branch
      %122 = sbr.rel (0) target = $region41
    $region40: #{decoder_ukbb_forward.1} parent=1 // pred_region
      %s124 = ssub.s32 4096, 4096
      %125 = vsyncadd [#allocation11], %s124
      %s126 = sshll.u32 [#allocation10], 4
      %s127 = int_to_ptr.vmem [resolvable:$true] %s126
      %132 = dma.hbm_to_vmem [thread:$0]  %s19, 4096, %s127, [#allocation11], 256, 256, 16
    $region41: #{decoder_ukbb_forward.1} parent=1 // pred_fallthru
      _
    // Predicated region
    $region42: #{decoder_ukbb_forward.1} parent=1 // pred_check
      _
    $region43: #{decoder_ukbb_forward.1} parent=1 // pred_check_branch
      %134 = sbr.rel (0) target = $region45
    $region44: #{decoder_ukbb_forward.1} parent=1 // pred_region
      _
    $region45: #{decoder_ukbb_forward.1} parent=1 // pred_fallthru
      _
    // Predicated region
    $region46: #{decoder_ukbb_forward.1} parent=1 // pred_check
      _
    $region47: #{decoder_ukbb_forward.1} parent=1 // pred_check_branch
      %136 = sbr.rel (0) target = $region49
    $region48: #{decoder_ukbb_forward.1} parent=1 // pred_region
      _
    $region49: #{decoder_ukbb_forward.1} parent=1 // pred_fallthru
      _
    // Predicated region
    $region50: #{decoder_ukbb_forward.1} parent=1 // pred_check
      _
    $region51: #{decoder_ukbb_forward.1} parent=1 // pred_check_branch
      %138 = sbr.rel (0) target = $region53
    $region52: #{decoder_ukbb_forward.1} parent=1 // pred_region
      %s140 = ssub.s32 12288, 12288
      %141 = vsyncadd [#allocation11], %s140
      %s142 = sshll.u32 [#allocation12], 4
      %s143 = int_to_ptr.vmem [resolvable:$true] %s142
      %148 = dma.hbm_to_vmem [thread:$0]  %s25, 12288, %s143, [#allocation11], 384, 384, 24
    $region53: #{decoder_ukbb_forward.1} parent=1 // pred_fallthru
      _
    // Predicated region
    $region54: #{decoder_ukbb_forward.1} parent=1 // pred_check
      _
    $region55: #{decoder_ukbb_forward.1} parent=1 // pred_check_branch
      %150 = sbr.rel (0) target = $region57
    $region56: #{decoder_ukbb_forward.1} parent=1 // pred_region
      _
    $region57: #{decoder_ukbb_forward.1} parent=1 // pred_fallthru
      _
    // Predicated region
    $region58: #{decoder_ukbb_forward.1} parent=1 // pred_check
      _
    $region59: #{decoder_ukbb_forward.1} parent=1 // pred_check_branch
      %152 = sbr.rel (0) target = $region61
    $region60: #{decoder_ukbb_forward.1} parent=1 // pred_region
      _
    $region61: #{decoder_ukbb_forward.1} parent=1 // pred_fallthru
      _
    // Predicated region
    $region62: #{decoder_ukbb_forward.1} parent=1 // pred_check
      _
    $region63: #{decoder_ukbb_forward.1} parent=1 // pred_check_branch
      %154 = sbr.rel (0) target = $region65
    $region64: #{decoder_ukbb_forward.1} parent=1 // pred_region
      %s156 = ssub.s32 4096, 4096
      %157 = vsyncadd [#allocation14], %s156
      %s158 = sshll.u32 [#allocation13], 4
      %s159 = int_to_ptr.vmem [resolvable:$true] %s158
      %164 = dma.hbm_to_vmem [thread:$0]  %s31, 4096, %s159, [#allocation14], 128, 128, 8
    $region65: #{decoder_ukbb_forward.1} parent=1 // pred_fallthru
      _
    // Predicated region
    $region66: #{decoder_ukbb_forward.1} parent=1 // pred_check
      _
    $region67: #{decoder_ukbb_forward.1} parent=1 // pred_check_branch
      %166 = sbr.rel (0) target = $region69
    $region68: #{decoder_ukbb_forward.1} parent=1 // pred_region
      %s168 = ssub.s32 4096, 4096
      %169 = vsyncadd [#allocation14], %s168
      %s170 = sshll.u32 [#allocation15], 4
      %s171 = int_to_ptr.vmem [resolvable:$true] %s170
      %176 = dma.hbm_to_vmem [thread:$0]  %s33, 4096, %s171, [#allocation14], 256, 256, 16
    $region69: #{decoder_ukbb_forward.1} parent=1 // pred_fallthru
      _
    // Predicated region
    $region70: #{decoder_ukbb_forward.1} parent=1 // pred_check
      _
    $region71: #{decoder_ukbb_forward.1} parent=1 // pred_check_branch
      %178 = sbr.rel (0) target = $region73
    $region72: #{decoder_ukbb_forward.1} parent=1 // pred_region
      %s180 = ssub.s32 16, 16
      %181 = vsyncadd [#allocation17], %s180
      %s183 = sshll.u32 [#allocation16], 4
      %s184 = int_to_ptr.vmem [resolvable:$true] %s183
      %186 = dma.hbm_to_vmem [thread:$0]  %s35, 16, %s184, [#allocation17]
    $region73: #{decoder_ukbb_forward.1} parent=1 // pred_fallthru
      _
    // Predicated region
    $region74: #{decoder_ukbb_forward.1} parent=1 // pred_check
      _
    $region75: #{decoder_ukbb_forward.1} parent=1 // pred_check_branch
      %188 = sbr.rel (0) target = $region77
    $region76: #{decoder_ukbb_forward.1} parent=1 // pred_region
      %s190 = ssub.s32 16, 16
      %191 = vsyncadd [#allocation17], %s190
      %s193 = sshll.u32 [#allocation18], 4
      %s194 = int_to_ptr.vmem [resolvable:$true] %s193
      %196 = dma.hbm_to_vmem [thread:$0]  %s37, 16, %s194, [#allocation17]
    $region77: #{decoder_ukbb_forward.1} parent=1 // pred_fallthru
      _
    // Predicated region
    $region78: #{decoder_ukbb_forward.1} parent=1 // pred_check
      _
    $region79: #{decoder_ukbb_forward.1} parent=1 // pred_check_branch
      %198 = sbr.rel (0) target = $region81
    $region80: #{decoder_ukbb_forward.1} parent=1 // pred_region
      %s200 = ssub.s32 12288, 12288
      %201 = vsyncadd [#allocation20], %s200
      %s202 = sshll.u32 [#allocation19], 4
      %s203 = int_to_ptr.vmem [resolvable:$true] %s202
      %208 = dma.hbm_to_vmem [thread:$0]  %s39, 12288, %s203, [#allocation20], 384, 384, 24
    $region81: #{decoder_ukbb_forward.1} parent=1 // pred_fallthru
      _
    // Predicated region
    $region82: #{decoder_ukbb_forward.1} parent=1 // pred_check
      _
    $region83: #{decoder_ukbb_forward.1} parent=1 // pred_check_branch
      %210 = sbr.rel (0) target = $region85
    $region84: #{decoder_ukbb_forward.1} parent=1 // pred_region
      _
    $region85: #{decoder_ukbb_forward.1} parent=1 // pred_fallthru
      _
    // Predicated region
    $region86: #{decoder_ukbb_forward.1} parent=1 // pred_check
      _
    $region87: #{decoder_ukbb_forward.1} parent=1 // pred_check_branch
      %212 = sbr.rel (0) target = $region89
    $region88: #{decoder_ukbb_forward.1} parent=1 // pred_region
      _
    $region89: #{decoder_ukbb_forward.1} parent=1 // pred_fallthru
      _
    // Predicated region
    $region90: #{decoder_ukbb_forward.1} parent=1 // pred_check
      _
    $region91: #{decoder_ukbb_forward.1} parent=1 // pred_check_branch
      %214 = sbr.rel (0) target = $region93
    $region92: #{decoder_ukbb_forward.1} parent=1 // pred_region
      %s216 = ssub.s32 4096, 4096
      %217 = vsyncadd [#allocation20], %s216
      %s218 = sshll.u32 [#allocation21], 4
      %s219 = int_to_ptr.vmem [resolvable:$true] %s218
      %224 = dma.hbm_to_vmem [thread:$0]  %s45, 4096, %s219, [#allocation20], 128, 128, 8
    $region93: #{decoder_ukbb_forward.1} parent=1 // pred_fallthru
      _
    // Predicated region
    $region94: #{decoder_ukbb_forward.1} parent=1 // pred_check
      _
    $region95: #{decoder_ukbb_forward.1} parent=1 // pred_check_branch
      %226 = sbr.rel (0) target = $region97
    $region96: #{decoder_ukbb_forward.1} parent=1 // pred_region
      %s228 = ssub.s32 4096, 4096
      %229 = vsyncadd [#allocation23], %s228
      %s230 = sshll.u32 [#allocation22], 4
      %s231 = int_to_ptr.vmem [resolvable:$true] %s230
      %236 = dma.hbm_to_vmem [thread:$0]  %s47, 4096, %s231, [#allocation23], 256, 256, 16
    $region97: #{decoder_ukbb_forward.1} parent=1 // pred_fallthru
      _
    // Predicated region
    $region98: #{decoder_ukbb_forward.1} parent=1 // pred_check
      _
    $region99: #{decoder_ukbb_forward.1} parent=1 // pred_check_branch
      %238 = sbr.rel (0) target = $region101
    $region100: #{decoder_ukbb_forward.1} parent=1 // pred_region
      %s240 = ssub.s32 16, 16
      %241 = vsyncadd [#allocation23], %s240
      %s243 = sshll.u32 [#allocation24], 4
      %s244 = int_to_ptr.vmem [resolvable:$true] %s243
      %246 = dma.hbm_to_vmem [thread:$0]  %s49, 16, %s244, [#allocation23]
    $region101: #{decoder_ukbb_forward.1} parent=1 // pred_fallthru
      _
    // Predicated region
    $region102: #{decoder_ukbb_forward.1} parent=1 // pred_check
      _
    $region103: #{decoder_ukbb_forward.1} parent=1 // pred_check_branch
      %248 = sbr.rel (0) target = $region105
    $region104: #{decoder_ukbb_forward.1} parent=1 // pred_region
      %s250 = ssub.s32 16, 16
      %251 = vsyncadd [#allocation26], %s250
      %s253 = sshll.u32 [#allocation25], 4
      %s254 = int_to_ptr.vmem [resolvable:$true] %s253
      %256 = dma.hbm_to_vmem [thread:$0]  %s51, 16, %s254, [#allocation26]
    $region105: #{decoder_ukbb_forward.1} parent=1 // pred_fallthru
      _
    // Predicated region
    $region106: #{decoder_ukbb_forward.1} parent=1 // pred_check
      _
    $region107: #{decoder_ukbb_forward.1} parent=1 // pred_check_branch
      %258 = sbr.rel (0) target = $region109
    $region108: #{decoder_ukbb_forward.1} parent=1 // pred_region
      _
    $region109: #{decoder_ukbb_forward.1} parent=1 // pred_fallthru
      _
    // Predicated region
    $region110: #{decoder_ukbb_forward.1} parent=1 // pred_check
      _
    $region111: #{decoder_ukbb_forward.1} parent=1 // pred_check_branch
      %260 = sbr.rel (0) target = $region113
    $region112: #{decoder_ukbb_forward.1} parent=1 // pred_region
      _
    $region113: #{decoder_ukbb_forward.1} parent=1 // pred_fallthru
      _
    // Predicated region
    $region114: #{decoder_ukbb_forward.1} parent=1 // pred_check
      _
    $region115: #{decoder_ukbb_forward.1} parent=1 // pred_check_branch
      %262 = sbr.rel (0) target = $region117
    $region116: #{decoder_ukbb_forward.1} parent=1 // pred_region
      _
    $region117: #{decoder_ukbb_forward.1} parent=1 // pred_fallthru
      _
    // Predicated region
    $region118: #{decoder_ukbb_forward.1} parent=1 // pred_check
      _
    $region119: #{decoder_ukbb_forward.1} parent=1 // pred_check_branch
      %264 = sbr.rel (0) target = $region121
    $region120: #{decoder_ukbb_forward.1} parent=1 // pred_region
      %265 = dma.done [#allocation5], 12288
    $region121: #{decoder_ukbb_forward.1} parent=1 // pred_fallthru
      _
    // Predicated region
    $region122: #{decoder_ukbb_forward.1} parent=1 // pred_check
      _
    $region123: #{decoder_ukbb_forward.1} parent=1 // pred_check_branch
      %267 = sbr.rel (0) target = $region125
    $region124: #{decoder_ukbb_forward.1} parent=1 // pred_region
      %268 = dma.done [#allocation8], 12288
    $region125: #{decoder_ukbb_forward.1} parent=1 // pred_fallthru
      _
    // Predicated region
    $region126: #{decoder_ukbb_forward.1} parent=1 // pred_check
      _
    $region127: #{decoder_ukbb_forward.1} parent=1 // pred_check_branch
      %270 = sbr.rel (0) target = $region129
    $region128: #{decoder_ukbb_forward.1} parent=1 // pred_region
      %271 = dma.done [#allocation8], 4096
    $region129: #{decoder_ukbb_forward.1} parent=1 // pred_fallthru
      _
    // Predicated region
    $region130: #{decoder_ukbb_forward.1} parent=1 // pred_check
      _
    $region131: #{decoder_ukbb_forward.1} parent=1 // pred_check_branch
      %273 = sbr.rel (0) target = $region133
    $region132: #{decoder_ukbb_forward.1} parent=1 // pred_region
      %274 = dma.done [#allocation11], 4096
    $region133: #{decoder_ukbb_forward.1} parent=1 // pred_fallthru
      _
    // Predicated region
    $region134: #{decoder_ukbb_forward.1} parent=1 // pred_check
      _
    $region135: #{decoder_ukbb_forward.1} parent=1 // pred_check_branch
      %276 = sbr.rel (0) target = $region137
    $region136: #{decoder_ukbb_forward.1} parent=1 // pred_region
      %277 = dma.done [#allocation11], 12288
    $region137: #{decoder_ukbb_forward.1} parent=1 // pred_fallthru
      _
    // Predicated region
    $region138: #{decoder_ukbb_forward.1} parent=1 // pred_check
      _
    $region139: #{decoder_ukbb_forward.1} parent=1 // pred_check_branch
      %279 = sbr.rel (0) target = $region141
    $region140: #{decoder_ukbb_forward.1} parent=1 // pred_region
      %280 = dma.done [#allocation14], 4096
    $region141: #{decoder_ukbb_forward.1} parent=1 // pred_fallthru
      _
    // Predicated region
    $region142: #{decoder_ukbb_forward.1} parent=1 // pred_check
      _
    $region143: #{decoder_ukbb_forward.1} parent=1 // pred_check_branch
      %282 = sbr.rel (0) target = $region145
    $region144: #{decoder_ukbb_forward.1} parent=1 // pred_region
      %283 = dma.done [#allocation14], 4096
    $region145: #{decoder_ukbb_forward.1} parent=1 // pred_fallthru
      _
    // Predicated region
    $region146: #{decoder_ukbb_forward.1} parent=1 // pred_check
      _
    $region147: #{decoder_ukbb_forward.1} parent=1 // pred_check_branch
      %285 = sbr.rel (0) target = $region149
    $region148: #{decoder_ukbb_forward.1} parent=1 // pred_region
      %286 = dma.done [#allocation17], 16
    $region149: #{decoder_ukbb_forward.1} parent=1 // pred_fallthru
      _
    // Predicated region
    $region150: #{decoder_ukbb_forward.1} parent=1 // pred_check
      _
    $region151: #{decoder_ukbb_forward.1} parent=1 // pred_check_branch
      %288 = sbr.rel (0) target = $region153
    $region152: #{decoder_ukbb_forward.1} parent=1 // pred_region
      %289 = dma.done [#allocation17], 16
    $region153: #{decoder_ukbb_forward.1} parent=1 // pred_fallthru
      _
    // Predicated region
    $region154: #{decoder_ukbb_forward.1} parent=1 // pred_check
      _
    $region155: #{decoder_ukbb_forward.1} parent=1 // pred_check_branch
      %291 = sbr.rel (0) target = $region157
    $region156: #{decoder_ukbb_forward.1} parent=1 // pred_region
      %292 = dma.done [#allocation20], 12288
    $region157: #{decoder_ukbb_forward.1} parent=1 // pred_fallthru
      _
    // Predicated region
    $region158: #{decoder_ukbb_forward.1} parent=1 // pred_check
      _
    $region159: #{decoder_ukbb_forward.1} parent=1 // pred_check_branch
      %294 = sbr.rel (0) target = $region161
    $region160: #{decoder_ukbb_forward.1} parent=1 // pred_region
      %295 = dma.done [#allocation20], 4096
    $region161: #{decoder_ukbb_forward.1} parent=1 // pred_fallthru
      _
    // Predicated region
    $region162: #{decoder_ukbb_forward.1} parent=1 // pred_check
      _
    $region163: #{decoder_ukbb_forward.1} parent=1 // pred_check_branch
      %297 = sbr.rel (0) target = $region165
    $region164: #{decoder_ukbb_forward.1} parent=1 // pred_region
      %298 = dma.done [#allocation23], 4096
    $region165: #{decoder_ukbb_forward.1} parent=1 // pred_fallthru
      _
    // Predicated region
    $region166: #{decoder_ukbb_forward.1} parent=1 // pred_check
      _
    $region167: #{decoder_ukbb_forward.1} parent=1 // pred_check_branch
      %300 = sbr.rel (0) target = $region169
    $region168: #{decoder_ukbb_forward.1} parent=1 // pred_region
      %301 = dma.done [#allocation23], 16
    $region169: #{decoder_ukbb_forward.1} parent=1 // pred_fallthru
      _
    // Predicated region
    $region170: #{decoder_ukbb_forward.1} parent=1 // pred_check
      _
    $region171: #{decoder_ukbb_forward.1} parent=1 // pred_check_branch
      %303 = sbr.rel (0) target = $region173
    $region172: #{decoder_ukbb_forward.1} parent=1 // pred_region
      %304 = dma.done [#allocation26], 16
    $region173: #{decoder_ukbb_forward.1} parent=1 // pred_fallthru
      _
    %v306 = vld [vmem:[%s1] sm:$0x3]
    %v307 = vpack.c.bf16 %v306, %v306
    %v308 = vld [vmem:[%s3] sm:$0xff]
    %v309 = vld [vmem:[%s3 + $0x8] sm:$0xff]
    %v310 = vld [vmem:[%s3 + $0x10] sm:$0xff]
    %v311 = vld [vmem:[%s3 + $0x18] sm:$0xff]
    %v312 = vld [vmem:[%s5] sm:$0x3]
    %v314 = vlaneseq
    %v315 = vshrl.u32 %v314, 7
    %v316 = vsub.s32 0, %v315
    %v317 = vrot.slane %v312, %v316
    %v318 = vlaneseq
    %v319 = vshrl.u32 %v318, 7
    %v320 = vsub.s32 1, %v319
    %v321 = vrot.slane %v312, %v320
    %v328 = vunpack.c.l.b16 %v308
    %v329 = vunpack.c.h.b16 %v308
    %v330 = vunpack.c.l.b16 %v309
    %v331 = vunpack.c.h.b16 %v309
    %v332 = vunpack.c.l.b16 %v310
    %v333 = vunpack.c.h.b16 %v310
    %v334 = vunpack.c.l.b16 %v311
    %v335 = vunpack.c.h.b16 %v311
    %v336 = vpack.c.b16 %v330, %v328
    %v337 = vpack.c.b16 %v331, %v329
    %v338 = vpack.c.b16 %v334, %v332
    %v339 = vpack.c.b16 %v335, %v333
    %vm344 = vcmask 261120
    %v346 = vsel %vm344, %v307, 0
    %348 = vmatprep.subr.bf16.mxu0 %v337
    %349 = vmatpush1.bf16.msra.mxu0 %v336
    %350 = vmatprep.subr.bf16.mxu0 %v339
    %351 = vmatpush1.bf16.msra.mxu0 %v338
    %352 = vmatprep.subr.bf16.mxu0 0
    %353 = vmatpush1.bf16.msra.mxu0 0
    %354 = vmatprep.subr.bf16.mxu0 0
    %355 = vmatpush1.bf16.msra.mxu0 0
    %356 = vmatprep.subr.bf16.mxu0 0
    %357 = vmatpush1.bf16.msra.mxu0 0
    %358 = vmatprep.subr.bf16.mxu0 0
    %359 = vmatpush1.bf16.msra.mxu0 0
    %360 = vmatprep.subr.bf16.mxu0 0
    %361 = vmatpush1.bf16.msra.mxu0 0
    %362 = vmatprep.subr.bf16.mxu0 0
    %363 = vmatpush1.bf16.msra.mxu0 0
    %364 = vmatprep.subr.bf16.mxu0 0
    %365 = vmatpush1.bf16.msra.mxu0 0
    %366 = vmatprep.subr.bf16.mxu0 0
    %367 = vmatpush1.bf16.msra.mxu0 0
    %368 = vmatprep.subr.bf16.mxu0 0
    %369 = vmatpush1.bf16.msra.mxu0 0
    %370 = vmatprep.subr.bf16.mxu0 0
    %371 = vmatpush1.bf16.msra.mxu0 0
    %372 = vmatprep.subr.bf16.mxu0 0
    %373 = vmatpush1.bf16.msra.mxu0 0
    %374 = vmatprep.subr.bf16.mxu0 0
    %375 = vmatpush1.bf16.msra.mxu0 0
    %376 = vmatprep.subr.bf16.mxu0 0
    %377 = vmatpush1.bf16.msra.mxu0 0
    %378 = vmatprep.subr.bf16.mxu0 0
    %379 = vmatpush1.bf16.msra.mxu0 0
    %380 = vmatprep.mubr.bf16.mxu0 0
    %381 = vmatmul.mubr.bf16.gmra.mrb[0].mxu0 %v346
    %v382 = vpop.f32.mrb[0].mxu0
    %v383 = vadd.f32 %v317, %v382
    %v384 = vpop.f32.mrb[0].mxu0
    %v385 = vadd.f32 %v321, %v384
    %v386 = vpop.f32.mrb[0].mxu0
    %v387 = vpop.f32.mrb[0].mxu0
    %388 = vdwg.mxu0
    %v389 = vmax.f32 %v383, 0.0
    %v390 = vmax.f32 %v385, 0.0
    %v391 = vpack.c.bf16 %v389, %v389
    %v392 = vpack.c.bf16 %v390, %v390
    %v393 = vld [vmem:[#allocation4] sm:$0xff]
    %v394 = vld [vmem:[#allocation4 + $0x8] sm:$0xff]
    %v395 = vld [vmem:[#allocation4 + $0x10] sm:$0xff]
    %v396 = vld [vmem:[#allocation4 + $0x18] sm:$0xff]
    %v397 = vld [vmem:[#allocation4 + $0x20] sm:$0xff]
    %v398 = vld [vmem:[#allocation4 + $0x28] sm:$0xff]
    %v399 = vld [vmem:[#allocation4 + $0x30] sm:$0xff]
    %v400 = vld [vmem:[#allocation4 + $0x38] sm:$0xff]
    %v401 = vld [vmem:[#allocation4 + $0x40] sm:$0xff]
    %v402 = vld [vmem:[#allocation4 + $0x48] sm:$0xff]
    %v403 = vld [vmem:[#allocation4 + $0x50] sm:$0xff]
    %v404 = vld [vmem:[#allocation4 + $0x58] sm:$0xff]
    %v405 = vld [vmem:[#allocation4 + $0x60] sm:$0xff]
    %v406 = vld [vmem:[#allocation4 + $0x68] sm:$0xff]
    %v407 = vld [vmem:[#allocation4 + $0x70] sm:$0xff]
    %v408 = vld [vmem:[#allocation4 + $0x78] sm:$0xff]
    %v409 = vld [vmem:[#allocation4 + $0x80] sm:$0xff]
    %v410 = vld [vmem:[#allocation4 + $0x88] sm:$0xff]
    %v411 = vld [vmem:[#allocation4 + $0x90] sm:$0xff]
    %v412 = vld [vmem:[#allocation4 + $0x98] sm:$0xff]
    %v413 = vld [vmem:[#allocation4 + $0xa0] sm:$0xff]
    %v414 = vld [vmem:[#allocation4 + $0xa8] sm:$0xff]
    %v415 = vld [vmem:[#allocation4 + $0xb0] sm:$0xff]
    %v416 = vld [vmem:[#allocation4 + $0xb8] sm:$0xff]
    %v417 = vld [vmem:[#allocation4 + $0xc0] sm:$0xff]
    %v418 = vld [vmem:[#allocation4 + $0xc8] sm:$0xff]
    %v419 = vld [vmem:[#allocation4 + $0xd0] sm:$0xff]
    %v420 = vld [vmem:[#allocation4 + $0xd8] sm:$0xff]
    %v421 = vld [vmem:[#allocation4 + $0xe0] sm:$0xff]
    %v422 = vld [vmem:[#allocation4 + $0xe8] sm:$0xff]
    %v423 = vld [vmem:[#allocation4 + $0xf0] sm:$0xff]
    %v424 = vld [vmem:[#allocation4 + $0xf8] sm:$0xff]
    %v425 = vld [vmem:[#allocation4 + $0x100] sm:$0xff]
    %v426 = vld [vmem:[#allocation4 + $0x108] sm:$0xff]
    %v427 = vld [vmem:[#allocation4 + $0x110] sm:$0xff]
    %v428 = vld [vmem:[#allocation4 + $0x118] sm:$0xff]
    %v429 = vld [vmem:[#allocation4 + $0x120] sm:$0xff]
    %v430 = vld [vmem:[#allocation4 + $0x128] sm:$0xff]
    %v431 = vld [vmem:[#allocation4 + $0x130] sm:$0xff]
    %v432 = vld [vmem:[#allocation4 + $0x138] sm:$0xff]
    %v433 = vld [vmem:[#allocation4 + $0x140] sm:$0xff]
    %v434 = vld [vmem:[#allocation4 + $0x148] sm:$0xff]
    %v435 = vld [vmem:[#allocation4 + $0x150] sm:$0xff]
    %v436 = vld [vmem:[#allocation4 + $0x158] sm:$0xff]
    %v437 = vld [vmem:[#allocation4 + $0x160] sm:$0xff]
    %v438 = vld [vmem:[#allocation4 + $0x168] sm:$0xff]
    %v439 = vld [vmem:[#allocation4 + $0x170] sm:$0xff]
    %v440 = vld [vmem:[#allocation4 + $0x178] sm:$0xff]
    %v441 = vld [vmem:[#allocation4 + $0x180] sm:$0xff]
    %v442 = vld [vmem:[#allocation4 + $0x188] sm:$0xff]
    %v443 = vld [vmem:[#allocation4 + $0x190] sm:$0xff]
    %v444 = vld [vmem:[#allocation4 + $0x198] sm:$0xff]
    %v445 = vld [vmem:[#allocation4 + $0x1a0] sm:$0xff]
    %v446 = vld [vmem:[#allocation4 + $0x1a8] sm:$0xff]
    %v447 = vld [vmem:[#allocation4 + $0x1b0] sm:$0xff]
    %v448 = vld [vmem:[#allocation4 + $0x1b8] sm:$0xff]
    %v449 = vld [vmem:[#allocation4 + $0x1c0] sm:$0xff]
    %v450 = vld [vmem:[#allocation4 + $0x1c8] sm:$0xff]
    %v451 = vld [vmem:[#allocation4 + $0x1d0] sm:$0xff]
    %v452 = vld [vmem:[#allocation4 + $0x1d8] sm:$0xff]
    %v453 = vld [vmem:[#allocation4 + $0x1e0] sm:$0xff]
    %v454 = vld [vmem:[#allocation4 + $0x1e8] sm:$0xff]
    %v455 = vld [vmem:[#allocation4 + $0x1f0] sm:$0xff]
    %v456 = vld [vmem:[#allocation4 + $0x1f8] sm:$0xff]
    %v457 = vld [vmem:[#allocation4 + $0x200] sm:$0xff]
    %v458 = vld [vmem:[#allocation4 + $0x208] sm:$0xff]
    %v459 = vld [vmem:[#allocation4 + $0x210] sm:$0xff]
    %v460 = vld [vmem:[#allocation4 + $0x218] sm:$0xff]
    %v461 = vld [vmem:[#allocation4 + $0x220] sm:$0xff]
    %v462 = vld [vmem:[#allocation4 + $0x228] sm:$0xff]
    %v463 = vld [vmem:[#allocation4 + $0x230] sm:$0xff]
    %v464 = vld [vmem:[#allocation4 + $0x238] sm:$0xff]
    %v465 = vld [vmem:[#allocation4 + $0x240] sm:$0xff]
    %v466 = vld [vmem:[#allocation4 + $0x248] sm:$0xff]
    %v467 = vld [vmem:[#allocation4 + $0x250] sm:$0xff]
    %v468 = vld [vmem:[#allocation4 + $0x258] sm:$0xff]
    %v469 = vld [vmem:[#allocation4 + $0x260] sm:$0xff]
    %v470 = vld [vmem:[#allocation4 + $0x268] sm:$0xff]
    %v471 = vld [vmem:[#allocation4 + $0x270] sm:$0xff]
    %v472 = vld [vmem:[#allocation4 + $0x278] sm:$0xff]
    %v473 = vld [vmem:[#allocation4 + $0x280] sm:$0xff]
    %v474 = vld [vmem:[#allocation4 + $0x288] sm:$0xff]
    %v475 = vld [vmem:[#allocation4 + $0x290] sm:$0xff]
    %v476 = vld [vmem:[#allocation4 + $0x298] sm:$0xff]
    %v477 = vld [vmem:[#allocation4 + $0x2a0] sm:$0xff]
    %v478 = vld [vmem:[#allocation4 + $0x2a8] sm:$0xff]
    %v479 = vld [vmem:[#allocation4 + $0x2b0] sm:$0xff]
    %v480 = vld [vmem:[#allocation4 + $0x2b8] sm:$0xff]
    %v481 = vld [vmem:[#allocation4 + $0x2c0] sm:$0xff]
    %v482 = vld [vmem:[#allocation4 + $0x2c8] sm:$0xff]
    %v483 = vld [vmem:[#allocation4 + $0x2d0] sm:$0xff]
    %v484 = vld [vmem:[#allocation4 + $0x2d8] sm:$0xff]
    %v485 = vld [vmem:[#allocation4 + $0x2e0] sm:$0xff]
    %v486 = vld [vmem:[#allocation4 + $0x2e8] sm:$0xff]
    %v487 = vld [vmem:[#allocation4 + $0x2f0] sm:$0xff]
    %v488 = vld [vmem:[#allocation4 + $0x2f8] sm:$0xff]
    %v489 = vld [vmem:[%s9] sm:$0x3f]
    %v491 = vlaneseq
    %v492 = vshrl.u32 %v491, 7
    %v493 = vsub.s32 0, %v492
    %v494 = vrot.slane %v489, %v493
    %v495 = vlaneseq
    %v496 = vshrl.u32 %v495, 7
    %v497 = vsub.s32 1, %v496
    %v498 = vrot.slane %v489, %v497
    %v499 = vlaneseq
    %v500 = vshrl.u32 %v499, 7
    %v501 = vsub.s32 2, %v500
    %v502 = vrot.slane %v489, %v501
    %v503 = vlaneseq
    %v504 = vshrl.u32 %v503, 7
    %v505 = vsub.s32 3, %v504
    %v506 = vrot.slane %v489, %v505
    %v507 = vlaneseq
    %v508 = vshrl.u32 %v507, 7
    %v509 = vsub.s32 4, %v508
    %v510 = vrot.slane %v489, %v509
    %v511 = vlaneseq
    %v512 = vshrl.u32 %v511, 7
    %v513 = vsub.s32 5, %v512
    %v514 = vrot.slane %v489, %v513
    %v617 = vunpack.c.l.b16 %v393
    %v618 = vunpack.c.h.b16 %v393
    %v619 = vunpack.c.l.b16 %v394
    %v620 = vunpack.c.h.b16 %v394
    %v621 = vunpack.c.l.b16 %v395
    %v622 = vunpack.c.h.b16 %v395
    %v623 = vunpack.c.l.b16 %v396
    %v624 = vunpack.c.h.b16 %v396
    %v625 = vunpack.c.l.b16 %v397
    %v626 = vunpack.c.h.b16 %v397
    %v627 = vunpack.c.l.b16 %v398
    %v628 = vunpack.c.h.b16 %v398
    %v629 = vunpack.c.l.b16 %v399
    %v630 = vunpack.c.h.b16 %v399
    %v631 = vunpack.c.l.b16 %v400
    %v632 = vunpack.c.h.b16 %v400
    %v633 = vunpack.c.l.b16 %v401
    %v634 = vunpack.c.h.b16 %v401
    %v635 = vunpack.c.l.b16 %v402
    %v636 = vunpack.c.h.b16 %v402
    %v637 = vunpack.c.l.b16 %v403
    %v638 = vunpack.c.h.b16 %v403
    %v639 = vunpack.c.l.b16 %v404
    %v640 = vunpack.c.h.b16 %v404
    %v641 = vunpack.c.l.b16 %v405
    %v642 = vunpack.c.h.b16 %v405
    %v643 = vunpack.c.l.b16 %v406
    %v644 = vunpack.c.h.b16 %v406
    %v645 = vunpack.c.l.b16 %v407
    %v646 = vunpack.c.h.b16 %v407
    %v647 = vunpack.c.l.b16 %v408
    %v648 = vunpack.c.h.b16 %v408
    %v649 = vunpack.c.l.b16 %v409
    %v650 = vunpack.c.h.b16 %v409
    %v651 = vunpack.c.l.b16 %v410
    %v652 = vunpack.c.h.b16 %v410
    %v653 = vunpack.c.l.b16 %v411
    %v654 = vunpack.c.h.b16 %v411
    %v655 = vunpack.c.l.b16 %v412
    %v656 = vunpack.c.h.b16 %v412
    %v657 = vunpack.c.l.b16 %v413
    %v658 = vunpack.c.h.b16 %v413
    %v659 = vunpack.c.l.b16 %v414
    %v660 = vunpack.c.h.b16 %v414
    %v661 = vunpack.c.l.b16 %v415
    %v662 = vunpack.c.h.b16 %v415
    %v663 = vunpack.c.l.b16 %v416
    %v664 = vunpack.c.h.b16 %v416
    %v665 = vunpack.c.l.b16 %v417
    %v666 = vunpack.c.h.b16 %v417
    %v667 = vunpack.c.l.b16 %v418
    %v668 = vunpack.c.h.b16 %v418
    %v669 = vunpack.c.l.b16 %v419
    %v670 = vunpack.c.h.b16 %v419
    %v671 = vunpack.c.l.b16 %v420
    %v672 = vunpack.c.h.b16 %v420
    %v673 = vunpack.c.l.b16 %v421
    %v674 = vunpack.c.h.b16 %v421
    %v675 = vunpack.c.l.b16 %v422
    %v676 = vunpack.c.h.b16 %v422
    %v677 = vunpack.c.l.b16 %v423
    %v678 = vunpack.c.h.b16 %v423
    %v679 = vunpack.c.l.b16 %v424
    %v680 = vunpack.c.h.b16 %v424
    %v681 = vunpack.c.l.b16 %v425
    %v682 = vunpack.c.h.b16 %v425
    %v683 = vunpack.c.l.b16 %v426
    %v684 = vunpack.c.h.b16 %v426
    %v685 = vunpack.c.l.b16 %v427
    %v686 = vunpack.c.h.b16 %v427
    %v687 = vunpack.c.l.b16 %v428
    %v688 = vunpack.c.h.b16 %v428
    %v689 = vunpack.c.l.b16 %v429
    %v690 = vunpack.c.h.b16 %v429
    %v691 = vunpack.c.l.b16 %v430
    %v692 = vunpack.c.h.b16 %v430
    %v693 = vunpack.c.l.b16 %v431
    %v694 = vunpack.c.h.b16 %v431
    %v695 = vunpack.c.l.b16 %v432
    %v696 = vunpack.c.h.b16 %v432
    %v697 = vunpack.c.l.b16 %v433
    %v698 = vunpack.c.h.b16 %v433
    %v699 = vunpack.c.l.b16 %v434
    %v700 = vunpack.c.h.b16 %v434
    %v701 = vunpack.c.l.b16 %v435
    %v702 = vunpack.c.h.b16 %v435
    %v703 = vunpack.c.l.b16 %v436
    %v704 = vunpack.c.h.b16 %v436
    %v705 = vunpack.c.l.b16 %v437
    %v706 = vunpack.c.h.b16 %v437
    %v707 = vunpack.c.l.b16 %v438
    %v708 = vunpack.c.h.b16 %v438
    %v709 = vunpack.c.l.b16 %v439
    %v710 = vunpack.c.h.b16 %v439
    %v711 = vunpack.c.l.b16 %v440
    %v712 = vunpack.c.h.b16 %v440
    %v713 = vunpack.c.l.b16 %v441
    %v714 = vunpack.c.h.b16 %v441
    %v715 = vunpack.c.l.b16 %v442
    %v716 = vunpack.c.h.b16 %v442
    %v717 = vunpack.c.l.b16 %v443
    %v718 = vunpack.c.h.b16 %v443
    %v719 = vunpack.c.l.b16 %v444
    %v720 = vunpack.c.h.b16 %v444
    %v721 = vunpack.c.l.b16 %v445
    %v722 = vunpack.c.h.b16 %v445
    %v723 = vunpack.c.l.b16 %v446
    %v724 = vunpack.c.h.b16 %v446
    %v725 = vunpack.c.l.b16 %v447
    %v726 = vunpack.c.h.b16 %v447
    %v727 = vunpack.c.l.b16 %v448
    %v728 = vunpack.c.h.b16 %v448
    %v729 = vunpack.c.l.b16 %v449
    %v730 = vunpack.c.h.b16 %v449
    %v731 = vunpack.c.l.b16 %v450
    %v732 = vunpack.c.h.b16 %v450
    %v733 = vunpack.c.l.b16 %v451
    %v734 = vunpack.c.h.b16 %v451
    %v735 = vunpack.c.l.b16 %v452
    %v736 = vunpack.c.h.b16 %v452
    %v737 = vunpack.c.l.b16 %v453
    %v738 = vunpack.c.h.b16 %v453
    %v739 = vunpack.c.l.b16 %v454
    %v740 = vunpack.c.h.b16 %v454
    %v741 = vunpack.c.l.b16 %v455
    %v742 = vunpack.c.h.b16 %v455
    %v743 = vunpack.c.l.b16 %v456
    %v744 = vunpack.c.h.b16 %v456
    %v745 = vunpack.c.l.b16 %v457
    %v746 = vunpack.c.h.b16 %v457
    %v747 = vunpack.c.l.b16 %v458
    %v748 = vunpack.c.h.b16 %v458
    %v749 = vunpack.c.l.b16 %v459
    %v750 = vunpack.c.h.b16 %v459
    %v751 = vunpack.c.l.b16 %v460
    %v752 = vunpack.c.h.b16 %v460
    %v753 = vunpack.c.l.b16 %v461
    %v754 = vunpack.c.h.b16 %v461
    %v755 = vunpack.c.l.b16 %v462
    %v756 = vunpack.c.h.b16 %v462
    %v757 = vunpack.c.l.b16 %v463
    %v758 = vunpack.c.h.b16 %v463
    %v759 = vunpack.c.l.b16 %v464
    %v760 = vunpack.c.h.b16 %v464
    %v761 = vunpack.c.l.b16 %v465
    %v762 = vunpack.c.h.b16 %v465
    %v763 = vunpack.c.l.b16 %v466
    %v764 = vunpack.c.h.b16 %v466
    %v765 = vunpack.c.l.b16 %v467
    %v766 = vunpack.c.h.b16 %v467
    %v767 = vunpack.c.l.b16 %v468
    %v768 = vunpack.c.h.b16 %v468
    %v769 = vunpack.c.l.b16 %v469
    %v770 = vunpack.c.h.b16 %v469
    %v771 = vunpack.c.l.b16 %v470
    %v772 = vunpack.c.h.b16 %v470
    %v773 = vunpack.c.l.b16 %v471
    %v774 = vunpack.c.h.b16 %v471
    %v775 = vunpack.c.l.b16 %v472
    %v776 = vunpack.c.h.b16 %v472
    %v777 = vunpack.c.l.b16 %v473
    %v778 = vunpack.c.h.b16 %v473
    %v779 = vunpack.c.l.b16 %v474
    %v780 = vunpack.c.h.b16 %v474
    %v781 = vunpack.c.l.b16 %v475
    %v782 = vunpack.c.h.b16 %v475
    %v783 = vunpack.c.l.b16 %v476
    %v784 = vunpack.c.h.b16 %v476
    %v785 = vunpack.c.l.b16 %v477
    %v786 = vunpack.c.h.b16 %v477
    %v787 = vunpack.c.l.b16 %v478
    %v788 = vunpack.c.h.b16 %v478
    %v789 = vunpack.c.l.b16 %v479
    %v790 = vunpack.c.h.b16 %v479
    %v791 = vunpack.c.l.b16 %v480
    %v792 = vunpack.c.h.b16 %v480
    %v793 = vunpack.c.l.b16 %v481
    %v794 = vunpack.c.h.b16 %v481
    %v795 = vunpack.c.l.b16 %v482
    %v796 = vunpack.c.h.b16 %v482
    %v797 = vunpack.c.l.b16 %v483
    %v798 = vunpack.c.h.b16 %v483
    %v799 = vunpack.c.l.b16 %v484
    %v800 = vunpack.c.h.b16 %v484
    %v801 = vunpack.c.l.b16 %v485
    %v802 = vunpack.c.h.b16 %v485
    %v803 = vunpack.c.l.b16 %v486
    %v804 = vunpack.c.h.b16 %v486
    %v805 = vunpack.c.l.b16 %v487
    %v806 = vunpack.c.h.b16 %v487
    %v807 = vunpack.c.l.b16 %v488
    %v808 = vunpack.c.h.b16 %v488
    %v809 = vpack.c.b16 %v623, %v617
    %v810 = vpack.c.b16 %v624, %v618
    %v811 = vpack.c.b16 %v625, %v619
    %v812 = vpack.c.b16 %v626, %v620
    %v813 = vpack.c.b16 %v627, %v621
    %v814 = vpack.c.b16 %v628, %v622
    %v815 = vpack.c.b16 %v635, %v629
    %v816 = vpack.c.b16 %v636, %v630
    %v817 = vpack.c.b16 %v637, %v631
    %v818 = vpack.c.b16 %v638, %v632
    %v819 = vpack.c.b16 %v639, %v633
    %v820 = vpack.c.b16 %v640, %v634
    %v821 = vpack.c.b16 %v647, %v641
    %v822 = vpack.c.b16 %v648, %v642
    %v823 = vpack.c.b16 %v649, %v643
    %v824 = vpack.c.b16 %v650, %v644
    %v825 = vpack.c.b16 %v651, %v645
    %v826 = vpack.c.b16 %v652, %v646
    %v827 = vpack.c.b16 %v659, %v653
    %v828 = vpack.c.b16 %v660, %v654
    %v829 = vpack.c.b16 %v661, %v655
    %v830 = vpack.c.b16 %v662, %v656
    %v831 = vpack.c.b16 %v663, %v657
    %v832 = vpack.c.b16 %v664, %v658
    %v833 = vpack.c.b16 %v671, %v665
    %v834 = vpack.c.b16 %v672, %v666
    %v835 = vpack.c.b16 %v673, %v667
    %v836 = vpack.c.b16 %v674, %v668
    %v837 = vpack.c.b16 %v675, %v669
    %v838 = vpack.c.b16 %v676, %v670
    %v839 = vpack.c.b16 %v683, %v677
    %v840 = vpack.c.b16 %v684, %v678
    %v841 = vpack.c.b16 %v685, %v679
    %v842 = vpack.c.b16 %v686, %v680
    %v843 = vpack.c.b16 %v687, %v681
    %v844 = vpack.c.b16 %v688, %v682
    %v845 = vpack.c.b16 %v695, %v689
    %v846 = vpack.c.b16 %v696, %v690
    %v847 = vpack.c.b16 %v697, %v691
    %v848 = vpack.c.b16 %v698, %v692
    %v849 = vpack.c.b16 %v699, %v693
    %v850 = vpack.c.b16 %v700, %v694
    %v851 = vpack.c.b16 %v707, %v701
    %v852 = vpack.c.b16 %v708, %v702
    %v853 = vpack.c.b16 %v709, %v703
    %v854 = vpack.c.b16 %v710, %v704
    %v855 = vpack.c.b16 %v711, %v705
    %v856 = vpack.c.b16 %v712, %v706
    %v857 = vpack.c.b16 %v719, %v713
    %v858 = vpack.c.b16 %v720, %v714
    %v859 = vpack.c.b16 %v721, %v715
    %v860 = vpack.c.b16 %v722, %v716
    %v861 = vpack.c.b16 %v723, %v717
    %v862 = vpack.c.b16 %v724, %v718
    %v863 = vpack.c.b16 %v731, %v725
    %v864 = vpack.c.b16 %v732, %v726
    %v865 = vpack.c.b16 %v733, %v727
    %v866 = vpack.c.b16 %v734, %v728
    %v867 = vpack.c.b16 %v735, %v729
    %v868 = vpack.c.b16 %v736, %v730
    %v869 = vpack.c.b16 %v743, %v737
    %v870 = vpack.c.b16 %v744, %v738
    %v871 = vpack.c.b16 %v745, %v739
    %v872 = vpack.c.b16 %v746, %v740
    %v873 = vpack.c.b16 %v747, %v741
    %v874 = vpack.c.b16 %v748, %v742
    %v875 = vpack.c.b16 %v755, %v749
    %v876 = vpack.c.b16 %v756, %v750
    %v877 = vpack.c.b16 %v757, %v751
    %v878 = vpack.c.b16 %v758, %v752
    %v879 = vpack.c.b16 %v759, %v753
    %v880 = vpack.c.b16 %v760, %v754
    %v881 = vpack.c.b16 %v767, %v761
    %v882 = vpack.c.b16 %v768, %v762
    %v883 = vpack.c.b16 %v769, %v763
    %v884 = vpack.c.b16 %v770, %v764
    %v885 = vpack.c.b16 %v771, %v765
    %v886 = vpack.c.b16 %v772, %v766
    %v887 = vpack.c.b16 %v779, %v773
    %v888 = vpack.c.b16 %v780, %v774
    %v889 = vpack.c.b16 %v781, %v775
    %v890 = vpack.c.b16 %v782, %v776
    %v891 = vpack.c.b16 %v783, %v777
    %v892 = vpack.c.b16 %v784, %v778
    %v893 = vpack.c.b16 %v791, %v785
    %v894 = vpack.c.b16 %v792, %v786
    %v895 = vpack.c.b16 %v793, %v787
    %v896 = vpack.c.b16 %v794, %v788
    %v897 = vpack.c.b16 %v795, %v789
    %v898 = vpack.c.b16 %v796, %v790
    %v899 = vpack.c.b16 %v803, %v797
    %v900 = vpack.c.b16 %v804, %v798
    %v901 = vpack.c.b16 %v805, %v799
    %v902 = vpack.c.b16 %v806, %v800
    %v903 = vpack.c.b16 %v807, %v801
    %v904 = vpack.c.b16 %v808, %v802
    %1001 = vmatprep.subr.bf16.mxu0 %v810
    %1002 = vmatpush1.bf16.msra.mxu0 %v809
    %1003 = vmatprep.subr.bf16.mxu0 %v816
    %1004 = vmatpush1.bf16.msra.mxu0 %v815
    %1005 = vmatprep.subr.bf16.mxu0 %v822
    %1006 = vmatpush1.bf16.msra.mxu0 %v821
    %1007 = vmatprep.subr.bf16.mxu0 %v828
    %1008 = vmatpush1.bf16.msra.mxu0 %v827
    %1009 = vmatprep.subr.bf16.mxu0 %v834
    %1010 = vmatpush1.bf16.msra.mxu0 %v833
    %1011 = vmatprep.subr.bf16.mxu0 %v840
    %1012 = vmatpush1.bf16.msra.mxu0 %v839
    %1013 = vmatprep.subr.bf16.mxu0 %v846
    %1014 = vmatpush1.bf16.msra.mxu0 %v845
    %1015 = vmatprep.subr.bf16.mxu0 %v852
    %1016 = vmatpush1.bf16.msra.mxu0 %v851
    %1017 = vmatprep.subr.bf16.mxu0 %v858
    %1018 = vmatpush1.bf16.msra.mxu0 %v857
    %1019 = vmatprep.subr.bf16.mxu0 %v864
    %1020 = vmatpush1.bf16.msra.mxu0 %v863
    %1021 = vmatprep.subr.bf16.mxu0 %v870
    %1022 = vmatpush1.bf16.msra.mxu0 %v869
    %1023 = vmatprep.subr.bf16.mxu0 %v876
    %1024 = vmatpush1.bf16.msra.mxu0 %v875
    %1025 = vmatprep.subr.bf16.mxu0 %v882
    %1026 = vmatpush1.bf16.msra.mxu0 %v881
    %1027 = vmatprep.subr.bf16.mxu0 %v888
    %1028 = vmatpush1.bf16.msra.mxu0 %v887
    %1029 = vmatprep.subr.bf16.mxu0 %v894
    %1030 = vmatpush1.bf16.msra.mxu0 %v893
    %1031 = vmatprep.subr.bf16.mxu0 %v900
    %1032 = vmatpush1.bf16.msra.mxu0 %v899
    %1033 = vmatprep.mubr.bf16.mxu0 %v392
    %1034 = vmatmul.mubr.bf16.gmra.mrb[0].mxu0 %v391
    %v1035 = vpop.f32.mrb[0].mxu0
    %v1036 = vadd.f32 %v494, %v1035
    %v1037 = vpop.f32.mrb[0].mxu0
    %v1038 = vadd.f32 %v498, %v1037
    %v1039 = vpop.f32.mrb[0].mxu0
    %v1040 = vpop.f32.mrb[0].mxu0
    %1041 = vdwg.mxu0
    %1042 = vmatprep.subr.bf16.mxu0 %v812
    %1043 = vmatpush1.bf16.msra.mxu0 %v811
    %1044 = vmatprep.subr.bf16.mxu0 %v818
    %1045 = vmatpush1.bf16.msra.mxu0 %v817
    %1046 = vmatprep.subr.bf16.mxu0 %v824
    %1047 = vmatpush1.bf16.msra.mxu0 %v823
    %1048 = vmatprep.subr.bf16.mxu0 %v830
    %1049 = vmatpush1.bf16.msra.mxu0 %v829
    %1050 = vmatprep.subr.bf16.mxu0 %v836
    %1051 = vmatpush1.bf16.msra.mxu0 %v835
    %1052 = vmatprep.subr.bf16.mxu0 %v842
    %1053 = vmatpush1.bf16.msra.mxu0 %v841
    %1054 = vmatprep.subr.bf16.mxu0 %v848
    %1055 = vmatpush1.bf16.msra.mxu0 %v847
    %1056 = vmatprep.subr.bf16.mxu0 %v854
    %1057 = vmatpush1.bf16.msra.mxu0 %v853
    %1058 = vmatprep.subr.bf16.mxu0 %v860
    %1059 = vmatpush1.bf16.msra.mxu0 %v859
    %1060 = vmatprep.subr.bf16.mxu0 %v866
    %1061 = vmatpush1.bf16.msra.mxu0 %v865
    %1062 = vmatprep.subr.bf16.mxu0 %v872
    %1063 = vmatpush1.bf16.msra.mxu0 %v871
    %1064 = vmatprep.subr.bf16.mxu0 %v878
    %1065 = vmatpush1.bf16.msra.mxu0 %v877
    %1066 = vmatprep.subr.bf16.mxu0 %v884
    %1067 = vmatpush1.bf16.msra.mxu0 %v883
    %1068 = vmatprep.subr.bf16.mxu0 %v890
    %1069 = vmatpush1.bf16.msra.mxu0 %v889
    %1070 = vmatprep.subr.bf16.mxu0 %v896
    %1071 = vmatpush1.bf16.msra.mxu0 %v895
    %1072 = vmatprep.subr.bf16.mxu0 %v902
    %1073 = vmatpush1.bf16.msra.mxu0 %v901
    %1074 = vmatprep.mubr.bf16.mxu0 %v392
    %1075 = vmatmul.mubr.bf16.gmra.mrb[0].mxu0 %v391
    %v1076 = vpop.f32.mrb[0].mxu0
    %v1077 = vadd.f32 %v502, %v1076
    %v1078 = vpop.f32.mrb[0].mxu0
    %v1079 = vadd.f32 %v506, %v1078
    %v1080 = vpop.f32.mrb[0].mxu0
    %v1081 = vpop.f32.mrb[0].mxu0
    %1082 = vdwg.mxu0
    %1083 = vmatprep.subr.bf16.mxu0 %v814
    %1084 = vmatpush1.bf16.msra.mxu0 %v813
    %1085 = vmatprep.subr.bf16.mxu0 %v820
    %1086 = vmatpush1.bf16.msra.mxu0 %v819
    %1087 = vmatprep.subr.bf16.mxu0 %v826
    %1088 = vmatpush1.bf16.msra.mxu0 %v825
    %1089 = vmatprep.subr.bf16.mxu0 %v832
    %1090 = vmatpush1.bf16.msra.mxu0 %v831
    %1091 = vmatprep.subr.bf16.mxu0 %v838
    %1092 = vmatpush1.bf16.msra.mxu0 %v837
    %1093 = vmatprep.subr.bf16.mxu0 %v844
    %1094 = vmatpush1.bf16.msra.mxu0 %v843
    %1095 = vmatprep.subr.bf16.mxu0 %v850
    %1096 = vmatpush1.bf16.msra.mxu0 %v849
    %1097 = vmatprep.subr.bf16.mxu0 %v856
    %1098 = vmatpush1.bf16.msra.mxu0 %v855
    %1099 = vmatprep.subr.bf16.mxu0 %v862
    %1100 = vmatpush1.bf16.msra.mxu0 %v861
    %1101 = vmatprep.subr.bf16.mxu0 %v868
    %1102 = vmatpush1.bf16.msra.mxu0 %v867
    %1103 = vmatprep.subr.bf16.mxu0 %v874
    %1104 = vmatpush1.bf16.msra.mxu0 %v873
    %1105 = vmatprep.subr.bf16.mxu0 %v880
    %1106 = vmatpush1.bf16.msra.mxu0 %v879
    %1107 = vmatprep.subr.bf16.mxu0 %v886
    %1108 = vmatpush1.bf16.msra.mxu0 %v885
    %1109 = vmatprep.subr.bf16.mxu0 %v892
    %1110 = vmatpush1.bf16.msra.mxu0 %v891
    %1111 = vmatprep.subr.bf16.mxu0 %v898
    %1112 = vmatpush1.bf16.msra.mxu0 %v897
    %1113 = vmatprep.subr.bf16.mxu0 %v904
    %1114 = vmatpush1.bf16.msra.mxu0 %v903
    %1115 = vmatprep.mubr.bf16.mxu0 %v392
    %1116 = vmatmul.mubr.bf16.gmra.mrb[0].mxu0 %v391
    %v1117 = vpop.f32.mrb[0].mxu0
    %v1118 = vadd.f32 %v510, %v1117
    %v1119 = vpop.f32.mrb[0].mxu0
    %v1120 = vadd.f32 %v514, %v1119
    %v1121 = vpop.f32.mrb[0].mxu0
    %v1122 = vpop.f32.mrb[0].mxu0
    %1123 = vdwg.mxu0
    %v1124 = vmax.f32 %v1036, 0.0
    %v1125 = vmax.f32 %v1038, 0.0
    %v1126 = vmax.f32 %v1077, 0.0
    %v1127 = vmax.f32 %v1079, 0.0
    %v1128 = vmax.f32 %v1118, 0.0
    %v1129 = vmax.f32 %v1120, 0.0
    %v1132 = vcombine.low %v1124, %v1125
    %v1134 = vunpack.c.l.s4 1966171168
    %v1135 = vunpack.c.0.s8 %v1134
    %v1136 = vlaneseq
    %v1137 = vshrl.u32 %v1136, 7
    %v1138 = vsub.s32 %v1135, %v1137
    %v1139 = vrot.slane %v1132, %v1138
    %v1141 = vunpack.c.l.s4 1966171168
    %v1142 = vunpack.c.0.s8 %v1141
    %v1143 = vlaneseq
    %v1144 = vshrl.u32 %v1143, 7
    %v1145 = vsub.s32 %v1142, %v1144
    %v1146 = vrot.slane %v1139, %v1145
    %v1148 = vlaneseq
    %vm1149 = vcmp.ge.s32.totalorder %v1148, 0
    %vm1150 = vcmp.lt.s32.totalorder %v1148, 256
    %vm1151 = vmand %vm1149, %vm1150
    %1152 = vst.msk [vmem:[#allocation2] ss:$8 sm:$0x3] %vm1151, %v1146
    %1153 = vst.msk [vmem:[#allocation2] ss:$8 sm:$0x0] %vm1151, %v1146
    %v1154 = vcombine.high %v1139, %v1139
    %v1156 = vunpack.c.l.s4 1966171168
    %v1157 = vunpack.c.0.s8 %v1156
    %v1158 = vlaneseq
    %v1159 = vshrl.u32 %v1158, 7
    %v1160 = vsub.s32 %v1157, %v1159
    %v1161 = vrot.slane %v1154, %v1160
    %s1163 = scalar_lea.vmem [#allocation2], 3
    %1164 = vst.msk [vmem:[%s1163] ss:$8 sm:$0x3] %vm1151, %v1161
    %1165 = vst.msk [vmem:[%s1163] ss:$8 sm:$0x0] %vm1151, %v1161
    %v1168 = vcombine.low %v1126, %v1127
    %v1170 = vunpack.c.l.s4 1966171168
    %v1171 = vunpack.c.0.s8 %v1170
    %v1172 = vlaneseq
    %v1173 = vshrl.u32 %v1172, 7
    %v1174 = vsub.s32 %v1171, %v1173
    %v1175 = vrot.slane %v1168, %v1174
    %v1177 = vunpack.c.l.s4 1966171168
    %v1178 = vunpack.c.0.s8 %v1177
    %v1179 = vlaneseq
    %v1180 = vshrl.u32 %v1179, 7
    %v1181 = vsub.s32 %v1178, %v1180
    %v1182 = vrot.slane %v1175, %v1181
    %s1184 = scalar_lea.vmem [#allocation2], 1
    %1185 = vst.msk [vmem:[%s1184] ss:$8 sm:$0x3] %vm1151, %v1182
    %1186 = vst.msk [vmem:[%s1184] ss:$8 sm:$0x0] %vm1151, %v1182
    %v1187 = vcombine.high %v1175, %v1175
    %v1189 = vunpack.c.l.s4 1966171168
    %v1190 = vunpack.c.0.s8 %v1189
    %v1191 = vlaneseq
    %v1192 = vshrl.u32 %v1191, 7
    %v1193 = vsub.s32 %v1190, %v1192
    %v1194 = vrot.slane %v1187, %v1193
    %s1196 = scalar_lea.vmem [#allocation2], 4
    %1197 = vst.msk [vmem:[%s1196] ss:$8 sm:$0x3] %vm1151, %v1194
    %1198 = vst.msk [vmem:[%s1196] ss:$8 sm:$0x0] %vm1151, %v1194
    %v1201 = vcombine.low %v1128, %v1129
    %v1203 = vunpack.c.l.s4 1966171168
    %v1204 = vunpack.c.0.s8 %v1203
    %v1205 = vlaneseq
    %v1206 = vshrl.u32 %v1205, 7
    %v1207 = vsub.s32 %v1204, %v1206
    %v1208 = vrot.slane %v1201, %v1207
    %v1210 = vunpack.c.l.s4 1966171168
    %v1211 = vunpack.c.0.s8 %v1210
    %v1212 = vlaneseq
    %v1213 = vshrl.u32 %v1212, 7
    %v1214 = vsub.s32 %v1211, %v1213
    %v1215 = vrot.slane %v1208, %v1214
    %s1217 = scalar_lea.vmem [#allocation2], 2
    %1218 = vst.msk [vmem:[%s1217] ss:$8 sm:$0x3] %vm1151, %v1215
    %1219 = vst.msk [vmem:[%s1217] ss:$8 sm:$0x0] %vm1151, %v1215
    %v1220 = vcombine.high %v1208, %v1208
    %v1222 = vunpack.c.l.s4 1966171168
    %v1223 = vunpack.c.0.s8 %v1222
    %v1224 = vlaneseq
    %v1225 = vshrl.u32 %v1224, 7
    %v1226 = vsub.s32 %v1223, %v1225
    %v1227 = vrot.slane %v1220, %v1226
    %s1229 = scalar_lea.vmem [#allocation2], 5
    %1230 = vst.msk [vmem:[%s1229] ss:$8 sm:$0x3] %vm1151, %v1227
    %1231 = vst.msk [vmem:[%s1229] ss:$8 sm:$0x0] %vm1151, %v1227
    %v1232 = vld [vmem:[#allocation2] sm:$0x3f]
    %v1233 = vld [vmem:[#allocation2 + $0x8] sm:$0x3f]
    %v1234 = vpack.c.bf16 %v1232, %v1232
    %v1235 = vpack.c.bf16 %v1233, %v1233
    %v1236 = vld [vmem:[#allocation7] sm:$0xff]
    %v1237 = vld [vmem:[#allocation7 + $0x8] sm:$0xff]
    %v1238 = vld [vmem:[#allocation7 + $0x10] sm:$0xff]
    %v1239 = vld [vmem:[#allocation7 + $0x18] sm:$0xff]
    %v1240 = vld [vmem:[#allocation7 + $0x20] sm:$0xff]
    %v1241 = vld [vmem:[#allocation7 + $0x28] sm:$0xff]
    %v1242 = vld [vmem:[#allocation7 + $0x30] sm:$0xff]
    %v1243 = vld [vmem:[#allocation7 + $0x38] sm:$0xff]
    %v1244 = vld [vmem:[#allocation7 + $0x40] sm:$0xff]
    %v1245 = vld [vmem:[#allocation7 + $0x48] sm:$0xff]
    %v1246 = vld [vmem:[#allocation7 + $0x50] sm:$0xff]
    %v1247 = vld [vmem:[#allocation7 + $0x58] sm:$0xff]
    %v1248 = vld [vmem:[#allocation7 + $0x60] sm:$0xff]
    %v1249 = vld [vmem:[#allocation7 + $0x68] sm:$0xff]
    %v1250 = vld [vmem:[#allocation7 + $0x70] sm:$0xff]
    %v1251 = vld [vmem:[#allocation7 + $0x78] sm:$0xff]
    %v1252 = vld [vmem:[#allocation7 + $0x80] sm:$0xff]
    %v1253 = vld [vmem:[#allocation7 + $0x88] sm:$0xff]
    %v1254 = vld [vmem:[#allocation7 + $0x90] sm:$0xff]
    %v1255 = vld [vmem:[#allocation7 + $0x98] sm:$0xff]
    %v1256 = vld [vmem:[#allocation7 + $0xa0] sm:$0xff]
    %v1257 = vld [vmem:[#allocation7 + $0xa8] sm:$0xff]
    %v1258 = vld [vmem:[#allocation7 + $0xb0] sm:$0xff]
    %v1259 = vld [vmem:[#allocation7 + $0xb8] sm:$0xff]
    %v1260 = vld [vmem:[#allocation7 + $0xc0] sm:$0xff]
    %v1261 = vld [vmem:[#allocation7 + $0xc8] sm:$0xff]
    %v1262 = vld [vmem:[#allocation7 + $0xd0] sm:$0xff]
    %v1263 = vld [vmem:[#allocation7 + $0xd8] sm:$0xff]
    %v1264 = vld [vmem:[#allocation7 + $0xe0] sm:$0xff]
    %v1265 = vld [vmem:[#allocation7 + $0xe8] sm:$0xff]
    %v1266 = vld [vmem:[#allocation7 + $0xf0] sm:$0xff]
    %v1267 = vld [vmem:[#allocation7 + $0xf8] sm:$0xff]
    %v1268 = vld [vmem:[#allocation7 + $0x100] sm:$0xff]
    %v1269 = vld [vmem:[#allocation7 + $0x108] sm:$0xff]
    %v1270 = vld [vmem:[#allocation7 + $0x110] sm:$0xff]
    %v1271 = vld [vmem:[#allocation7 + $0x118] sm:$0xff]
    %v1272 = vld [vmem:[#allocation7 + $0x120] sm:$0xff]
    %v1273 = vld [vmem:[#allocation7 + $0x128] sm:$0xff]
    %v1274 = vld [vmem:[#allocation7 + $0x130] sm:$0xff]
    %v1275 = vld [vmem:[#allocation7 + $0x138] sm:$0xff]
    %v1276 = vld [vmem:[#allocation7 + $0x140] sm:$0xff]
    %v1277 = vld [vmem:[#allocation7 + $0x148] sm:$0xff]
    %v1278 = vld [vmem:[#allocation7 + $0x150] sm:$0xff]
    %v1279 = vld [vmem:[#allocation7 + $0x158] sm:$0xff]
    %v1280 = vld [vmem:[#allocation7 + $0x160] sm:$0xff]
    %v1281 = vld [vmem:[#allocation7 + $0x168] sm:$0xff]
    %v1282 = vld [vmem:[#allocation7 + $0x170] sm:$0xff]
    %v1283 = vld [vmem:[#allocation7 + $0x178] sm:$0xff]
    %v1284 = vld [vmem:[#allocation7 + $0x180] sm:$0xff]
    %v1285 = vld [vmem:[#allocation7 + $0x188] sm:$0xff]
    %v1286 = vld [vmem:[#allocation7 + $0x190] sm:$0xff]
    %v1287 = vld [vmem:[#allocation7 + $0x198] sm:$0xff]
    %v1288 = vld [vmem:[#allocation7 + $0x1a0] sm:$0xff]
    %v1289 = vld [vmem:[#allocation7 + $0x1a8] sm:$0xff]
    %v1290 = vld [vmem:[#allocation7 + $0x1b0] sm:$0xff]
    %v1291 = vld [vmem:[#allocation7 + $0x1b8] sm:$0xff]
    %v1292 = vld [vmem:[#allocation7 + $0x1c0] sm:$0xff]
    %v1293 = vld [vmem:[#allocation7 + $0x1c8] sm:$0xff]
    %v1294 = vld [vmem:[#allocation7 + $0x1d0] sm:$0xff]
    %v1295 = vld [vmem:[#allocation7 + $0x1d8] sm:$0xff]
    %v1296 = vld [vmem:[#allocation7 + $0x1e0] sm:$0xff]
    %v1297 = vld [vmem:[#allocation7 + $0x1e8] sm:$0xff]
    %v1298 = vld [vmem:[#allocation7 + $0x1f0] sm:$0xff]
    %v1299 = vld [vmem:[#allocation7 + $0x1f8] sm:$0xff]
    %v1300 = vld [vmem:[#allocation7 + $0x200] sm:$0xff]
    %v1301 = vld [vmem:[#allocation7 + $0x208] sm:$0xff]
    %v1302 = vld [vmem:[#allocation7 + $0x210] sm:$0xff]
    %v1303 = vld [vmem:[#allocation7 + $0x218] sm:$0xff]
    %v1304 = vld [vmem:[#allocation7 + $0x220] sm:$0xff]
    %v1305 = vld [vmem:[#allocation7 + $0x228] sm:$0xff]
    %v1306 = vld [vmem:[#allocation7 + $0x230] sm:$0xff]
    %v1307 = vld [vmem:[#allocation7 + $0x238] sm:$0xff]
    %v1308 = vld [vmem:[#allocation7 + $0x240] sm:$0xff]
    %v1309 = vld [vmem:[#allocation7 + $0x248] sm:$0xff]
    %v1310 = vld [vmem:[#allocation7 + $0x250] sm:$0xff]
    %v1311 = vld [vmem:[#allocation7 + $0x258] sm:$0xff]
    %v1312 = vld [vmem:[#allocation7 + $0x260] sm:$0xff]
    %v1313 = vld [vmem:[#allocation7 + $0x268] sm:$0xff]
    %v1314 = vld [vmem:[#allocation7 + $0x270] sm:$0xff]
    %v1315 = vld [vmem:[#allocation7 + $0x278] sm:$0xff]
    %v1316 = vld [vmem:[#allocation7 + $0x280] sm:$0xff]
    %v1317 = vld [vmem:[#allocation7 + $0x288] sm:$0xff]
    %v1318 = vld [vmem:[#allocation7 + $0x290] sm:$0xff]
    %v1319 = vld [vmem:[#allocation7 + $0x298] sm:$0xff]
    %v1320 = vld [vmem:[#allocation7 + $0x2a0] sm:$0xff]
    %v1321 = vld [vmem:[#allocation7 + $0x2a8] sm:$0xff]
    %v1322 = vld [vmem:[#allocation7 + $0x2b0] sm:$0xff]
    %v1323 = vld [vmem:[#allocation7 + $0x2b8] sm:$0xff]
    %v1324 = vld [vmem:[#allocation7 + $0x2c0] sm:$0xff]
    %v1325 = vld [vmem:[#allocation7 + $0x2c8] sm:$0xff]
    %v1326 = vld [vmem:[#allocation7 + $0x2d0] sm:$0xff]
    %v1327 = vld [vmem:[#allocation7 + $0x2d8] sm:$0xff]
    %v1328 = vld [vmem:[#allocation7 + $0x2e0] sm:$0xff]
    %v1329 = vld [vmem:[#allocation7 + $0x2e8] sm:$0xff]
    %v1330 = vld [vmem:[#allocation7 + $0x2f0] sm:$0xff]
    %v1331 = vld [vmem:[#allocation7 + $0x2f8] sm:$0xff]
    %v1428 = vunpack.c.l.b16 %v1236
    %v1429 = vunpack.c.h.b16 %v1236
    %v1430 = vunpack.c.l.b16 %v1237
    %v1431 = vunpack.c.h.b16 %v1237
    %v1432 = vunpack.c.l.b16 %v1238
    %v1433 = vunpack.c.h.b16 %v1238
    %v1434 = vunpack.c.l.b16 %v1239
    %v1435 = vunpack.c.h.b16 %v1239
    %v1436 = vunpack.c.l.b16 %v1240
    %v1437 = vunpack.c.h.b16 %v1240
    %v1438 = vunpack.c.l.b16 %v1241
    %v1439 = vunpack.c.h.b16 %v1241
    %v1440 = vunpack.c.l.b16 %v1242
    %v1441 = vunpack.c.h.b16 %v1242
    %v1442 = vunpack.c.l.b16 %v1243
    %v1443 = vunpack.c.h.b16 %v1243
    %v1444 = vunpack.c.l.b16 %v1244
    %v1445 = vunpack.c.h.b16 %v1244
    %v1446 = vunpack.c.l.b16 %v1245
    %v1447 = vunpack.c.h.b16 %v1245
    %v1448 = vunpack.c.l.b16 %v1246
    %v1449 = vunpack.c.h.b16 %v1246
    %v1450 = vunpack.c.l.b16 %v1247
    %v1451 = vunpack.c.h.b16 %v1247
    %v1452 = vunpack.c.l.b16 %v1248
    %v1453 = vunpack.c.h.b16 %v1248
    %v1454 = vunpack.c.l.b16 %v1249
    %v1455 = vunpack.c.h.b16 %v1249
    %v1456 = vunpack.c.l.b16 %v1250
    %v1457 = vunpack.c.h.b16 %v1250
    %v1458 = vunpack.c.l.b16 %v1251
    %v1459 = vunpack.c.h.b16 %v1251
    %v1460 = vunpack.c.l.b16 %v1252
    %v1461 = vunpack.c.h.b16 %v1252
    %v1462 = vunpack.c.l.b16 %v1253
    %v1463 = vunpack.c.h.b16 %v1253
    %v1464 = vunpack.c.l.b16 %v1254
    %v1465 = vunpack.c.h.b16 %v1254
    %v1466 = vunpack.c.l.b16 %v1255
    %v1467 = vunpack.c.h.b16 %v1255
    %v1468 = vunpack.c.l.b16 %v1256
    %v1469 = vunpack.c.h.b16 %v1256
    %v1470 = vunpack.c.l.b16 %v1257
    %v1471 = vunpack.c.h.b16 %v1257
    %v1472 = vunpack.c.l.b16 %v1258
    %v1473 = vunpack.c.h.b16 %v1258
    %v1474 = vunpack.c.l.b16 %v1259
    %v1475 = vunpack.c.h.b16 %v1259
    %v1476 = vunpack.c.l.b16 %v1260
    %v1477 = vunpack.c.h.b16 %v1260
    %v1478 = vunpack.c.l.b16 %v1261
    %v1479 = vunpack.c.h.b16 %v1261
    %v1480 = vunpack.c.l.b16 %v1262
    %v1481 = vunpack.c.h.b16 %v1262
    %v1482 = vunpack.c.l.b16 %v1263
    %v1483 = vunpack.c.h.b16 %v1263
    %v1484 = vunpack.c.l.b16 %v1264
    %v1485 = vunpack.c.h.b16 %v1264
    %v1486 = vunpack.c.l.b16 %v1265
    %v1487 = vunpack.c.h.b16 %v1265
    %v1488 = vunpack.c.l.b16 %v1266
    %v1489 = vunpack.c.h.b16 %v1266
    %v1490 = vunpack.c.l.b16 %v1267
    %v1491 = vunpack.c.h.b16 %v1267
    %v1492 = vunpack.c.l.b16 %v1268
    %v1493 = vunpack.c.h.b16 %v1268
    %v1494 = vunpack.c.l.b16 %v1269
    %v1495 = vunpack.c.h.b16 %v1269
    %v1496 = vunpack.c.l.b16 %v1270
    %v1497 = vunpack.c.h.b16 %v1270
    %v1498 = vunpack.c.l.b16 %v1271
    %v1499 = vunpack.c.h.b16 %v1271
    %v1500 = vunpack.c.l.b16 %v1272
    %v1501 = vunpack.c.h.b16 %v1272
    %v1502 = vunpack.c.l.b16 %v1273
    %v1503 = vunpack.c.h.b16 %v1273
    %v1504 = vunpack.c.l.b16 %v1274
    %v1505 = vunpack.c.h.b16 %v1274
    %v1506 = vunpack.c.l.b16 %v1275
    %v1507 = vunpack.c.h.b16 %v1275
    %v1508 = vunpack.c.l.b16 %v1276
    %v1509 = vunpack.c.h.b16 %v1276
    %v1510 = vunpack.c.l.b16 %v1277
    %v1511 = vunpack.c.h.b16 %v1277
    %v1512 = vunpack.c.l.b16 %v1278
    %v1513 = vunpack.c.h.b16 %v1278
    %v1514 = vunpack.c.l.b16 %v1279
    %v1515 = vunpack.c.h.b16 %v1279
    %v1516 = vunpack.c.l.b16 %v1280
    %v1517 = vunpack.c.h.b16 %v1280
    %v1518 = vunpack.c.l.b16 %v1281
    %v1519 = vunpack.c.h.b16 %v1281
    %v1520 = vunpack.c.l.b16 %v1282
    %v1521 = vunpack.c.h.b16 %v1282
    %v1522 = vunpack.c.l.b16 %v1283
    %v1523 = vunpack.c.h.b16 %v1283
    %v1524 = vunpack.c.l.b16 %v1284
    %v1525 = vunpack.c.h.b16 %v1284
    %v1526 = vunpack.c.l.b16 %v1285
    %v1527 = vunpack.c.h.b16 %v1285
    %v1528 = vunpack.c.l.b16 %v1286
    %v1529 = vunpack.c.h.b16 %v1286
    %v1530 = vunpack.c.l.b16 %v1287
    %v1531 = vunpack.c.h.b16 %v1287
    %v1532 = vunpack.c.l.b16 %v1288
    %v1533 = vunpack.c.h.b16 %v1288
    %v1534 = vunpack.c.l.b16 %v1289
    %v1535 = vunpack.c.h.b16 %v1289
    %v1536 = vunpack.c.l.b16 %v1290
    %v1537 = vunpack.c.h.b16 %v1290
    %v1538 = vunpack.c.l.b16 %v1291
    %v1539 = vunpack.c.h.b16 %v1291
    %v1540 = vunpack.c.l.b16 %v1292
    %v1541 = vunpack.c.h.b16 %v1292
    %v1542 = vunpack.c.l.b16 %v1293
    %v1543 = vunpack.c.h.b16 %v1293
    %v1544 = vunpack.c.l.b16 %v1294
    %v1545 = vunpack.c.h.b16 %v1294
    %v1546 = vunpack.c.l.b16 %v1295
    %v1547 = vunpack.c.h.b16 %v1295
    %v1548 = vunpack.c.l.b16 %v1296
    %v1549 = vunpack.c.h.b16 %v1296
    %v1550 = vunpack.c.l.b16 %v1297
    %v1551 = vunpack.c.h.b16 %v1297
    %v1552 = vunpack.c.l.b16 %v1298
    %v1553 = vunpack.c.h.b16 %v1298
    %v1554 = vunpack.c.l.b16 %v1299
    %v1555 = vunpack.c.h.b16 %v1299
    %v1556 = vunpack.c.l.b16 %v1300
    %v1557 = vunpack.c.h.b16 %v1300
    %v1558 = vunpack.c.l.b16 %v1301
    %v1559 = vunpack.c.h.b16 %v1301
    %v1560 = vunpack.c.l.b16 %v1302
    %v1561 = vunpack.c.h.b16 %v1302
    %v1562 = vunpack.c.l.b16 %v1303
    %v1563 = vunpack.c.h.b16 %v1303
    %v1564 = vunpack.c.l.b16 %v1304
    %v1565 = vunpack.c.h.b16 %v1304
    %v1566 = vunpack.c.l.b16 %v1305
    %v1567 = vunpack.c.h.b16 %v1305
    %v1568 = vunpack.c.l.b16 %v1306
    %v1569 = vunpack.c.h.b16 %v1306
    %v1570 = vunpack.c.l.b16 %v1307
    %v1571 = vunpack.c.h.b16 %v1307
    %v1572 = vunpack.c.l.b16 %v1308
    %v1573 = vunpack.c.h.b16 %v1308
    %v1574 = vunpack.c.l.b16 %v1309
    %v1575 = vunpack.c.h.b16 %v1309
    %v1576 = vunpack.c.l.b16 %v1310
    %v1577 = vunpack.c.h.b16 %v1310
    %v1578 = vunpack.c.l.b16 %v1311
    %v1579 = vunpack.c.h.b16 %v1311
    %v1580 = vunpack.c.l.b16 %v1312
    %v1581 = vunpack.c.h.b16 %v1312
    %v1582 = vunpack.c.l.b16 %v1313
    %v1583 = vunpack.c.h.b16 %v1313
    %v1584 = vunpack.c.l.b16 %v1314
    %v1585 = vunpack.c.h.b16 %v1314
    %v1586 = vunpack.c.l.b16 %v1315
    %v1587 = vunpack.c.h.b16 %v1315
    %v1588 = vunpack.c.l.b16 %v1316
    %v1589 = vunpack.c.h.b16 %v1316
    %v1590 = vunpack.c.l.b16 %v1317
    %v1591 = vunpack.c.h.b16 %v1317
    %v1592 = vunpack.c.l.b16 %v1318
    %v1593 = vunpack.c.h.b16 %v1318
    %v1594 = vunpack.c.l.b16 %v1319
    %v1595 = vunpack.c.h.b16 %v1319
    %v1596 = vunpack.c.l.b16 %v1320
    %v1597 = vunpack.c.h.b16 %v1320
    %v1598 = vunpack.c.l.b16 %v1321
    %v1599 = vunpack.c.h.b16 %v1321
    %v1600 = vunpack.c.l.b16 %v1322
    %v1601 = vunpack.c.h.b16 %v1322
    %v1602 = vunpack.c.l.b16 %v1323
    %v1603 = vunpack.c.h.b16 %v1323
    %v1604 = vunpack.c.l.b16 %v1324
    %v1605 = vunpack.c.h.b16 %v1324
    %v1606 = vunpack.c.l.b16 %v1325
    %v1607 = vunpack.c.h.b16 %v1325
    %v1608 = vunpack.c.l.b16 %v1326
    %v1609 = vunpack.c.h.b16 %v1326
    %v1610 = vunpack.c.l.b16 %v1327
    %v1611 = vunpack.c.h.b16 %v1327
    %v1612 = vunpack.c.l.b16 %v1328
    %v1613 = vunpack.c.h.b16 %v1328
    %v1614 = vunpack.c.l.b16 %v1329
    %v1615 = vunpack.c.h.b16 %v1329
    %v1616 = vunpack.c.l.b16 %v1330
    %v1617 = vunpack.c.h.b16 %v1330
    %v1618 = vunpack.c.l.b16 %v1331
    %v1619 = vunpack.c.h.b16 %v1331
    %v1620 = vpack.c.b16 %v1434, %v1428
    %v1621 = vpack.c.b16 %v1435, %v1429
    %v1622 = vpack.c.b16 %v1436, %v1430
    %v1623 = vpack.c.b16 %v1437, %v1431
    %v1624 = vpack.c.b16 %v1438, %v1432
    %v1625 = vpack.c.b16 %v1439, %v1433
    %v1626 = vpack.c.b16 %v1446, %v1440
    %v1627 = vpack.c.b16 %v1447, %v1441
    %v1628 = vpack.c.b16 %v1448, %v1442
    %v1629 = vpack.c.b16 %v1449, %v1443
    %v1630 = vpack.c.b16 %v1450, %v1444
    %v1631 = vpack.c.b16 %v1451, %v1445
    %v1632 = vpack.c.b16 %v1458, %v1452
    %v1633 = vpack.c.b16 %v1459, %v1453
    %v1634 = vpack.c.b16 %v1460, %v1454
    %v1635 = vpack.c.b16 %v1461, %v1455
    %v1636 = vpack.c.b16 %v1462, %v1456
    %v1637 = vpack.c.b16 %v1463, %v1457
    %v1638 = vpack.c.b16 %v1470, %v1464
    %v1639 = vpack.c.b16 %v1471, %v1465
    %v1640 = vpack.c.b16 %v1472, %v1466
    %v1641 = vpack.c.b16 %v1473, %v1467
    %v1642 = vpack.c.b16 %v1474, %v1468
    %v1643 = vpack.c.b16 %v1475, %v1469
    %v1644 = vpack.c.b16 %v1482, %v1476
    %v1645 = vpack.c.b16 %v1483, %v1477
    %v1646 = vpack.c.b16 %v1484, %v1478
    %v1647 = vpack.c.b16 %v1485, %v1479
    %v1648 = vpack.c.b16 %v1486, %v1480
    %v1649 = vpack.c.b16 %v1487, %v1481
    %v1650 = vpack.c.b16 %v1494, %v1488
    %v1651 = vpack.c.b16 %v1495, %v1489
    %v1652 = vpack.c.b16 %v1496, %v1490
    %v1653 = vpack.c.b16 %v1497, %v1491
    %v1654 = vpack.c.b16 %v1498, %v1492
    %v1655 = vpack.c.b16 %v1499, %v1493
    %v1656 = vpack.c.b16 %v1506, %v1500
    %v1657 = vpack.c.b16 %v1507, %v1501
    %v1658 = vpack.c.b16 %v1508, %v1502
    %v1659 = vpack.c.b16 %v1509, %v1503
    %v1660 = vpack.c.b16 %v1510, %v1504
    %v1661 = vpack.c.b16 %v1511, %v1505
    %v1662 = vpack.c.b16 %v1518, %v1512
    %v1663 = vpack.c.b16 %v1519, %v1513
    %v1664 = vpack.c.b16 %v1520, %v1514
    %v1665 = vpack.c.b16 %v1521, %v1515
    %v1666 = vpack.c.b16 %v1522, %v1516
    %v1667 = vpack.c.b16 %v1523, %v1517
    %v1668 = vpack.c.b16 %v1530, %v1524
    %v1669 = vpack.c.b16 %v1531, %v1525
    %v1670 = vpack.c.b16 %v1532, %v1526
    %v1671 = vpack.c.b16 %v1533, %v1527
    %v1672 = vpack.c.b16 %v1534, %v1528
    %v1673 = vpack.c.b16 %v1535, %v1529
    %v1674 = vpack.c.b16 %v1542, %v1536
    %v1675 = vpack.c.b16 %v1543, %v1537
    %v1676 = vpack.c.b16 %v1544, %v1538
    %v1677 = vpack.c.b16 %v1545, %v1539
    %v1678 = vpack.c.b16 %v1546, %v1540
    %v1679 = vpack.c.b16 %v1547, %v1541
    %v1680 = vpack.c.b16 %v1554, %v1548
    %v1681 = vpack.c.b16 %v1555, %v1549
    %v1682 = vpack.c.b16 %v1556, %v1550
    %v1683 = vpack.c.b16 %v1557, %v1551
    %v1684 = vpack.c.b16 %v1558, %v1552
    %v1685 = vpack.c.b16 %v1559, %v1553
    %v1686 = vpack.c.b16 %v1566, %v1560
    %v1687 = vpack.c.b16 %v1567, %v1561
    %v1688 = vpack.c.b16 %v1568, %v1562
    %v1689 = vpack.c.b16 %v1569, %v1563
    %v1690 = vpack.c.b16 %v1570, %v1564
    %v1691 = vpack.c.b16 %v1571, %v1565
    %v1692 = vpack.c.b16 %v1578, %v1572
    %v1693 = vpack.c.b16 %v1579, %v1573
    %v1694 = vpack.c.b16 %v1580, %v1574
    %v1695 = vpack.c.b16 %v1581, %v1575
    %v1696 = vpack.c.b16 %v1582, %v1576
    %v1697 = vpack.c.b16 %v1583, %v1577
    %v1698 = vpack.c.b16 %v1590, %v1584
    %v1699 = vpack.c.b16 %v1591, %v1585
    %v1700 = vpack.c.b16 %v1592, %v1586
    %v1701 = vpack.c.b16 %v1593, %v1587
    %v1702 = vpack.c.b16 %v1594, %v1588
    %v1703 = vpack.c.b16 %v1595, %v1589
    %v1704 = vpack.c.b16 %v1602, %v1596
    %v1705 = vpack.c.b16 %v1603, %v1597
    %v1706 = vpack.c.b16 %v1604, %v1598
    %v1707 = vpack.c.b16 %v1605, %v1599
    %v1708 = vpack.c.b16 %v1606, %v1600
    %v1709 = vpack.c.b16 %v1607, %v1601
    %v1710 = vpack.c.b16 %v1614, %v1608
    %v1711 = vpack.c.b16 %v1615, %v1609
    %v1712 = vpack.c.b16 %v1616, %v1610
    %v1713 = vpack.c.b16 %v1617, %v1611
    %v1714 = vpack.c.b16 %v1618, %v1612
    %v1715 = vpack.c.b16 %v1619, %v1613
    %1812 = vmatprep.subr.bf16.mxu0 %v1621
    %1813 = vmatpush1.bf16.msra.mxu0 %v1620
    %1814 = vmatprep.subr.bf16.mxu0 %v1627
    %1815 = vmatpush1.bf16.msra.mxu0 %v1626
    %1816 = vmatprep.subr.bf16.mxu0 %v1633
    %1817 = vmatpush1.bf16.msra.mxu0 %v1632
    %1818 = vmatprep.subr.bf16.mxu0 %v1639
    %1819 = vmatpush1.bf16.msra.mxu0 %v1638
    %1820 = vmatprep.subr.bf16.mxu0 %v1645
    %1821 = vmatpush1.bf16.msra.mxu0 %v1644
    %1822 = vmatprep.subr.bf16.mxu0 %v1651
    %1823 = vmatpush1.bf16.msra.mxu0 %v1650
    %1824 = vmatprep.subr.bf16.mxu0 %v1657
    %1825 = vmatpush1.bf16.msra.mxu0 %v1656
    %1826 = vmatprep.subr.bf16.mxu0 %v1663
    %1827 = vmatpush1.bf16.msra.mxu0 %v1662
    %1828 = vmatprep.subr.bf16.mxu0 %v1669
    %1829 = vmatpush1.bf16.msra.mxu0 %v1668
    %1830 = vmatprep.subr.bf16.mxu0 %v1675
    %1831 = vmatpush1.bf16.msra.mxu0 %v1674
    %1832 = vmatprep.subr.bf16.mxu0 %v1681
    %1833 = vmatpush1.bf16.msra.mxu0 %v1680
    %1834 = vmatprep.subr.bf16.mxu0 %v1687
    %1835 = vmatpush1.bf16.msra.mxu0 %v1686
    %1836 = vmatprep.subr.bf16.mxu0 %v1693
    %1837 = vmatpush1.bf16.msra.mxu0 %v1692
    %1838 = vmatprep.subr.bf16.mxu0 %v1699
    %1839 = vmatpush1.bf16.msra.mxu0 %v1698
    %1840 = vmatprep.subr.bf16.mxu0 %v1705
    %1841 = vmatpush1.bf16.msra.mxu0 %v1704
    %1842 = vmatprep.subr.bf16.mxu0 %v1711
    %1843 = vmatpush1.bf16.msra.mxu0 %v1710
    %1844 = vmatprep.mubr.bf16.mxu0 %v1235
    %1845 = vmatmul.mubr.bf16.gmra.mrb[0].mxu0 %v1234
    %v1846 = vpop.f32.mrb[0].mxu0
    %v1847 = vadd.f32 0.0, %v1846
    %v1848 = vpop.f32.mrb[0].mxu0
    %v1849 = vadd.f32 0.0, %v1848
    %v1850 = vpop.f32.mrb[0].mxu0
    %v1851 = vpop.f32.mrb[0].mxu0
    %1852 = vdwg.mxu0
    %1853 = vmatprep.subr.bf16.mxu0 %v1623
    %1854 = vmatpush1.bf16.msra.mxu0 %v1622
    %1855 = vmatprep.subr.bf16.mxu0 %v1629
    %1856 = vmatpush1.bf16.msra.mxu0 %v1628
    %1857 = vmatprep.subr.bf16.mxu0 %v1635
    %1858 = vmatpush1.bf16.msra.mxu0 %v1634
    %1859 = vmatprep.subr.bf16.mxu0 %v1641
    %1860 = vmatpush1.bf16.msra.mxu0 %v1640
    %1861 = vmatprep.subr.bf16.mxu0 %v1647
    %1862 = vmatpush1.bf16.msra.mxu0 %v1646
    %1863 = vmatprep.subr.bf16.mxu0 %v1653
    %1864 = vmatpush1.bf16.msra.mxu0 %v1652
    %1865 = vmatprep.subr.bf16.mxu0 %v1659
    %1866 = vmatpush1.bf16.msra.mxu0 %v1658
    %1867 = vmatprep.subr.bf16.mxu0 %v1665
    %1868 = vmatpush1.bf16.msra.mxu0 %v1664
    %1869 = vmatprep.subr.bf16.mxu0 %v1671
    %1870 = vmatpush1.bf16.msra.mxu0 %v1670
    %1871 = vmatprep.subr.bf16.mxu0 %v1677
    %1872 = vmatpush1.bf16.msra.mxu0 %v1676
    %1873 = vmatprep.subr.bf16.mxu0 %v1683
    %1874 = vmatpush1.bf16.msra.mxu0 %v1682
    %1875 = vmatprep.subr.bf16.mxu0 %v1689
    %1876 = vmatpush1.bf16.msra.mxu0 %v1688
    %1877 = vmatprep.subr.bf16.mxu0 %v1695
    %1878 = vmatpush1.bf16.msra.mxu0 %v1694
    %1879 = vmatprep.subr.bf16.mxu0 %v1701
    %1880 = vmatpush1.bf16.msra.mxu0 %v1700
    %1881 = vmatprep.subr.bf16.mxu0 %v1707
    %1882 = vmatpush1.bf16.msra.mxu0 %v1706
    %1883 = vmatprep.subr.bf16.mxu0 %v1713
    %1884 = vmatpush1.bf16.msra.mxu0 %v1712
    %1885 = vmatprep.mubr.bf16.mxu0 %v1235
    %1886 = vmatmul.mubr.bf16.gmra.mrb[0].mxu0 %v1234
    %v1887 = vpop.f32.mrb[0].mxu0
    %v1888 = vadd.f32 0.0, %v1887
    %v1889 = vpop.f32.mrb[0].mxu0
    %v1890 = vadd.f32 0.0, %v1889
    %v1891 = vpop.f32.mrb[0].mxu0
    %v1892 = vpop.f32.mrb[0].mxu0
    %1893 = vdwg.mxu0
    %1894 = vmatprep.subr.bf16.mxu0 %v1625
    %1895 = vmatpush1.bf16.msra.mxu0 %v1624
    %1896 = vmatprep.subr.bf16.mxu0 %v1631
    %1897 = vmatpush1.bf16.msra.mxu0 %v1630
    %1898 = vmatprep.subr.bf16.mxu0 %v1637
    %1899 = vmatpush1.bf16.msra.mxu0 %v1636
    %1900 = vmatprep.subr.bf16.mxu0 %v1643
    %1901 = vmatpush1.bf16.msra.mxu0 %v1642
    %1902 = vmatprep.subr.bf16.mxu0 %v1649
    %1903 = vmatpush1.bf16.msra.mxu0 %v1648
    %1904 = vmatprep.subr.bf16.mxu0 %v1655
    %1905 = vmatpush1.bf16.msra.mxu0 %v1654
    %1906 = vmatprep.subr.bf16.mxu0 %v1661
    %1907 = vmatpush1.bf16.msra.mxu0 %v1660
    %1908 = vmatprep.subr.bf16.mxu0 %v1667
    %1909 = vmatpush1.bf16.msra.mxu0 %v1666
    %1910 = vmatprep.subr.bf16.mxu0 %v1673
    %1911 = vmatpush1.bf16.msra.mxu0 %v1672
    %1912 = vmatprep.subr.bf16.mxu0 %v1679
    %1913 = vmatpush1.bf16.msra.mxu0 %v1678
    %1914 = vmatprep.subr.bf16.mxu0 %v1685
    %1915 = vmatpush1.bf16.msra.mxu0 %v1684
    %1916 = vmatprep.subr.bf16.mxu0 %v1691
    %1917 = vmatpush1.bf16.msra.mxu0 %v1690
    %1918 = vmatprep.subr.bf16.mxu0 %v1697
    %1919 = vmatpush1.bf16.msra.mxu0 %v1696
    %1920 = vmatprep.subr.bf16.mxu0 %v1703
    %1921 = vmatpush1.bf16.msra.mxu0 %v1702
    %1922 = vmatprep.subr.bf16.mxu0 %v1709
    %1923 = vmatpush1.bf16.msra.mxu0 %v1708
    %1924 = vmatprep.subr.bf16.mxu0 %v1715
    %1925 = vmatpush1.bf16.msra.mxu0 %v1714
    %1926 = vmatprep.mubr.bf16.mxu0 %v1235
    %1927 = vmatmul.mubr.bf16.gmra.mrb[0].mxu0 %v1234
    %v1928 = vpop.f32.mrb[0].mxu0
    %v1929 = vadd.f32 0.0, %v1928
    %v1930 = vpop.f32.mrb[0].mxu0
    %v1931 = vadd.f32 0.0, %v1930
    %v1932 = vpop.f32.mrb[0].mxu0
    %v1933 = vpop.f32.mrb[0].mxu0
    %1934 = vdwg.mxu0
    %1935 = vst [vmem:[#allocation3] sm:$0x3f] %v1847
    %1936 = vst [vmem:[#allocation3 + $0x8] sm:$0x3f] %v1849
    %v1939 = vrot.slane %v1888, 2
    %v1940 = vrot.slane %v1890, 2
    %1943 = vst [vmem:[#allocation3] sm:$0xc0] %v1939
    %1944 = vst [vmem:[#allocation3 + $0x8] sm:$0xc0] %v1940
    %1945 = vst [vmem:[#allocation3 + $0x10] sm:$0xf] %v1939
    %1946 = vst [vmem:[#allocation3 + $0x18] sm:$0xf] %v1940
    %v1949 = vrot.slane %v1929, 4
    %v1950 = vrot.slane %v1931, 4
    %1953 = vst [vmem:[#allocation3 + $0x10] sm:$0xf0] %v1949
    %1954 = vst [vmem:[#allocation3 + $0x18] sm:$0xf0] %v1950
    %1955 = vst [vmem:[#allocation3 + $0x20] sm:$0x3] %v1949
    %1956 = vst [vmem:[#allocation3 + $0x28] sm:$0x3] %v1950
    %v1957 = vld [vmem:[#allocation3] sm:$0xff]
    %v1958 = vld [vmem:[#allocation3 + $0x8] sm:$0xff]
    %v1959 = vld [vmem:[#allocation3 + $0x10] sm:$0xff]
    %v1960 = vld [vmem:[#allocation3 + $0x18] sm:$0xff]
    %v1961 = vld [vmem:[#allocation3 + $0x20] sm:$0x3]
    %v1962 = vld [vmem:[#allocation3 + $0x28] sm:$0x3]
    %v1963 = vld [vmem:[%s13] sm:$0xff]
    %v1964 = vld [vmem:[%s13 + $0x8] sm:$0x3f]
    %v1965 = vld [vmem:[%s15] sm:$0x3]
    %v1967 = vlaneseq
    %v1968 = vshrl.u32 %v1967, 7
    %v1969 = vsub.s32 0, %v1968
    %v1970 = vrot.slane %v1965, %v1969
    %v1971 = vlaneseq
    %v1972 = vshrl.u32 %v1971, 7
    %v1973 = vsub.s32 1, %v1972
    %v1974 = vrot.slane %v1965, %v1973
    %vm1977 = vcmask 146432
    %v1979 = vsel %vm1977, %v1963, 0
    %v1982 = vsel %vm1977, %v1964, 0
    %vm1984 = vcmask 1041408
    %v1986 = vsel %vm1984, %v1961, 0
    %v1989 = vsel %vm1984, %v1962, 0
    %1991 = vmatprep.subr.mxu0 %v1958
    %1992 = vmatpush1.msra.mxu0 %v1957
    %1993 = vmatprep.subr.mxu0 %v1960
    %1994 = vmatpush1.msra.mxu0 %v1959
    %1995 = vmatprep.subr.mxu0 %v1989
    %1996 = vmatpush1.msra.mxu0 %v1986
    %1997 = vmatprep.subr.mxu0 0.0
    %1998 = vmatpush1.msra.mxu0 0.0
    %1999 = vmatprep.subr.mxu0 0.0
    %2000 = vmatpush1.msra.mxu0 0.0
    %2001 = vmatprep.subr.mxu0 0.0
    %2002 = vmatpush1.msra.mxu0 0.0
    %2003 = vmatprep.subr.mxu0 0.0
    %2004 = vmatpush1.msra.mxu0 0.0
    %2005 = vmatprep.subr.mxu0 0.0
    %2006 = vmatpush1.msra.mxu0 0.0
    %2007 = vmatprep.subr.mxu0 0.0
    %2008 = vmatpush1.msra.mxu0 0.0
    %2009 = vmatprep.subr.mxu0 0.0
    %2010 = vmatpush1.msra.mxu0 0.0
    %2011 = vmatprep.subr.mxu0 0.0
    %2012 = vmatpush1.msra.mxu0 0.0
    %2013 = vmatprep.subr.mxu0 0.0
    %2014 = vmatpush1.msra.mxu0 0.0
    %2015 = vmatprep.subr.mxu0 0.0
    %2016 = vmatpush1.msra.mxu0 0.0
    %2017 = vmatprep.subr.mxu0 0.0
    %2018 = vmatpush1.msra.mxu0 0.0
    %2019 = vmatprep.subr.mxu0 0.0
    %2020 = vmatpush1.msra.mxu0 0.0
    %2021 = vmatprep.subr.mxu0 0.0
    %2022 = vmatpush1.msra.mxu0 0.0
    %2023 = vmatprep.subr.mxu0 0.0
    %2024 = vmatpush1.msra.mxu0 0.0
    %2025 = vmatprep.subr.mxu0 0.0
    %2026 = vmatpush1.msra.mxu0 0.0
    %2027 = vmatprep.subr.mxu0 0.0
    %2028 = vmatpush1.msra.mxu0 0.0
    %2029 = vmatprep.subr.mxu0 0.0
    %2030 = vmatpush1.msra.mxu0 0.0
    %2031 = vmatprep.subr.mxu0 0.0
    %2032 = vmatpush1.msra.mxu0 0.0
    %2033 = vmatprep.subr.mxu0 0.0
    %2034 = vmatpush1.msra.mxu0 0.0
    %2035 = vmatprep.subr.mxu0 0.0
    %2036 = vmatpush1.msra.mxu0 0.0
    %2037 = vmatprep.subr.mxu0 0.0
    %2038 = vmatpush1.msra.mxu0 0.0
    %2039 = vmatprep.subr.mxu0 0.0
    %2040 = vmatpush1.msra.mxu0 0.0
    %2041 = vmatprep.subr.mxu0 0.0
    %2042 = vmatpush1.msra.mxu0 0.0
    %2043 = vmatprep.subr.mxu0 0.0
    %2044 = vmatpush1.msra.mxu0 0.0
    %2045 = vmatprep.subr.mxu0 0.0
    %2046 = vmatpush1.msra.mxu0 0.0
    %2047 = vmatprep.subr.mxu0 0.0
    %2048 = vmatpush1.msra.mxu0 0.0
    %2049 = vmatprep.subr.mxu0 0.0
    %2050 = vmatpush1.msra.mxu0 0.0
    %2051 = vmatprep.subr.mxu0 0.0
    %2052 = vmatpush1.msra.mxu0 0.0
    %2053 = vmatprep.subr.mxu0 0.0
    %2054 = vmatpush1.msra.mxu0 0.0
    %2055 = vmatprep.mubr.f32.mxu0 0.0
    %2056 = vmatmul.mubr.f32.gmra.mrb[0].mxu0 %v1979
    %v2057 = vpop.f32.mrb[0].mxu0
    %v2058 = vadd.f32 %v1970, %v2057
    %v2059 = vpop.f32.mrb[0].mxu0
    %v2060 = vadd.f32 %v1974, %v2059
    %2061 = vmatprep.mubr.f32.mxu0 0.0
    %2062 = vmatmul.mubr.f32.gmra.mrb[0].mxu0 %v1982
    %v2063 = vpop.f32.mrb[0].mxu0
    %v2064 = vadd.f32 %v1970, %v2063
    %v2065 = vpop.f32.mrb[0].mxu0
    %v2066 = vadd.f32 %v1974, %v2065
    %2067 = vdwg.mxu0
    %vm2068 = vcmask 1045504
    %v2069 = vsel %vm2068, %v2064, 0.0
    %v2070 = vadd.f32 %v2058, %v2069
    %v2071 = vrot.slane %v2070, 4
    %v2072 = vadd.f32 %v2070, %v2071
    %v2073 = vrot.slane %v2072, 2
    %v2074 = vadd.f32 %v2072, %v2073
    %v2075 = vrot.slane %v2074, 1
    %v2076 = vadd.f32 %v2074, %v2075
    %v2077 = vsel %vm2068, %v2066, 0.0
    %v2078 = vadd.f32 %v2060, %v2077
    %v2079 = vrot.slane %v2078, 4
    %v2080 = vadd.f32 %v2078, %v2079
    %v2081 = vrot.slane %v2080, 2
    %v2082 = vadd.f32 %v2080, %v2081
    %v2083 = vrot.slane %v2082, 1
    %v2084 = vadd.f32 %v2082, %v2083
    %v2085 = vmul.f32 %v2058, %v2058
    %v2086 = vmul.f32 %v2060, %v2060
    %v2087 = vmul.f32 %v2064, %v2064
    %v2088 = vmul.f32 %v2066, %v2066
    %v2089 = vsel %vm2068, %v2087, 0.0
    %v2090 = vadd.f32 %v2085, %v2089
    %v2091 = vrot.slane %v2090, 4
    %v2092 = vadd.f32 %v2090, %v2091
    %v2093 = vrot.slane %v2092, 2
    %v2094 = vadd.f32 %v2092, %v2093
    %v2095 = vrot.slane %v2094, 1
    %v2096 = vadd.f32 %v2094, %v2095
    %v2097 = vsel %vm2068, %v2088, 0.0
    %v2098 = vadd.f32 %v2086, %v2097
    %v2099 = vrot.slane %v2098, 4
    %v2100 = vadd.f32 %v2098, %v2099
    %v2101 = vrot.slane %v2100, 2
    %v2102 = vadd.f32 %v2100, %v2101
    %v2103 = vrot.slane %v2102, 1
    %v2104 = vadd.f32 %v2102, %v2103
    %vm2105 = vcmask 1040384
    %v2106 = vsel %vm2105, %v2076, %v2096
    %v2107 = vsel %vm2105, %v2084, %v2104
    %v2108 = vld [vmem:[#allocation9] sm:$0xff]
    %v2109 = vld [vmem:[#allocation9 + $0x8] sm:$0xff]
    %v2110 = vld [vmem:[#allocation9 + $0x10] sm:$0xff]
    %v2111 = vld [vmem:[#allocation9 + $0x18] sm:$0xff]
    %v2112 = vld [vmem:[#allocation9 + $0x20] sm:$0xff]
    %v2113 = vld [vmem:[#allocation9 + $0x28] sm:$0xff]
    %v2114 = vld [vmem:[#allocation9 + $0x30] sm:$0xff]
    %v2115 = vld [vmem:[#allocation9 + $0x38] sm:$0xff]
    %v2116 = vld [vmem:[#allocation9 + $0x40] sm:$0xff]
    %v2117 = vld [vmem:[#allocation9 + $0x48] sm:$0xff]
    %v2118 = vld [vmem:[#allocation9 + $0x50] sm:$0xff]
    %v2119 = vld [vmem:[#allocation9 + $0x58] sm:$0xff]
    %v2120 = vld [vmem:[#allocation9 + $0x60] sm:$0xff]
    %v2121 = vld [vmem:[#allocation9 + $0x68] sm:$0xff]
    %v2122 = vld [vmem:[#allocation9 + $0x70] sm:$0xff]
    %v2123 = vld [vmem:[#allocation9 + $0x78] sm:$0xff]
    %v2124 = vld [vmem:[#allocation9 + $0x80] sm:$0xff]
    %v2125 = vld [vmem:[#allocation9 + $0x88] sm:$0xff]
    %v2126 = vld [vmem:[#allocation9 + $0x90] sm:$0xff]
    %v2127 = vld [vmem:[#allocation9 + $0x98] sm:$0xff]
    %v2128 = vld [vmem:[#allocation9 + $0xa0] sm:$0xff]
    %v2129 = vld [vmem:[#allocation9 + $0xa8] sm:$0xff]
    %v2130 = vld [vmem:[#allocation9 + $0xb0] sm:$0xff]
    %v2131 = vld [vmem:[#allocation9 + $0xb8] sm:$0xff]
    %v2132 = vld [vmem:[#allocation9 + $0xc0] sm:$0xff]
    %v2133 = vld [vmem:[#allocation9 + $0xc8] sm:$0xff]
    %v2134 = vld [vmem:[#allocation9 + $0xd0] sm:$0xff]
    %v2135 = vld [vmem:[#allocation9 + $0xd8] sm:$0xff]
    %v2136 = vld [vmem:[#allocation9 + $0xe0] sm:$0xff]
    %v2137 = vld [vmem:[#allocation9 + $0xe8] sm:$0xff]
    %v2138 = vld [vmem:[#allocation9 + $0xf0] sm:$0xff]
    %v2139 = vld [vmem:[#allocation9 + $0xf8] sm:$0xff]
    %2140 = vmatprep.subr.mxu0 0.0
    %2141 = vmatpush1.msra.mxu0 %v2108
    %2142 = vmatprep.subr.mxu0 0.0
    %2143 = vmatpush1.msra.mxu0 %v2109
    %2144 = vmatprep.subr.mxu0 0.0
    %2145 = vmatpush1.msra.mxu0 %v2110
    %2146 = vmatprep.subr.mxu0 0.0
    %2147 = vmatpush1.msra.mxu0 %v2111
    %2148 = vmatprep.subr.mxu0 0.0
    %2149 = vmatpush1.msra.mxu0 %v2112
    %2150 = vmatprep.subr.mxu0 0.0
    %2151 = vmatpush1.msra.mxu0 %v2113
    %2152 = vmatprep.subr.mxu0 0.0
    %2153 = vmatpush1.msra.mxu0 %v2114
    %2154 = vmatprep.subr.mxu0 0.0
    %2155 = vmatpush1.msra.mxu0 %v2115
    %2156 = vmatprep.subr.mxu0 0.0
    %2157 = vmatpush1.msra.mxu0 %v2116
    %2158 = vmatprep.subr.mxu0 0.0
    %2159 = vmatpush1.msra.mxu0 %v2117
    %2160 = vmatprep.subr.mxu0 0.0
    %2161 = vmatpush1.msra.mxu0 %v2118
    %2162 = vmatprep.subr.mxu0 0.0
    %2163 = vmatpush1.msra.mxu0 %v2119
    %2164 = vmatprep.subr.mxu0 0.0
    %2165 = vmatpush1.msra.mxu0 %v2120
    %2166 = vmatprep.subr.mxu0 0.0
    %2167 = vmatpush1.msra.mxu0 %v2121
    %2168 = vmatprep.subr.mxu0 0.0
    %2169 = vmatpush1.msra.mxu0 %v2122
    %2170 = vmatprep.subr.mxu0 0.0
    %2171 = vmatpush1.msra.mxu0 %v2123
    %2172 = vmatprep.subr.mxu0 0.0
    %2173 = vmatpush1.msra.mxu0 %v2124
    %2174 = vmatprep.subr.mxu0 0.0
    %2175 = vmatpush1.msra.mxu0 %v2125
    %2176 = vmatprep.subr.mxu0 0.0
    %2177 = vmatpush1.msra.mxu0 %v2126
    %2178 = vmatprep.subr.mxu0 0.0
    %2179 = vmatpush1.msra.mxu0 %v2127
    %2180 = vmatprep.subr.mxu0 0.0
    %2181 = vmatpush1.msra.mxu0 %v2128
    %2182 = vmatprep.subr.mxu0 0.0
    %2183 = vmatpush1.msra.mxu0 %v2129
    %2184 = vmatprep.subr.mxu0 0.0
    %2185 = vmatpush1.msra.mxu0 %v2130
    %2186 = vmatprep.subr.mxu0 0.0
    %2187 = vmatpush1.msra.mxu0 %v2131
    %2188 = vmatprep.subr.mxu0 0.0
    %2189 = vmatpush1.msra.mxu0 %v2132
    %2190 = vmatprep.subr.mxu0 0.0
    %2191 = vmatpush1.msra.mxu0 %v2133
    %2192 = vmatprep.subr.mxu0 0.0
    %2193 = vmatpush1.msra.mxu0 %v2134
    %2194 = vmatprep.subr.mxu0 0.0
    %2195 = vmatpush1.msra.mxu0 %v2135
    %2196 = vmatprep.subr.mxu0 0.0
    %2197 = vmatpush1.msra.mxu0 %v2136
    %2198 = vmatprep.subr.mxu0 0.0
    %2199 = vmatpush1.msra.mxu0 %v2137
    %2200 = vmatprep.subr.mxu0 0.0
    %2201 = vmatpush1.msra.mxu0 %v2138
    %2202 = vmatprep.subr.mxu0 0.0
    %2203 = vmatpush1.msra.mxu0 %v2139
    %2204 = vmatprep.mubr.f32.mxu0 %v2107
    %2205 = vmatmul.mubr.f32.gmra.mrb[0].mxu0 %v2106
    %v2206 = vpop.f32.mrb[0].mxu0
    %v2207 = vadd.f32 0.0, %v2206
    %v2208 = vpop.f32.mrb[0].mxu0
    %2209 = vdwg.mxu0
    %v2210 = vmul.f32 %v2207, 0.010204081
    %v2211 = vmul.f32 %v2210, %v2210
    %v2213 = vrot.slane %v2211, 7
    %v2215 = vsub.f32 %v2210, %v2213
    %v2216 = vld [vmem:[%s21] sm:$0x1]
    %v2217 = vadd.f32 %v2215, 1e-05
    %v2218 = vrsqrt.pop %v2217
    %v2221 = vunpack.c.l.s4 1966171168
    %v2222 = vunpack.c.0.s8 %v2221
    %v2223 = vlaneseq
    %v2224 = vshrl.u32 %v2223, 7
    %v2225 = vsub.s32 %v2222, %v2224
    %v2226 = vrot.slane %v2218, %v2225
    %v2227 = vcombine.high %v2226, %v2226
    %v2229 = vunpack.c.l.s4 1966171168
    %v2230 = vunpack.c.0.s8 %v2229
    %v2231 = vlaneseq
    %v2232 = vshrl.u32 %v2231, 7
    %v2233 = vsub.s32 %v2230, %v2232
    %v2234 = vrot.slane %v2227, %v2233
    %v2236 = vmul.f32 %v2216, %v2234
    %v2237 = vld [vmem:[%s23] sm:$0x1]
    %v2238 = vmul.f32 %v2210, %v2236
    %v2239 = vsub.f32 %v2237, %v2238
    %v2241 = vlaneseq
    %v2242 = vshrl.u32 %v2241, 7
    %v2243 = vsub.s32 0, %v2242
    %v2244 = vrot.slane %v2239, %v2243
    %v2246 = vsel %vm2105, %v2236, %v2244
    %v2247 = vld [vmem:[#allocation10] sm:$0xff]
    %v2248 = vld [vmem:[#allocation10 + $0x8] sm:$0xff]
    %v2249 = vld [vmem:[#allocation10 + $0x10] sm:$0xff]
    %v2250 = vld [vmem:[#allocation10 + $0x18] sm:$0xff]
    %v2251 = vld [vmem:[#allocation10 + $0x20] sm:$0xff]
    %v2252 = vld [vmem:[#allocation10 + $0x28] sm:$0xff]
    %v2253 = vld [vmem:[#allocation10 + $0x30] sm:$0xff]
    %v2254 = vld [vmem:[#allocation10 + $0x38] sm:$0xff]
    %v2255 = vld [vmem:[#allocation10 + $0x40] sm:$0xff]
    %v2256 = vld [vmem:[#allocation10 + $0x48] sm:$0xff]
    %v2257 = vld [vmem:[#allocation10 + $0x50] sm:$0xff]
    %v2258 = vld [vmem:[#allocation10 + $0x58] sm:$0xff]
    %v2259 = vld [vmem:[#allocation10 + $0x60] sm:$0xff]
    %v2260 = vld [vmem:[#allocation10 + $0x68] sm:$0xff]
    %v2261 = vld [vmem:[#allocation10 + $0x70] sm:$0xff]
    %v2262 = vld [vmem:[#allocation10 + $0x78] sm:$0xff]
    %v2263 = vld [vmem:[#allocation10 + $0x80] sm:$0xff]
    %v2264 = vld [vmem:[#allocation10 + $0x88] sm:$0xff]
    %v2265 = vld [vmem:[#allocation10 + $0x90] sm:$0xff]
    %v2266 = vld [vmem:[#allocation10 + $0x98] sm:$0xff]
    %v2267 = vld [vmem:[#allocation10 + $0xa0] sm:$0xff]
    %v2268 = vld [vmem:[#allocation10 + $0xa8] sm:$0xff]
    %v2269 = vld [vmem:[#allocation10 + $0xb0] sm:$0xff]
    %v2270 = vld [vmem:[#allocation10 + $0xb8] sm:$0xff]
    %v2271 = vld [vmem:[#allocation10 + $0xc0] sm:$0xff]
    %v2272 = vld [vmem:[#allocation10 + $0xc8] sm:$0xff]
    %v2273 = vld [vmem:[#allocation10 + $0xd0] sm:$0xff]
    %v2274 = vld [vmem:[#allocation10 + $0xd8] sm:$0xff]
    %v2275 = vld [vmem:[#allocation10 + $0xe0] sm:$0xff]
    %v2276 = vld [vmem:[#allocation10 + $0xe8] sm:$0xff]
    %v2277 = vld [vmem:[#allocation10 + $0xf0] sm:$0xff]
    %v2278 = vld [vmem:[#allocation10 + $0xf8] sm:$0xff]
    %2279 = vmatprep.subr.mxu0 %v2248
    %2280 = vmatpush1.msra.mxu0 %v2247
    %2281 = vmatprep.subr.mxu0 %v2250
    %2282 = vmatpush1.msra.mxu0 %v2249
    %2283 = vmatprep.subr.mxu0 %v2252
    %2284 = vmatpush1.msra.mxu0 %v2251
    %2285 = vmatprep.subr.mxu0 %v2254
    %2286 = vmatpush1.msra.mxu0 %v2253
    %2287 = vmatprep.subr.mxu0 %v2256
    %2288 = vmatpush1.msra.mxu0 %v2255
    %2289 = vmatprep.subr.mxu0 %v2258
    %2290 = vmatpush1.msra.mxu0 %v2257
    %2291 = vmatprep.subr.mxu0 %v2260
    %2292 = vmatpush1.msra.mxu0 %v2259
    %2293 = vmatprep.subr.mxu0 %v2262
    %2294 = vmatpush1.msra.mxu0 %v2261
    %2295 = vmatprep.subr.mxu0 %v2264
    %2296 = vmatpush1.msra.mxu0 %v2263
    %2297 = vmatprep.subr.mxu0 %v2266
    %2298 = vmatpush1.msra.mxu0 %v2265
    %2299 = vmatprep.subr.mxu0 %v2268
    %2300 = vmatpush1.msra.mxu0 %v2267
    %2301 = vmatprep.subr.mxu0 %v2270
    %2302 = vmatpush1.msra.mxu0 %v2269
    %2303 = vmatprep.subr.mxu0 %v2272
    %2304 = vmatpush1.msra.mxu0 %v2271
    %2305 = vmatprep.subr.mxu0 %v2274
    %2306 = vmatpush1.msra.mxu0 %v2273
    %2307 = vmatprep.subr.mxu0 %v2276
    %2308 = vmatpush1.msra.mxu0 %v2275
    %2309 = vmatprep.subr.mxu0 %v2278
    %2310 = vmatpush1.msra.mxu0 %v2277
    %2311 = vmatprep.subr.mxu0 0.0
    %2312 = vmatpush1.msra.mxu0 0.0
    %2313 = vmatprep.subr.mxu0 0.0
    %2314 = vmatpush1.msra.mxu0 0.0
    %2315 = vmatprep.subr.mxu0 0.0
    %2316 = vmatpush1.msra.mxu0 0.0
    %2317 = vmatprep.subr.mxu0 0.0
    %2318 = vmatpush1.msra.mxu0 0.0
    %2319 = vmatprep.subr.mxu0 0.0
    %2320 = vmatpush1.msra.mxu0 0.0
    %2321 = vmatprep.subr.mxu0 0.0
    %2322 = vmatpush1.msra.mxu0 0.0
    %2323 = vmatprep.subr.mxu0 0.0
    %2324 = vmatpush1.msra.mxu0 0.0
    %2325 = vmatprep.subr.mxu0 0.0
    %2326 = vmatpush1.msra.mxu0 0.0
    %2327 = vmatprep.subr.mxu0 0.0
    %2328 = vmatpush1.msra.mxu0 0.0
    %2329 = vmatprep.subr.mxu0 0.0
    %2330 = vmatpush1.msra.mxu0 0.0
    %2331 = vmatprep.subr.mxu0 0.0
    %2332 = vmatpush1.msra.mxu0 0.0
    %2333 = vmatprep.subr.mxu0 0.0
    %2334 = vmatpush1.msra.mxu0 0.0
    %2335 = vmatprep.subr.mxu0 0.0
    %2336 = vmatpush1.msra.mxu0 0.0
    %2337 = vmatprep.subr.mxu0 0.0
    %2338 = vmatpush1.msra.mxu0 0.0
    %2339 = vmatprep.subr.mxu0 0.0
    %2340 = vmatpush1.msra.mxu0 0.0
    %2341 = vmatprep.subr.mxu0 0.0
    %2342 = vmatpush1.msra.mxu0 0.0
    %2343 = vmatprep.mubr.f32.mxu0 0.0
    %2344 = vmatmul.mubr.f32.gmra.mrb[0].mxu0 %v2246
    %v2345 = vpop.f32.mrb[0].mxu0
    %v2346 = vadd.f32 0.0, %v2345
    %v2347 = vpop.f32.mrb[0].mxu0
    %v2348 = vadd.f32 0.0, %v2347
    %2349 = vdwg.mxu0
    %v2350 = vlaneseq
    %v2351 = vshrl.u32 %v2350, 7
    %v2352 = vsub.s32 0, %v2351
    %v2353 = vrot.slane %v2346, %v2352
    %v2354 = vlaneseq
    %v2355 = vshrl.u32 %v2354, 7
    %v2356 = vsub.s32 0, %v2355
    %v2357 = vrot.slane %v2348, %v2356
    %v2358 = vmul.f32 %v2058, %v2353
    %v2359 = vmul.f32 %v2060, %v2357
    %v2360 = vmul.f32 %v2064, %v2353
    %v2361 = vmul.f32 %v2066, %v2357
    %v2362 = vlaneseq
    %v2363 = vshrl.u32 %v2362, 7
    %v2364 = vsub.s32 1, %v2363
    %v2365 = vrot.slane %v2346, %v2364
    %v2366 = vlaneseq
    %v2367 = vshrl.u32 %v2366, 7
    %v2368 = vsub.s32 1, %v2367
    %v2369 = vrot.slane %v2348, %v2368
    %v2370 = vadd.f32 %v2358, %v2365
    %v2371 = vadd.f32 %v2359, %v2369
    %v2372 = vadd.f32 %v2360, %v2365
    %v2373 = vadd.f32 %v2361, %v2369
    %v2374 = vmax.f32 %v2370, 0.0
    %v2375 = vmax.f32 %v2371, 0.0
    %v2376 = vmax.f32 %v2372, 0.0
    %v2377 = vmax.f32 %v2373, 0.0
    %v2378 = vpack.c.bf16 %v2376, %v2374
    %v2379 = vpack.c.bf16 %v2377, %v2375
    %v2380 = vld [vmem:[#allocation12] sm:$0xff]
    %v2381 = vld [vmem:[#allocation12 + $0x8] sm:$0xff]
    %v2382 = vld [vmem:[#allocation12 + $0x10] sm:$0xff]
    %v2383 = vld [vmem:[#allocation12 + $0x18] sm:$0xff]
    %v2384 = vld [vmem:[#allocation12 + $0x20] sm:$0xff]
    %v2385 = vld [vmem:[#allocation12 + $0x28] sm:$0xff]
    %v2386 = vld [vmem:[#allocation12 + $0x30] sm:$0xff]
    %v2387 = vld [vmem:[#allocation12 + $0x38] sm:$0xff]
    %v2388 = vld [vmem:[#allocation12 + $0x40] sm:$0xff]
    %v2389 = vld [vmem:[#allocation12 + $0x48] sm:$0xff]
    %v2390 = vld [vmem:[#allocation12 + $0x50] sm:$0xff]
    %v2391 = vld [vmem:[#allocation12 + $0x58] sm:$0xff]
    %v2392 = vld [vmem:[#allocation12 + $0x60] sm:$0xff]
    %v2393 = vld [vmem:[#allocation12 + $0x68] sm:$0xff]
    %v2394 = vld [vmem:[#allocation12 + $0x70] sm:$0xff]
    %v2395 = vld [vmem:[#allocation12 + $0x78] sm:$0xff]
    %v2396 = vld [vmem:[#allocation12 + $0x80] sm:$0xff]
    %v2397 = vld [vmem:[#allocation12 + $0x88] sm:$0xff]
    %v2398 = vld [vmem:[#allocation12 + $0x90] sm:$0xff]
    %v2399 = vld [vmem:[#allocation12 + $0x98] sm:$0xff]
    %v2400 = vld [vmem:[#allocation12 + $0xa0] sm:$0xff]
    %v2401 = vld [vmem:[#allocation12 + $0xa8] sm:$0xff]
    %v2402 = vld [vmem:[#allocation12 + $0xb0] sm:$0xff]
    %v2403 = vld [vmem:[#allocation12 + $0xb8] sm:$0xff]
    %v2404 = vld [vmem:[#allocation12 + $0xc0] sm:$0xff]
    %v2405 = vld [vmem:[#allocation12 + $0xc8] sm:$0xff]
    %v2406 = vld [vmem:[#allocation12 + $0xd0] sm:$0xff]
    %v2407 = vld [vmem:[#allocation12 + $0xd8] sm:$0xff]
    %v2408 = vld [vmem:[#allocation12 + $0xe0] sm:$0xff]
    %v2409 = vld [vmem:[#allocation12 + $0xe8] sm:$0xff]
    %v2410 = vld [vmem:[#allocation12 + $0xf0] sm:$0xff]
    %v2411 = vld [vmem:[#allocation12 + $0xf8] sm:$0xff]
    %v2412 = vld [vmem:[#allocation12 + $0x100] sm:$0xff]
    %v2413 = vld [vmem:[#allocation12 + $0x108] sm:$0xff]
    %v2414 = vld [vmem:[#allocation12 + $0x110] sm:$0xff]
    %v2415 = vld [vmem:[#allocation12 + $0x118] sm:$0xff]
    %v2416 = vld [vmem:[#allocation12 + $0x120] sm:$0xff]
    %v2417 = vld [vmem:[#allocation12 + $0x128] sm:$0xff]
    %v2418 = vld [vmem:[#allocation12 + $0x130] sm:$0xff]
    %v2419 = vld [vmem:[#allocation12 + $0x138] sm:$0xff]
    %v2420 = vld [vmem:[#allocation12 + $0x140] sm:$0xff]
    %v2421 = vld [vmem:[#allocation12 + $0x148] sm:$0xff]
    %v2422 = vld [vmem:[#allocation12 + $0x150] sm:$0xff]
    %v2423 = vld [vmem:[#allocation12 + $0x158] sm:$0xff]
    %v2424 = vld [vmem:[#allocation12 + $0x160] sm:$0xff]
    %v2425 = vld [vmem:[#allocation12 + $0x168] sm:$0xff]
    %v2426 = vld [vmem:[#allocation12 + $0x170] sm:$0xff]
    %v2427 = vld [vmem:[#allocation12 + $0x178] sm:$0xff]
    %v2428 = vld [vmem:[#allocation12 + $0x180] sm:$0xff]
    %v2429 = vld [vmem:[#allocation12 + $0x188] sm:$0xff]
    %v2430 = vld [vmem:[#allocation12 + $0x190] sm:$0xff]
    %v2431 = vld [vmem:[#allocation12 + $0x198] sm:$0xff]
    %v2432 = vld [vmem:[#allocation12 + $0x1a0] sm:$0xff]
    %v2433 = vld [vmem:[#allocation12 + $0x1a8] sm:$0xff]
    %v2434 = vld [vmem:[#allocation12 + $0x1b0] sm:$0xff]
    %v2435 = vld [vmem:[#allocation12 + $0x1b8] sm:$0xff]
    %v2436 = vld [vmem:[#allocation12 + $0x1c0] sm:$0xff]
    %v2437 = vld [vmem:[#allocation12 + $0x1c8] sm:$0xff]
    %v2438 = vld [vmem:[#allocation12 + $0x1d0] sm:$0xff]
    %v2439 = vld [vmem:[#allocation12 + $0x1d8] sm:$0xff]
    %v2440 = vld [vmem:[#allocation12 + $0x1e0] sm:$0xff]
    %v2441 = vld [vmem:[#allocation12 + $0x1e8] sm:$0xff]
    %v2442 = vld [vmem:[#allocation12 + $0x1f0] sm:$0xff]
    %v2443 = vld [vmem:[#allocation12 + $0x1f8] sm:$0xff]
    %v2444 = vld [vmem:[#allocation12 + $0x200] sm:$0xff]
    %v2445 = vld [vmem:[#allocation12 + $0x208] sm:$0xff]
    %v2446 = vld [vmem:[#allocation12 + $0x210] sm:$0xff]
    %v2447 = vld [vmem:[#allocation12 + $0x218] sm:$0xff]
    %v2448 = vld [vmem:[#allocation12 + $0x220] sm:$0xff]
    %v2449 = vld [vmem:[#allocation12 + $0x228] sm:$0xff]
    %v2450 = vld [vmem:[#allocation12 + $0x230] sm:$0xff]
    %v2451 = vld [vmem:[#allocation12 + $0x238] sm:$0xff]
    %v2452 = vld [vmem:[#allocation12 + $0x240] sm:$0xff]
    %v2453 = vld [vmem:[#allocation12 + $0x248] sm:$0xff]
    %v2454 = vld [vmem:[#allocation12 + $0x250] sm:$0xff]
    %v2455 = vld [vmem:[#allocation12 + $0x258] sm:$0xff]
    %v2456 = vld [vmem:[#allocation12 + $0x260] sm:$0xff]
    %v2457 = vld [vmem:[#allocation12 + $0x268] sm:$0xff]
    %v2458 = vld [vmem:[#allocation12 + $0x270] sm:$0xff]
    %v2459 = vld [vmem:[#allocation12 + $0x278] sm:$0xff]
    %v2460 = vld [vmem:[#allocation12 + $0x280] sm:$0xff]
    %v2461 = vld [vmem:[#allocation12 + $0x288] sm:$0xff]
    %v2462 = vld [vmem:[#allocation12 + $0x290] sm:$0xff]
    %v2463 = vld [vmem:[#allocation12 + $0x298] sm:$0xff]
    %v2464 = vld [vmem:[#allocation12 + $0x2a0] sm:$0xff]
    %v2465 = vld [vmem:[#allocation12 + $0x2a8] sm:$0xff]
    %v2466 = vld [vmem:[#allocation12 + $0x2b0] sm:$0xff]
    %v2467 = vld [vmem:[#allocation12 + $0x2b8] sm:$0xff]
    %v2468 = vld [vmem:[#allocation12 + $0x2c0] sm:$0xff]
    %v2469 = vld [vmem:[#allocation12 + $0x2c8] sm:$0xff]
    %v2470 = vld [vmem:[#allocation12 + $0x2d0] sm:$0xff]
    %v2471 = vld [vmem:[#allocation12 + $0x2d8] sm:$0xff]
    %v2472 = vld [vmem:[#allocation12 + $0x2e0] sm:$0xff]
    %v2473 = vld [vmem:[#allocation12 + $0x2e8] sm:$0xff]
    %v2474 = vld [vmem:[#allocation12 + $0x2f0] sm:$0xff]
    %v2475 = vld [vmem:[#allocation12 + $0x2f8] sm:$0xff]
    %v2572 = vunpack.c.l.b16 %v2380
    %v2573 = vunpack.c.h.b16 %v2380
    %v2574 = vunpack.c.l.b16 %v2381
    %v2575 = vunpack.c.h.b16 %v2381
    %v2576 = vunpack.c.l.b16 %v2382
    %v2577 = vunpack.c.h.b16 %v2382
    %v2578 = vunpack.c.l.b16 %v2383
    %v2579 = vunpack.c.h.b16 %v2383
    %v2580 = vunpack.c.l.b16 %v2384
    %v2581 = vunpack.c.h.b16 %v2384
    %v2582 = vunpack.c.l.b16 %v2385
    %v2583 = vunpack.c.h.b16 %v2385
    %v2584 = vunpack.c.l.b16 %v2386
    %v2585 = vunpack.c.h.b16 %v2386
    %v2586 = vunpack.c.l.b16 %v2387
    %v2587 = vunpack.c.h.b16 %v2387
    %v2588 = vunpack.c.l.b16 %v2388
    %v2589 = vunpack.c.h.b16 %v2388
    %v2590 = vunpack.c.l.b16 %v2389
    %v2591 = vunpack.c.h.b16 %v2389
    %v2592 = vunpack.c.l.b16 %v2390
    %v2593 = vunpack.c.h.b16 %v2390
    %v2594 = vunpack.c.l.b16 %v2391
    %v2595 = vunpack.c.h.b16 %v2391
    %v2596 = vunpack.c.l.b16 %v2392
    %v2597 = vunpack.c.h.b16 %v2392
    %v2598 = vunpack.c.l.b16 %v2393
    %v2599 = vunpack.c.h.b16 %v2393
    %v2600 = vunpack.c.l.b16 %v2394
    %v2601 = vunpack.c.h.b16 %v2394
    %v2602 = vunpack.c.l.b16 %v2395
    %v2603 = vunpack.c.h.b16 %v2395
    %v2604 = vunpack.c.l.b16 %v2396
    %v2605 = vunpack.c.h.b16 %v2396
    %v2606 = vunpack.c.l.b16 %v2397
    %v2607 = vunpack.c.h.b16 %v2397
    %v2608 = vunpack.c.l.b16 %v2398
    %v2609 = vunpack.c.h.b16 %v2398
    %v2610 = vunpack.c.l.b16 %v2399
    %v2611 = vunpack.c.h.b16 %v2399
    %v2612 = vunpack.c.l.b16 %v2400
    %v2613 = vunpack.c.h.b16 %v2400
    %v2614 = vunpack.c.l.b16 %v2401
    %v2615 = vunpack.c.h.b16 %v2401
    %v2616 = vunpack.c.l.b16 %v2402
    %v2617 = vunpack.c.h.b16 %v2402
    %v2618 = vunpack.c.l.b16 %v2403
    %v2619 = vunpack.c.h.b16 %v2403
    %v2620 = vunpack.c.l.b16 %v2404
    %v2621 = vunpack.c.h.b16 %v2404
    %v2622 = vunpack.c.l.b16 %v2405
    %v2623 = vunpack.c.h.b16 %v2405
    %v2624 = vunpack.c.l.b16 %v2406
    %v2625 = vunpack.c.h.b16 %v2406
    %v2626 = vunpack.c.l.b16 %v2407
    %v2627 = vunpack.c.h.b16 %v2407
    %v2628 = vunpack.c.l.b16 %v2408
    %v2629 = vunpack.c.h.b16 %v2408
    %v2630 = vunpack.c.l.b16 %v2409
    %v2631 = vunpack.c.h.b16 %v2409
    %v2632 = vunpack.c.l.b16 %v2410
    %v2633 = vunpack.c.h.b16 %v2410
    %v2634 = vunpack.c.l.b16 %v2411
    %v2635 = vunpack.c.h.b16 %v2411
    %v2636 = vunpack.c.l.b16 %v2412
    %v2637 = vunpack.c.h.b16 %v2412
    %v2638 = vunpack.c.l.b16 %v2413
    %v2639 = vunpack.c.h.b16 %v2413
    %v2640 = vunpack.c.l.b16 %v2414
    %v2641 = vunpack.c.h.b16 %v2414
    %v2642 = vunpack.c.l.b16 %v2415
    %v2643 = vunpack.c.h.b16 %v2415
    %v2644 = vunpack.c.l.b16 %v2416
    %v2645 = vunpack.c.h.b16 %v2416
    %v2646 = vunpack.c.l.b16 %v2417
    %v2647 = vunpack.c.h.b16 %v2417
    %v2648 = vunpack.c.l.b16 %v2418
    %v2649 = vunpack.c.h.b16 %v2418
    %v2650 = vunpack.c.l.b16 %v2419
    %v2651 = vunpack.c.h.b16 %v2419
    %v2652 = vunpack.c.l.b16 %v2420
    %v2653 = vunpack.c.h.b16 %v2420
    %v2654 = vunpack.c.l.b16 %v2421
    %v2655 = vunpack.c.h.b16 %v2421
    %v2656 = vunpack.c.l.b16 %v2422
    %v2657 = vunpack.c.h.b16 %v2422
    %v2658 = vunpack.c.l.b16 %v2423
    %v2659 = vunpack.c.h.b16 %v2423
    %v2660 = vunpack.c.l.b16 %v2424
    %v2661 = vunpack.c.h.b16 %v2424
    %v2662 = vunpack.c.l.b16 %v2425
    %v2663 = vunpack.c.h.b16 %v2425
    %v2664 = vunpack.c.l.b16 %v2426
    %v2665 = vunpack.c.h.b16 %v2426
    %v2666 = vunpack.c.l.b16 %v2427
    %v2667 = vunpack.c.h.b16 %v2427
    %v2668 = vunpack.c.l.b16 %v2428
    %v2669 = vunpack.c.h.b16 %v2428
    %v2670 = vunpack.c.l.b16 %v2429
    %v2671 = vunpack.c.h.b16 %v2429
    %v2672 = vunpack.c.l.b16 %v2430
    %v2673 = vunpack.c.h.b16 %v2430
    %v2674 = vunpack.c.l.b16 %v2431
    %v2675 = vunpack.c.h.b16 %v2431
    %v2676 = vunpack.c.l.b16 %v2432
    %v2677 = vunpack.c.h.b16 %v2432
    %v2678 = vunpack.c.l.b16 %v2433
    %v2679 = vunpack.c.h.b16 %v2433
    %v2680 = vunpack.c.l.b16 %v2434
    %v2681 = vunpack.c.h.b16 %v2434
    %v2682 = vunpack.c.l.b16 %v2435
    %v2683 = vunpack.c.h.b16 %v2435
    %v2684 = vunpack.c.l.b16 %v2436
    %v2685 = vunpack.c.h.b16 %v2436
    %v2686 = vunpack.c.l.b16 %v2437
    %v2687 = vunpack.c.h.b16 %v2437
    %v2688 = vunpack.c.l.b16 %v2438
    %v2689 = vunpack.c.h.b16 %v2438
    %v2690 = vunpack.c.l.b16 %v2439
    %v2691 = vunpack.c.h.b16 %v2439
    %v2692 = vunpack.c.l.b16 %v2440
    %v2693 = vunpack.c.h.b16 %v2440
    %v2694 = vunpack.c.l.b16 %v2441
    %v2695 = vunpack.c.h.b16 %v2441
    %v2696 = vunpack.c.l.b16 %v2442
    %v2697 = vunpack.c.h.b16 %v2442
    %v2698 = vunpack.c.l.b16 %v2443
    %v2699 = vunpack.c.h.b16 %v2443
    %v2700 = vunpack.c.l.b16 %v2444
    %v2701 = vunpack.c.h.b16 %v2444
    %v2702 = vunpack.c.l.b16 %v2445
    %v2703 = vunpack.c.h.b16 %v2445
    %v2704 = vunpack.c.l.b16 %v2446
    %v2705 = vunpack.c.h.b16 %v2446
    %v2706 = vunpack.c.l.b16 %v2447
    %v2707 = vunpack.c.h.b16 %v2447
    %v2708 = vunpack.c.l.b16 %v2448
    %v2709 = vunpack.c.h.b16 %v2448
    %v2710 = vunpack.c.l.b16 %v2449
    %v2711 = vunpack.c.h.b16 %v2449
    %v2712 = vunpack.c.l.b16 %v2450
    %v2713 = vunpack.c.h.b16 %v2450
    %v2714 = vunpack.c.l.b16 %v2451
    %v2715 = vunpack.c.h.b16 %v2451
    %v2716 = vunpack.c.l.b16 %v2452
    %v2717 = vunpack.c.h.b16 %v2452
    %v2718 = vunpack.c.l.b16 %v2453
    %v2719 = vunpack.c.h.b16 %v2453
    %v2720 = vunpack.c.l.b16 %v2454
    %v2721 = vunpack.c.h.b16 %v2454
    %v2722 = vunpack.c.l.b16 %v2455
    %v2723 = vunpack.c.h.b16 %v2455
    %v2724 = vunpack.c.l.b16 %v2456
    %v2725 = vunpack.c.h.b16 %v2456
    %v2726 = vunpack.c.l.b16 %v2457
    %v2727 = vunpack.c.h.b16 %v2457
    %v2728 = vunpack.c.l.b16 %v2458
    %v2729 = vunpack.c.h.b16 %v2458
    %v2730 = vunpack.c.l.b16 %v2459
    %v2731 = vunpack.c.h.b16 %v2459
    %v2732 = vunpack.c.l.b16 %v2460
    %v2733 = vunpack.c.h.b16 %v2460
    %v2734 = vunpack.c.l.b16 %v2461
    %v2735 = vunpack.c.h.b16 %v2461
    %v2736 = vunpack.c.l.b16 %v2462
    %v2737 = vunpack.c.h.b16 %v2462
    %v2738 = vunpack.c.l.b16 %v2463
    %v2739 = vunpack.c.h.b16 %v2463
    %v2740 = vunpack.c.l.b16 %v2464
    %v2741 = vunpack.c.h.b16 %v2464
    %v2742 = vunpack.c.l.b16 %v2465
    %v2743 = vunpack.c.h.b16 %v2465
    %v2744 = vunpack.c.l.b16 %v2466
    %v2745 = vunpack.c.h.b16 %v2466
    %v2746 = vunpack.c.l.b16 %v2467
    %v2747 = vunpack.c.h.b16 %v2467
    %v2748 = vunpack.c.l.b16 %v2468
    %v2749 = vunpack.c.h.b16 %v2468
    %v2750 = vunpack.c.l.b16 %v2469
    %v2751 = vunpack.c.h.b16 %v2469
    %v2752 = vunpack.c.l.b16 %v2470
    %v2753 = vunpack.c.h.b16 %v2470
    %v2754 = vunpack.c.l.b16 %v2471
    %v2755 = vunpack.c.h.b16 %v2471
    %v2756 = vunpack.c.l.b16 %v2472
    %v2757 = vunpack.c.h.b16 %v2472
    %v2758 = vunpack.c.l.b16 %v2473
    %v2759 = vunpack.c.h.b16 %v2473
    %v2760 = vunpack.c.l.b16 %v2474
    %v2761 = vunpack.c.h.b16 %v2474
    %v2762 = vunpack.c.l.b16 %v2475
    %v2763 = vunpack.c.h.b16 %v2475
    %v2764 = vpack.c.b16 %v2578, %v2572
    %v2765 = vpack.c.b16 %v2579, %v2573
    %v2766 = vpack.c.b16 %v2580, %v2574
    %v2767 = vpack.c.b16 %v2581, %v2575
    %v2768 = vpack.c.b16 %v2582, %v2576
    %v2769 = vpack.c.b16 %v2583, %v2577
    %v2770 = vpack.c.b16 %v2590, %v2584
    %v2771 = vpack.c.b16 %v2591, %v2585
    %v2772 = vpack.c.b16 %v2592, %v2586
    %v2773 = vpack.c.b16 %v2593, %v2587
    %v2774 = vpack.c.b16 %v2594, %v2588
    %v2775 = vpack.c.b16 %v2595, %v2589
    %v2776 = vpack.c.b16 %v2602, %v2596
    %v2777 = vpack.c.b16 %v2603, %v2597
    %v2778 = vpack.c.b16 %v2604, %v2598
    %v2779 = vpack.c.b16 %v2605, %v2599
    %v2780 = vpack.c.b16 %v2606, %v2600
    %v2781 = vpack.c.b16 %v2607, %v2601
    %v2782 = vpack.c.b16 %v2614, %v2608
    %v2783 = vpack.c.b16 %v2615, %v2609
    %v2784 = vpack.c.b16 %v2616, %v2610
    %v2785 = vpack.c.b16 %v2617, %v2611
    %v2786 = vpack.c.b16 %v2618, %v2612
    %v2787 = vpack.c.b16 %v2619, %v2613
    %v2788 = vpack.c.b16 %v2626, %v2620
    %v2789 = vpack.c.b16 %v2627, %v2621
    %v2790 = vpack.c.b16 %v2628, %v2622
    %v2791 = vpack.c.b16 %v2629, %v2623
    %v2792 = vpack.c.b16 %v2630, %v2624
    %v2793 = vpack.c.b16 %v2631, %v2625
    %v2794 = vpack.c.b16 %v2638, %v2632
    %v2795 = vpack.c.b16 %v2639, %v2633
    %v2796 = vpack.c.b16 %v2640, %v2634
    %v2797 = vpack.c.b16 %v2641, %v2635
    %v2798 = vpack.c.b16 %v2642, %v2636
    %v2799 = vpack.c.b16 %v2643, %v2637
    %v2800 = vpack.c.b16 %v2650, %v2644
    %v2801 = vpack.c.b16 %v2651, %v2645
    %v2802 = vpack.c.b16 %v2652, %v2646
    %v2803 = vpack.c.b16 %v2653, %v2647
    %v2804 = vpack.c.b16 %v2654, %v2648
    %v2805 = vpack.c.b16 %v2655, %v2649
    %v2806 = vpack.c.b16 %v2662, %v2656
    %v2807 = vpack.c.b16 %v2663, %v2657
    %v2808 = vpack.c.b16 %v2664, %v2658
    %v2809 = vpack.c.b16 %v2665, %v2659
    %v2810 = vpack.c.b16 %v2666, %v2660
    %v2811 = vpack.c.b16 %v2667, %v2661
    %v2812 = vpack.c.b16 %v2674, %v2668
    %v2813 = vpack.c.b16 %v2675, %v2669
    %v2814 = vpack.c.b16 %v2676, %v2670
    %v2815 = vpack.c.b16 %v2677, %v2671
    %v2816 = vpack.c.b16 %v2678, %v2672
    %v2817 = vpack.c.b16 %v2679, %v2673
    %v2818 = vpack.c.b16 %v2686, %v2680
    %v2819 = vpack.c.b16 %v2687, %v2681
    %v2820 = vpack.c.b16 %v2688, %v2682
    %v2821 = vpack.c.b16 %v2689, %v2683
    %v2822 = vpack.c.b16 %v2690, %v2684
    %v2823 = vpack.c.b16 %v2691, %v2685
    %v2824 = vpack.c.b16 %v2698, %v2692
    %v2825 = vpack.c.b16 %v2699, %v2693
    %v2826 = vpack.c.b16 %v2700, %v2694
    %v2827 = vpack.c.b16 %v2701, %v2695
    %v2828 = vpack.c.b16 %v2702, %v2696
    %v2829 = vpack.c.b16 %v2703, %v2697
    %v2830 = vpack.c.b16 %v2710, %v2704
    %v2831 = vpack.c.b16 %v2711, %v2705
    %v2832 = vpack.c.b16 %v2712, %v2706
    %v2833 = vpack.c.b16 %v2713, %v2707
    %v2834 = vpack.c.b16 %v2714, %v2708
    %v2835 = vpack.c.b16 %v2715, %v2709
    %v2836 = vpack.c.b16 %v2722, %v2716
    %v2837 = vpack.c.b16 %v2723, %v2717
    %v2838 = vpack.c.b16 %v2724, %v2718
    %v2839 = vpack.c.b16 %v2725, %v2719
    %v2840 = vpack.c.b16 %v2726, %v2720
    %v2841 = vpack.c.b16 %v2727, %v2721
    %v2842 = vpack.c.b16 %v2734, %v2728
    %v2843 = vpack.c.b16 %v2735, %v2729
    %v2844 = vpack.c.b16 %v2736, %v2730
    %v2845 = vpack.c.b16 %v2737, %v2731
    %v2846 = vpack.c.b16 %v2738, %v2732
    %v2847 = vpack.c.b16 %v2739, %v2733
    %v2848 = vpack.c.b16 %v2746, %v2740
    %v2849 = vpack.c.b16 %v2747, %v2741
    %v2850 = vpack.c.b16 %v2748, %v2742
    %v2851 = vpack.c.b16 %v2749, %v2743
    %v2852 = vpack.c.b16 %v2750, %v2744
    %v2853 = vpack.c.b16 %v2751, %v2745
    %v2854 = vpack.c.b16 %v2758, %v2752
    %v2855 = vpack.c.b16 %v2759, %v2753
    %v2856 = vpack.c.b16 %v2760, %v2754
    %v2857 = vpack.c.b16 %v2761, %v2755
    %v2858 = vpack.c.b16 %v2762, %v2756
    %v2859 = vpack.c.b16 %v2763, %v2757
    %2956 = vmatprep.subr.bf16.mxu0 %v2765
    %2957 = vmatpush1.bf16.msra.mxu0 %v2764
    %2958 = vmatprep.subr.bf16.mxu0 %v2771
    %2959 = vmatpush1.bf16.msra.mxu0 %v2770
    %2960 = vmatprep.subr.bf16.mxu0 %v2777
    %2961 = vmatpush1.bf16.msra.mxu0 %v2776
    %2962 = vmatprep.subr.bf16.mxu0 %v2783
    %2963 = vmatpush1.bf16.msra.mxu0 %v2782
    %2964 = vmatprep.subr.bf16.mxu0 %v2789
    %2965 = vmatpush1.bf16.msra.mxu0 %v2788
    %2966 = vmatprep.subr.bf16.mxu0 %v2795
    %2967 = vmatpush1.bf16.msra.mxu0 %v2794
    %2968 = vmatprep.subr.bf16.mxu0 %v2801
    %2969 = vmatpush1.bf16.msra.mxu0 %v2800
    %2970 = vmatprep.subr.bf16.mxu0 %v2807
    %2971 = vmatpush1.bf16.msra.mxu0 %v2806
    %2972 = vmatprep.subr.bf16.mxu0 %v2813
    %2973 = vmatpush1.bf16.msra.mxu0 %v2812
    %2974 = vmatprep.subr.bf16.mxu0 %v2819
    %2975 = vmatpush1.bf16.msra.mxu0 %v2818
    %2976 = vmatprep.subr.bf16.mxu0 %v2825
    %2977 = vmatpush1.bf16.msra.mxu0 %v2824
    %2978 = vmatprep.subr.bf16.mxu0 %v2831
    %2979 = vmatpush1.bf16.msra.mxu0 %v2830
    %2980 = vmatprep.subr.bf16.mxu0 %v2837
    %2981 = vmatpush1.bf16.msra.mxu0 %v2836
    %2982 = vmatprep.subr.bf16.mxu0 %v2843
    %2983 = vmatpush1.bf16.msra.mxu0 %v2842
    %2984 = vmatprep.subr.bf16.mxu0 %v2849
    %2985 = vmatpush1.bf16.msra.mxu0 %v2848
    %2986 = vmatprep.subr.bf16.mxu0 %v2855
    %2987 = vmatpush1.bf16.msra.mxu0 %v2854
    %2988 = vmatprep.mubr.bf16.mxu0 %v2379
    %2989 = vmatmul.mubr.bf16.gmra.mrb[0].mxu0 %v2378
    %v2990 = vpop.f32.mrb[0].mxu0
    %v2991 = vadd.f32 0.0, %v2990
    %v2992 = vpop.f32.mrb[0].mxu0
    %v2993 = vadd.f32 0.0, %v2992
    %v2994 = vpop.f32.mrb[0].mxu0
    %v2995 = vadd.f32 0.0, %v2994
    %v2996 = vpop.f32.mrb[0].mxu0
    %v2997 = vadd.f32 0.0, %v2996
    %2998 = vdwg.mxu0
    %2999 = vmatprep.subr.bf16.mxu0 %v2767
    %3000 = vmatpush1.bf16.msra.mxu0 %v2766
    %3001 = vmatprep.subr.bf16.mxu0 %v2773
    %3002 = vmatpush1.bf16.msra.mxu0 %v2772
    %3003 = vmatprep.subr.bf16.mxu0 %v2779
    %3004 = vmatpush1.bf16.msra.mxu0 %v2778
    %3005 = vmatprep.subr.bf16.mxu0 %v2785
    %3006 = vmatpush1.bf16.msra.mxu0 %v2784
    %3007 = vmatprep.subr.bf16.mxu0 %v2791
    %3008 = vmatpush1.bf16.msra.mxu0 %v2790
    %3009 = vmatprep.subr.bf16.mxu0 %v2797
    %3010 = vmatpush1.bf16.msra.mxu0 %v2796
    %3011 = vmatprep.subr.bf16.mxu0 %v2803
    %3012 = vmatpush1.bf16.msra.mxu0 %v2802
    %3013 = vmatprep.subr.bf16.mxu0 %v2809
    %3014 = vmatpush1.bf16.msra.mxu0 %v2808
    %3015 = vmatprep.subr.bf16.mxu0 %v2815
    %3016 = vmatpush1.bf16.msra.mxu0 %v2814
    %3017 = vmatprep.subr.bf16.mxu0 %v2821
    %3018 = vmatpush1.bf16.msra.mxu0 %v2820
    %3019 = vmatprep.subr.bf16.mxu0 %v2827
    %3020 = vmatpush1.bf16.msra.mxu0 %v2826
    %3021 = vmatprep.subr.bf16.mxu0 %v2833
    %3022 = vmatpush1.bf16.msra.mxu0 %v2832
    %3023 = vmatprep.subr.bf16.mxu0 %v2839
    %3024 = vmatpush1.bf16.msra.mxu0 %v2838
    %3025 = vmatprep.subr.bf16.mxu0 %v2845
    %3026 = vmatpush1.bf16.msra.mxu0 %v2844
    %3027 = vmatprep.subr.bf16.mxu0 %v2851
    %3028 = vmatpush1.bf16.msra.mxu0 %v2850
    %3029 = vmatprep.subr.bf16.mxu0 %v2857
    %3030 = vmatpush1.bf16.msra.mxu0 %v2856
    %3031 = vmatprep.mubr.bf16.mxu0 %v2379
    %3032 = vmatmul.mubr.bf16.gmra.mrb[0].mxu0 %v2378
    %v3033 = vpop.f32.mrb[0].mxu0
    %v3034 = vadd.f32 0.0, %v3033
    %v3035 = vpop.f32.mrb[0].mxu0
    %v3036 = vadd.f32 0.0, %v3035
    %v3037 = vpop.f32.mrb[0].mxu0
    %v3038 = vadd.f32 0.0, %v3037
    %v3039 = vpop.f32.mrb[0].mxu0
    %v3040 = vadd.f32 0.0, %v3039
    %3041 = vdwg.mxu0
    %3042 = vmatprep.subr.bf16.mxu0 %v2769
    %3043 = vmatpush1.bf16.msra.mxu0 %v2768
    %3044 = vmatprep.subr.bf16.mxu0 %v2775
    %3045 = vmatpush1.bf16.msra.mxu0 %v2774
    %3046 = vmatprep.subr.bf16.mxu0 %v2781
    %3047 = vmatpush1.bf16.msra.mxu0 %v2780
    %3048 = vmatprep.subr.bf16.mxu0 %v2787
    %3049 = vmatpush1.bf16.msra.mxu0 %v2786
    %3050 = vmatprep.subr.bf16.mxu0 %v2793
    %3051 = vmatpush1.bf16.msra.mxu0 %v2792
    %3052 = vmatprep.subr.bf16.mxu0 %v2799
    %3053 = vmatpush1.bf16.msra.mxu0 %v2798
    %3054 = vmatprep.subr.bf16.mxu0 %v2805
    %3055 = vmatpush1.bf16.msra.mxu0 %v2804
    %3056 = vmatprep.subr.bf16.mxu0 %v2811
    %3057 = vmatpush1.bf16.msra.mxu0 %v2810
    %3058 = vmatprep.subr.bf16.mxu0 %v2817
    %3059 = vmatpush1.bf16.msra.mxu0 %v2816
    %3060 = vmatprep.subr.bf16.mxu0 %v2823
    %3061 = vmatpush1.bf16.msra.mxu0 %v2822
    %3062 = vmatprep.subr.bf16.mxu0 %v2829
    %3063 = vmatpush1.bf16.msra.mxu0 %v2828
    %3064 = vmatprep.subr.bf16.mxu0 %v2835
    %3065 = vmatpush1.bf16.msra.mxu0 %v2834
    %3066 = vmatprep.subr.bf16.mxu0 %v2841
    %3067 = vmatpush1.bf16.msra.mxu0 %v2840
    %3068 = vmatprep.subr.bf16.mxu0 %v2847
    %3069 = vmatpush1.bf16.msra.mxu0 %v2846
    %3070 = vmatprep.subr.bf16.mxu0 %v2853
    %3071 = vmatpush1.bf16.msra.mxu0 %v2852
    %3072 = vmatprep.subr.bf16.mxu0 %v2859
    %3073 = vmatpush1.bf16.msra.mxu0 %v2858
    %3074 = vmatprep.mubr.bf16.mxu0 %v2379
    %3075 = vmatmul.mubr.bf16.gmra.mrb[0].mxu0 %v2378
    %v3076 = vpop.f32.mrb[0].mxu0
    %v3077 = vadd.f32 0.0, %v3076
    %v3078 = vpop.f32.mrb[0].mxu0
    %v3079 = vadd.f32 0.0, %v3078
    %v3080 = vpop.f32.mrb[0].mxu0
    %v3081 = vadd.f32 0.0, %v3080
    %v3082 = vpop.f32.mrb[0].mxu0
    %v3083 = vadd.f32 0.0, %v3082
    %3084 = vdwg.mxu0
    %3085 = vst [vmem:[#allocation3] sm:$0xff] %v2991
    %3086 = vst [vmem:[#allocation3 + $0x8] sm:$0xff] %v2993
    %3087 = vst [vmem:[#allocation3 + $0x10] sm:$0x3f] %v2995
    %3088 = vst [vmem:[#allocation3 + $0x18] sm:$0x3f] %v2997
    %v3093 = vrot.slane %v3034, 2
    %v3094 = vrot.slane %v3036, 2
    %v3095 = vrot.slane %v3038, 2
    %v3096 = vsel %vm2068, %v3093, %v3095
    %v3097 = vrot.slane %v3040, 2
    %v3098 = vsel %vm2068, %v3094, %v3097
    %3105 = vst [vmem:[#allocation3 + $0x10] sm:$0xc0] %v3093
    %3106 = vst [vmem:[#allocation3 + $0x18] sm:$0xc0] %v3094
    %3107 = vst [vmem:[#allocation3 + $0x20] sm:$0xff] %v3096
    %3108 = vst [vmem:[#allocation3 + $0x28] sm:$0xff] %v3098
    %3109 = vst [vmem:[#allocation3 + $0x30] sm:$0xf] %v3095
    %3110 = vst [vmem:[#allocation3 + $0x38] sm:$0xf] %v3097
    %vm3115 = vcmask 1043456
    %v3116 = vrot.slane %v3077, 4
    %v3117 = vrot.slane %v3079, 4
    %v3118 = vrot.slane %v3081, 4
    %v3119 = vsel %vm3115, %v3116, %v3118
    %v3120 = vrot.slane %v3083, 4
    %v3121 = vsel %vm3115, %v3117, %v3120
    %3128 = vst [vmem:[#allocation3 + $0x30] sm:$0xf0] %v3116
    %3129 = vst [vmem:[#allocation3 + $0x38] sm:$0xf0] %v3117
    %3130 = vst [vmem:[#allocation3 + $0x40] sm:$0xff] %v3119
    %3131 = vst [vmem:[#allocation3 + $0x48] sm:$0xff] %v3121
    %3132 = vst [vmem:[#allocation3 + $0x50] sm:$0x3] %v3118
    %3133 = vst [vmem:[#allocation3 + $0x58] sm:$0x3] %v3120
    %v3134 = vld [vmem:[#allocation3] sm:$0xff]
    %v3135 = vld [vmem:[#allocation3 + $0x8] sm:$0xff]
    %v3136 = vld [vmem:[#allocation3 + $0x10] sm:$0xff]
    %v3137 = vld [vmem:[#allocation3 + $0x18] sm:$0xff]
    %v3138 = vld [vmem:[#allocation3 + $0x20] sm:$0xff]
    %v3139 = vld [vmem:[#allocation3 + $0x28] sm:$0xff]
    %v3140 = vld [vmem:[#allocation3 + $0x30] sm:$0xff]
    %v3141 = vld [vmem:[#allocation3 + $0x38] sm:$0xff]
    %v3142 = vld [vmem:[#allocation3 + $0x40] sm:$0xff]
    %v3143 = vld [vmem:[#allocation3 + $0x48] sm:$0xff]
    %v3144 = vld [vmem:[#allocation3 + $0x50] sm:$0x3]
    %v3145 = vld [vmem:[#allocation3 + $0x58] sm:$0x3]
    %v3146 = vld [vmem:[%s27] sm:$0xff]
    %v3147 = vld [vmem:[%s27 + $0x8] sm:$0xff]
    %v3148 = vld [vmem:[%s27 + $0x10] sm:$0xff]
    %v3149 = vld [vmem:[%s27 + $0x18] sm:$0x3f]
    %v3150 = vld [vmem:[%s29] sm:$0x3]
    %v3152 = vlaneseq
    %v3153 = vshrl.u32 %v3152, 7
    %v3154 = vsub.s32 0, %v3153
    %v3155 = vrot.slane %v3150, %v3154
    %v3156 = vlaneseq
    %v3157 = vshrl.u32 %v3156, 7
    %v3158 = vsub.s32 1, %v3157
    %v3159 = vrot.slane %v3150, %v3158
    %vm3162 = vcmask 343040
    %v3164 = vsel %vm3162, %v3146, 0
    %v3167 = vsel %vm3162, %v3147, 0
    %v3170 = vsel %vm3162, %v3148, 0
    %v3173 = vsel %vm3162, %v3149, 0
    %v3176 = vsel %vm1984, %v3144, 0
    %v3179 = vsel %vm1984, %v3145, 0
    %3181 = vmatprep.subr.mxu0 %v3135
    %3182 = vmatpush1.msra.mxu0 %v3134
    %3183 = vmatprep.subr.mxu0 %v3137
    %3184 = vmatpush1.msra.mxu0 %v3136
    %3185 = vmatprep.subr.mxu0 %v3139
    %3186 = vmatpush1.msra.mxu0 %v3138
    %3187 = vmatprep.subr.mxu0 %v3141
    %3188 = vmatpush1.msra.mxu0 %v3140
    %3189 = vmatprep.subr.mxu0 %v3143
    %3190 = vmatpush1.msra.mxu0 %v3142
    %3191 = vmatprep.subr.mxu0 %v3179
    %3192 = vmatpush1.msra.mxu0 %v3176
    %3193 = vmatprep.subr.mxu0 0.0
    %3194 = vmatpush1.msra.mxu0 0.0
    %3195 = vmatprep.subr.mxu0 0.0
    %3196 = vmatpush1.msra.mxu0 0.0
    %3197 = vmatprep.subr.mxu0 0.0
    %3198 = vmatpush1.msra.mxu0 0.0
    %3199 = vmatprep.subr.mxu0 0.0
    %3200 = vmatpush1.msra.mxu0 0.0
    %3201 = vmatprep.subr.mxu0 0.0
    %3202 = vmatpush1.msra.mxu0 0.0
    %3203 = vmatprep.subr.mxu0 0.0
    %3204 = vmatpush1.msra.mxu0 0.0
    %3205 = vmatprep.subr.mxu0 0.0
    %3206 = vmatpush1.msra.mxu0 0.0
    %3207 = vmatprep.subr.mxu0 0.0
    %3208 = vmatpush1.msra.mxu0 0.0
    %3209 = vmatprep.subr.mxu0 0.0
    %3210 = vmatpush1.msra.mxu0 0.0
    %3211 = vmatprep.subr.mxu0 0.0
    %3212 = vmatpush1.msra.mxu0 0.0
    %3213 = vmatprep.subr.mxu0 0.0
    %3214 = vmatpush1.msra.mxu0 0.0
    %3215 = vmatprep.subr.mxu0 0.0
    %3216 = vmatpush1.msra.mxu0 0.0
    %3217 = vmatprep.subr.mxu0 0.0
    %3218 = vmatpush1.msra.mxu0 0.0
    %3219 = vmatprep.subr.mxu0 0.0
    %3220 = vmatpush1.msra.mxu0 0.0
    %3221 = vmatprep.subr.mxu0 0.0
    %3222 = vmatpush1.msra.mxu0 0.0
    %3223 = vmatprep.subr.mxu0 0.0
    %3224 = vmatpush1.msra.mxu0 0.0
    %3225 = vmatprep.subr.mxu0 0.0
    %3226 = vmatpush1.msra.mxu0 0.0
    %3227 = vmatprep.subr.mxu0 0.0
    %3228 = vmatpush1.msra.mxu0 0.0
    %3229 = vmatprep.subr.mxu0 0.0
    %3230 = vmatpush1.msra.mxu0 0.0
    %3231 = vmatprep.subr.mxu0 0.0
    %3232 = vmatpush1.msra.mxu0 0.0
    %3233 = vmatprep.subr.mxu0 0.0
    %3234 = vmatpush1.msra.mxu0 0.0
    %3235 = vmatprep.subr.mxu0 0.0
    %3236 = vmatpush1.msra.mxu0 0.0
    %3237 = vmatprep.subr.mxu0 0.0
    %3238 = vmatpush1.msra.mxu0 0.0
    %3239 = vmatprep.subr.mxu0 0.0
    %3240 = vmatpush1.msra.mxu0 0.0
    %3241 = vmatprep.subr.mxu0 0.0
    %3242 = vmatpush1.msra.mxu0 0.0
    %3243 = vmatprep.subr.mxu0 0.0
    %3244 = vmatpush1.msra.mxu0 0.0
    %3245 = vmatprep.mubr.f32.mxu0 0.0
    %3246 = vmatmul.mubr.f32.gmra.mrb[0].mxu0 %v3164
    %v3247 = vpop.f32.mrb[0].mxu0
    %v3248 = vadd.f32 %v3155, %v3247
    %v3249 = vpop.f32.mrb[0].mxu0
    %v3250 = vadd.f32 %v3159, %v3249
    %3251 = vmatprep.mubr.f32.mxu0 0.0
    %3252 = vmatmul.mubr.f32.gmra.mrb[0].mxu0 %v3167
    %v3253 = vpop.f32.mrb[0].mxu0
    %v3254 = vadd.f32 %v3155, %v3253
    %v3255 = vpop.f32.mrb[0].mxu0
    %v3256 = vadd.f32 %v3159, %v3255
    %3257 = vmatprep.mubr.f32.mxu0 0.0
    %3258 = vmatmul.mubr.f32.gmra.mrb[0].mxu0 %v3170
    %v3259 = vpop.f32.mrb[0].mxu0
    %v3260 = vadd.f32 %v3155, %v3259
    %v3261 = vpop.f32.mrb[0].mxu0
    %v3262 = vadd.f32 %v3159, %v3261
    %3263 = vmatprep.mubr.f32.mxu0 0.0
    %3264 = vmatmul.mubr.f32.gmra.mrb[0].mxu0 %v3173
    %v3265 = vpop.f32.mrb[0].mxu0
    %v3266 = vadd.f32 %v3155, %v3265
    %v3267 = vpop.f32.mrb[0].mxu0
    %v3268 = vadd.f32 %v3159, %v3267
    %3269 = vdwg.mxu0
    %v3270 = vadd.f32 %v3248, %v3254
    %v3271 = vadd.f32 %v3270, %v3260
    %v3272 = vsel %vm2068, %v3266, 0.0
    %v3273 = vadd.f32 %v3271, %v3272
    %v3274 = vrot.slane %v3273, 4
    %v3275 = vadd.f32 %v3273, %v3274
    %v3276 = vrot.slane %v3275, 2
    %v3277 = vadd.f32 %v3275, %v3276
    %v3278 = vrot.slane %v3277, 1
    %v3279 = vadd.f32 %v3277, %v3278
    %v3280 = vadd.f32 %v3250, %v3256
    %v3281 = vadd.f32 %v3280, %v3262
    %v3282 = vsel %vm2068, %v3268, 0.0
    %v3283 = vadd.f32 %v3281, %v3282
    %v3284 = vrot.slane %v3283, 4
    %v3285 = vadd.f32 %v3283, %v3284
    %v3286 = vrot.slane %v3285, 2
    %v3287 = vadd.f32 %v3285, %v3286
    %v3288 = vrot.slane %v3287, 1
    %v3289 = vadd.f32 %v3287, %v3288
    %v3290 = vmul.f32 %v3248, %v3248
    %v3291 = vmul.f32 %v3250, %v3250
    %v3292 = vmul.f32 %v3254, %v3254
    %v3293 = vmul.f32 %v3256, %v3256
    %v3294 = vmul.f32 %v3260, %v3260
    %v3295 = vmul.f32 %v3262, %v3262
    %v3296 = vmul.f32 %v3266, %v3266
    %v3297 = vmul.f32 %v3268, %v3268
    %v3298 = vadd.f32 %v3290, %v3292
    %v3299 = vadd.f32 %v3298, %v3294
    %v3300 = vsel %vm2068, %v3296, 0.0
    %v3301 = vadd.f32 %v3299, %v3300
    %v3302 = vrot.slane %v3301, 4
    %v3303 = vadd.f32 %v3301, %v3302
    %v3304 = vrot.slane %v3303, 2
    %v3305 = vadd.f32 %v3303, %v3304
    %v3306 = vrot.slane %v3305, 1
    %v3307 = vadd.f32 %v3305, %v3306
    %v3308 = vadd.f32 %v3291, %v3293
    %v3309 = vadd.f32 %v3308, %v3295
    %v3310 = vsel %vm2068, %v3297, 0.0
    %v3311 = vadd.f32 %v3309, %v3310
    %v3312 = vrot.slane %v3311, 4
    %v3313 = vadd.f32 %v3311, %v3312
    %v3314 = vrot.slane %v3313, 2
    %v3315 = vadd.f32 %v3313, %v3314
    %v3316 = vrot.slane %v3315, 1
    %v3317 = vadd.f32 %v3315, %v3316
    %v3318 = vsel %vm2105, %v3279, %v3307
    %v3319 = vsel %vm2105, %v3289, %v3317
    %v3320 = vld [vmem:[#allocation13] sm:$0xff]
    %v3321 = vld [vmem:[#allocation13 + $0x8] sm:$0xff]
    %v3322 = vld [vmem:[#allocation13 + $0x10] sm:$0xff]
    %v3323 = vld [vmem:[#allocation13 + $0x18] sm:$0xff]
    %v3324 = vld [vmem:[#allocation13 + $0x20] sm:$0xff]
    %v3325 = vld [vmem:[#allocation13 + $0x28] sm:$0xff]
    %v3326 = vld [vmem:[#allocation13 + $0x30] sm:$0xff]
    %v3327 = vld [vmem:[#allocation13 + $0x38] sm:$0xff]
    %v3328 = vld [vmem:[#allocation13 + $0x40] sm:$0xff]
    %v3329 = vld [vmem:[#allocation13 + $0x48] sm:$0xff]
    %v3330 = vld [vmem:[#allocation13 + $0x50] sm:$0xff]
    %v3331 = vld [vmem:[#allocation13 + $0x58] sm:$0xff]
    %v3332 = vld [vmem:[#allocation13 + $0x60] sm:$0xff]
    %v3333 = vld [vmem:[#allocation13 + $0x68] sm:$0xff]
    %v3334 = vld [vmem:[#allocation13 + $0x70] sm:$0xff]
    %v3335 = vld [vmem:[#allocation13 + $0x78] sm:$0xff]
    %v3336 = vld [vmem:[#allocation13 + $0x80] sm:$0xff]
    %v3337 = vld [vmem:[#allocation13 + $0x88] sm:$0xff]
    %v3338 = vld [vmem:[#allocation13 + $0x90] sm:$0xff]
    %v3339 = vld [vmem:[#allocation13 + $0x98] sm:$0xff]
    %v3340 = vld [vmem:[#allocation13 + $0xa0] sm:$0xff]
    %v3341 = vld [vmem:[#allocation13 + $0xa8] sm:$0xff]
    %v3342 = vld [vmem:[#allocation13 + $0xb0] sm:$0xff]
    %v3343 = vld [vmem:[#allocation13 + $0xb8] sm:$0xff]
    %v3344 = vld [vmem:[#allocation13 + $0xc0] sm:$0xff]
    %v3345 = vld [vmem:[#allocation13 + $0xc8] sm:$0xff]
    %v3346 = vld [vmem:[#allocation13 + $0xd0] sm:$0xff]
    %v3347 = vld [vmem:[#allocation13 + $0xd8] sm:$0xff]
    %v3348 = vld [vmem:[#allocation13 + $0xe0] sm:$0xff]
    %v3349 = vld [vmem:[#allocation13 + $0xe8] sm:$0xff]
    %v3350 = vld [vmem:[#allocation13 + $0xf0] sm:$0xff]
    %v3351 = vld [vmem:[#allocation13 + $0xf8] sm:$0xff]
    %3352 = vmatprep.subr.mxu0 0.0
    %3353 = vmatpush1.msra.mxu0 %v3320
    %3354 = vmatprep.subr.mxu0 0.0
    %3355 = vmatpush1.msra.mxu0 %v3321
    %3356 = vmatprep.subr.mxu0 0.0
    %3357 = vmatpush1.msra.mxu0 %v3322
    %3358 = vmatprep.subr.mxu0 0.0
    %3359 = vmatpush1.msra.mxu0 %v3323
    %3360 = vmatprep.subr.mxu0 0.0
    %3361 = vmatpush1.msra.mxu0 %v3324
    %3362 = vmatprep.subr.mxu0 0.0
    %3363 = vmatpush1.msra.mxu0 %v3325
    %3364 = vmatprep.subr.mxu0 0.0
    %3365 = vmatpush1.msra.mxu0 %v3326
    %3366 = vmatprep.subr.mxu0 0.0
    %3367 = vmatpush1.msra.mxu0 %v3327
    %3368 = vmatprep.subr.mxu0 0.0
    %3369 = vmatpush1.msra.mxu0 %v3328
    %3370 = vmatprep.subr.mxu0 0.0
    %3371 = vmatpush1.msra.mxu0 %v3329
    %3372 = vmatprep.subr.mxu0 0.0
    %3373 = vmatpush1.msra.mxu0 %v3330
    %3374 = vmatprep.subr.mxu0 0.0
    %3375 = vmatpush1.msra.mxu0 %v3331
    %3376 = vmatprep.subr.mxu0 0.0
    %3377 = vmatpush1.msra.mxu0 %v3332
    %3378 = vmatprep.subr.mxu0 0.0
    %3379 = vmatpush1.msra.mxu0 %v3333
    %3380 = vmatprep.subr.mxu0 0.0
    %3381 = vmatpush1.msra.mxu0 %v3334
    %3382 = vmatprep.subr.mxu0 0.0
    %3383 = vmatpush1.msra.mxu0 %v3335
    %3384 = vmatprep.subr.mxu0 0.0
    %3385 = vmatpush1.msra.mxu0 %v3336
    %3386 = vmatprep.subr.mxu0 0.0
    %3387 = vmatpush1.msra.mxu0 %v3337
    %3388 = vmatprep.subr.mxu0 0.0
    %3389 = vmatpush1.msra.mxu0 %v3338
    %3390 = vmatprep.subr.mxu0 0.0
    %3391 = vmatpush1.msra.mxu0 %v3339
    %3392 = vmatprep.subr.mxu0 0.0
    %3393 = vmatpush1.msra.mxu0 %v3340
    %3394 = vmatprep.subr.mxu0 0.0
    %3395 = vmatpush1.msra.mxu0 %v3341
    %3396 = vmatprep.subr.mxu0 0.0
    %3397 = vmatpush1.msra.mxu0 %v3342
    %3398 = vmatprep.subr.mxu0 0.0
    %3399 = vmatpush1.msra.mxu0 %v3343
    %3400 = vmatprep.subr.mxu0 0.0
    %3401 = vmatpush1.msra.mxu0 %v3344
    %3402 = vmatprep.subr.mxu0 0.0
    %3403 = vmatpush1.msra.mxu0 %v3345
    %3404 = vmatprep.subr.mxu0 0.0
    %3405 = vmatpush1.msra.mxu0 %v3346
    %3406 = vmatprep.subr.mxu0 0.0
    %3407 = vmatpush1.msra.mxu0 %v3347
    %3408 = vmatprep.subr.mxu0 0.0
    %3409 = vmatpush1.msra.mxu0 %v3348
    %3410 = vmatprep.subr.mxu0 0.0
    %3411 = vmatpush1.msra.mxu0 %v3349
    %3412 = vmatprep.subr.mxu0 0.0
    %3413 = vmatpush1.msra.mxu0 %v3350
    %3414 = vmatprep.subr.mxu0 0.0
    %3415 = vmatpush1.msra.mxu0 %v3351
    %3416 = vmatprep.mubr.f32.mxu0 %v3319
    %3417 = vmatmul.mubr.f32.gmra.mrb[0].mxu0 %v3318
    %v3418 = vpop.f32.mrb[0].mxu0
    %v3419 = vadd.f32 0.0, %v3418
    %v3420 = vpop.f32.mrb[0].mxu0
    %3421 = vdwg.mxu0
    %v3422 = vmul.f32 %v3419, 0.0022222223
    %v3423 = vmul.f32 %v3422, %v3422
    %v3425 = vrot.slane %v3423, 7
    %v3427 = vsub.f32 %v3422, %v3425
    %v3428 = vld [vmem:[#allocation16] sm:$0x1]
    %v3429 = vadd.f32 %v3427, 1e-05
    %v3430 = vrsqrt.pop %v3429
    %v3433 = vunpack.c.l.s4 1966171168
    %v3434 = vunpack.c.0.s8 %v3433
    %v3435 = vlaneseq
    %v3436 = vshrl.u32 %v3435, 7
    %v3437 = vsub.s32 %v3434, %v3436
    %v3438 = vrot.slane %v3430, %v3437
    %v3439 = vcombine.high %v3438, %v3438
    %v3441 = vunpack.c.l.s4 1966171168
    %v3442 = vunpack.c.0.s8 %v3441
    %v3443 = vlaneseq
    %v3444 = vshrl.u32 %v3443, 7
    %v3445 = vsub.s32 %v3442, %v3444
    %v3446 = vrot.slane %v3439, %v3445
    %v3448 = vmul.f32 %v3428, %v3446
    %v3449 = vld [vmem:[#allocation18] sm:$0x1]
    %v3450 = vmul.f32 %v3422, %v3448
    %v3451 = vsub.f32 %v3449, %v3450
    %v3453 = vlaneseq
    %v3454 = vshrl.u32 %v3453, 7
    %v3455 = vsub.s32 0, %v3454
    %v3456 = vrot.slane %v3451, %v3455
    %v3458 = vsel %vm2105, %v3448, %v3456
    %v3459 = vld [vmem:[#allocation15] sm:$0xff]
    %v3460 = vld [vmem:[#allocation15 + $0x8] sm:$0xff]
    %v3461 = vld [vmem:[#allocation15 + $0x10] sm:$0xff]
    %v3462 = vld [vmem:[#allocation15 + $0x18] sm:$0xff]
    %v3463 = vld [vmem:[#allocation15 + $0x20] sm:$0xff]
    %v3464 = vld [vmem:[#allocation15 + $0x28] sm:$0xff]
    %v3465 = vld [vmem:[#allocation15 + $0x30] sm:$0xff]
    %v3466 = vld [vmem:[#allocation15 + $0x38] sm:$0xff]
    %v3467 = vld [vmem:[#allocation15 + $0x40] sm:$0xff]
    %v3468 = vld [vmem:[#allocation15 + $0x48] sm:$0xff]
    %v3469 = vld [vmem:[#allocation15 + $0x50] sm:$0xff]
    %v3470 = vld [vmem:[#allocation15 + $0x58] sm:$0xff]
    %v3471 = vld [vmem:[#allocation15 + $0x60] sm:$0xff]
    %v3472 = vld [vmem:[#allocation15 + $0x68] sm:$0xff]
    %v3473 = vld [vmem:[#allocation15 + $0x70] sm:$0xff]
    %v3474 = vld [vmem:[#allocation15 + $0x78] sm:$0xff]
    %v3475 = vld [vmem:[#allocation15 + $0x80] sm:$0xff]
    %v3476 = vld [vmem:[#allocation15 + $0x88] sm:$0xff]
    %v3477 = vld [vmem:[#allocation15 + $0x90] sm:$0xff]
    %v3478 = vld [vmem:[#allocation15 + $0x98] sm:$0xff]
    %v3479 = vld [vmem:[#allocation15 + $0xa0] sm:$0xff]
    %v3480 = vld [vmem:[#allocation15 + $0xa8] sm:$0xff]
    %v3481 = vld [vmem:[#allocation15 + $0xb0] sm:$0xff]
    %v3482 = vld [vmem:[#allocation15 + $0xb8] sm:$0xff]
    %v3483 = vld [vmem:[#allocation15 + $0xc0] sm:$0xff]
    %v3484 = vld [vmem:[#allocation15 + $0xc8] sm:$0xff]
    %v3485 = vld [vmem:[#allocation15 + $0xd0] sm:$0xff]
    %v3486 = vld [vmem:[#allocation15 + $0xd8] sm:$0xff]
    %v3487 = vld [vmem:[#allocation15 + $0xe0] sm:$0xff]
    %v3488 = vld [vmem:[#allocation15 + $0xe8] sm:$0xff]
    %v3489 = vld [vmem:[#allocation15 + $0xf0] sm:$0xff]
    %v3490 = vld [vmem:[#allocation15 + $0xf8] sm:$0xff]
    %3491 = vmatprep.subr.mxu0 %v3460
    %3492 = vmatpush1.msra.mxu0 %v3459
    %3493 = vmatprep.subr.mxu0 %v3462
    %3494 = vmatpush1.msra.mxu0 %v3461
    %3495 = vmatprep.subr.mxu0 %v3464
    %3496 = vmatpush1.msra.mxu0 %v3463
    %3497 = vmatprep.subr.mxu0 %v3466
    %3498 = vmatpush1.msra.mxu0 %v3465
    %3499 = vmatprep.subr.mxu0 %v3468
    %3500 = vmatpush1.msra.mxu0 %v3467
    %3501 = vmatprep.subr.mxu0 %v3470
    %3502 = vmatpush1.msra.mxu0 %v3469
    %3503 = vmatprep.subr.mxu0 %v3472
    %3504 = vmatpush1.msra.mxu0 %v3471
    %3505 = vmatprep.subr.mxu0 %v3474
    %3506 = vmatpush1.msra.mxu0 %v3473
    %3507 = vmatprep.subr.mxu0 %v3476
    %3508 = vmatpush1.msra.mxu0 %v3475
    %3509 = vmatprep.subr.mxu0 %v3478
    %3510 = vmatpush1.msra.mxu0 %v3477
    %3511 = vmatprep.subr.mxu0 %v3480
    %3512 = vmatpush1.msra.mxu0 %v3479
    %3513 = vmatprep.subr.mxu0 %v3482
    %3514 = vmatpush1.msra.mxu0 %v3481
    %3515 = vmatprep.subr.mxu0 %v3484
    %3516 = vmatpush1.msra.mxu0 %v3483
    %3517 = vmatprep.subr.mxu0 %v3486
    %3518 = vmatpush1.msra.mxu0 %v3485
    %3519 = vmatprep.subr.mxu0 %v3488
    %3520 = vmatpush1.msra.mxu0 %v3487
    %3521 = vmatprep.subr.mxu0 %v3490
    %3522 = vmatpush1.msra.mxu0 %v3489
    %3523 = vmatprep.subr.mxu0 0.0
    %3524 = vmatpush1.msra.mxu0 0.0
    %3525 = vmatprep.subr.mxu0 0.0
    %3526 = vmatpush1.msra.mxu0 0.0
    %3527 = vmatprep.subr.mxu0 0.0
    %3528 = vmatpush1.msra.mxu0 0.0
    %3529 = vmatprep.subr.mxu0 0.0
    %3530 = vmatpush1.msra.mxu0 0.0
    %3531 = vmatprep.subr.mxu0 0.0
    %3532 = vmatpush1.msra.mxu0 0.0
    %3533 = vmatprep.subr.mxu0 0.0
    %3534 = vmatpush1.msra.mxu0 0.0
    %3535 = vmatprep.subr.mxu0 0.0
    %3536 = vmatpush1.msra.mxu0 0.0
    %3537 = vmatprep.subr.mxu0 0.0
    %3538 = vmatpush1.msra.mxu0 0.0
    %3539 = vmatprep.subr.mxu0 0.0
    %3540 = vmatpush1.msra.mxu0 0.0
    %3541 = vmatprep.subr.mxu0 0.0
    %3542 = vmatpush1.msra.mxu0 0.0
    %3543 = vmatprep.subr.mxu0 0.0
    %3544 = vmatpush1.msra.mxu0 0.0
    %3545 = vmatprep.subr.mxu0 0.0
    %3546 = vmatpush1.msra.mxu0 0.0
    %3547 = vmatprep.subr.mxu0 0.0
    %3548 = vmatpush1.msra.mxu0 0.0
    %3549 = vmatprep.subr.mxu0 0.0
    %3550 = vmatpush1.msra.mxu0 0.0
    %3551 = vmatprep.subr.mxu0 0.0
    %3552 = vmatpush1.msra.mxu0 0.0
    %3553 = vmatprep.subr.mxu0 0.0
    %3554 = vmatpush1.msra.mxu0 0.0
    %3555 = vmatprep.mubr.f32.mxu0 0.0
    %3556 = vmatmul.mubr.f32.gmra.mrb[0].mxu0 %v3458
    %v3557 = vpop.f32.mrb[0].mxu0
    %v3558 = vadd.f32 0.0, %v3557
    %v3559 = vpop.f32.mrb[0].mxu0
    %v3560 = vadd.f32 0.0, %v3559
    %3561 = vdwg.mxu0
    %v3562 = vlaneseq
    %v3563 = vshrl.u32 %v3562, 7
    %v3564 = vsub.s32 0, %v3563
    %v3565 = vrot.slane %v3558, %v3564
    %v3566 = vlaneseq
    %v3567 = vshrl.u32 %v3566, 7
    %v3568 = vsub.s32 0, %v3567
    %v3569 = vrot.slane %v3560, %v3568
    %v3570 = vmul.f32 %v3248, %v3565
    %v3571 = vmul.f32 %v3250, %v3569
    %v3572 = vmul.f32 %v3254, %v3565
    %v3573 = vmul.f32 %v3256, %v3569
    %v3574 = vmul.f32 %v3260, %v3565
    %v3575 = vmul.f32 %v3262, %v3569
    %v3576 = vmul.f32 %v3266, %v3565
    %v3577 = vmul.f32 %v3268, %v3569
    %v3578 = vlaneseq
    %v3579 = vshrl.u32 %v3578, 7
    %v3580 = vsub.s32 1, %v3579
    %v3581 = vrot.slane %v3558, %v3580
    %v3582 = vlaneseq
    %v3583 = vshrl.u32 %v3582, 7
    %v3584 = vsub.s32 1, %v3583
    %v3585 = vrot.slane %v3560, %v3584
    %v3586 = vadd.f32 %v3570, %v3581
    %v3587 = vadd.f32 %v3571, %v3585
    %v3588 = vadd.f32 %v3572, %v3581
    %v3589 = vadd.f32 %v3573, %v3585
    %v3590 = vadd.f32 %v3574, %v3581
    %v3591 = vadd.f32 %v3575, %v3585
    %v3592 = vadd.f32 %v3576, %v3581
    %v3593 = vadd.f32 %v3577, %v3585
    %v3594 = vmax.f32 %v3586, 0.0
    %v3595 = vmax.f32 %v3587, 0.0
    %v3596 = vmax.f32 %v3588, 0.0
    %v3597 = vmax.f32 %v3589, 0.0
    %v3598 = vmax.f32 %v3590, 0.0
    %v3599 = vmax.f32 %v3591, 0.0
    %v3600 = vmax.f32 %v3592, 0.0
    %v3601 = vmax.f32 %v3593, 0.0
    %v3602 = vpack.c.bf16 %v3596, %v3594
    %v3603 = vpack.c.bf16 %v3597, %v3595
    %v3604 = vpack.c.bf16 %v3600, %v3598
    %v3605 = vpack.c.bf16 %v3601, %v3599
    %v3606 = vld [vmem:[#allocation19] sm:$0xff]
    %v3607 = vld [vmem:[#allocation19 + $0x8] sm:$0xff]
    %v3608 = vld [vmem:[#allocation19 + $0x10] sm:$0xff]
    %v3609 = vld [vmem:[#allocation19 + $0x18] sm:$0xff]
    %v3610 = vld [vmem:[#allocation19 + $0x20] sm:$0xff]
    %v3611 = vld [vmem:[#allocation19 + $0x28] sm:$0xff]
    %v3612 = vld [vmem:[#allocation19 + $0x30] sm:$0xff]
    %v3613 = vld [vmem:[#allocation19 + $0x38] sm:$0xff]
    %v3614 = vld [vmem:[#allocation19 + $0x40] sm:$0xff]
    %v3615 = vld [vmem:[#allocation19 + $0x48] sm:$0xff]
    %v3616 = vld [vmem:[#allocation19 + $0x50] sm:$0xff]
    %v3617 = vld [vmem:[#allocation19 + $0x58] sm:$0xff]
    %v3618 = vld [vmem:[#allocation19 + $0x60] sm:$0xff]
    %v3619 = vld [vmem:[#allocation19 + $0x68] sm:$0xff]
    %v3620 = vld [vmem:[#allocation19 + $0x70] sm:$0xff]
    %v3621 = vld [vmem:[#allocation19 + $0x78] sm:$0xff]
    %v3622 = vld [vmem:[#allocation19 + $0x80] sm:$0xff]
    %v3623 = vld [vmem:[#allocation19 + $0x88] sm:$0xff]
    %v3624 = vld [vmem:[#allocation19 + $0x90] sm:$0xff]
    %v3625 = vld [vmem:[#allocation19 + $0x98] sm:$0xff]
    %v3626 = vld [vmem:[#allocation19 + $0xa0] sm:$0xff]
    %v3627 = vld [vmem:[#allocation19 + $0xa8] sm:$0xff]
    %v3628 = vld [vmem:[#allocation19 + $0xb0] sm:$0xff]
    %v3629 = vld [vmem:[#allocation19 + $0xb8] sm:$0xff]
    %v3630 = vld [vmem:[#allocation19 + $0xc0] sm:$0xff]
    %v3631 = vld [vmem:[#allocation19 + $0xc8] sm:$0xff]
    %v3632 = vld [vmem:[#allocation19 + $0xd0] sm:$0xff]
    %v3633 = vld [vmem:[#allocation19 + $0xd8] sm:$0xff]
    %v3634 = vld [vmem:[#allocation19 + $0xe0] sm:$0xff]
    %v3635 = vld [vmem:[#allocation19 + $0xe8] sm:$0xff]
    %v3636 = vld [vmem:[#allocation19 + $0xf0] sm:$0xff]
    %v3637 = vld [vmem:[#allocation19 + $0xf8] sm:$0xff]
    %v3638 = vld [vmem:[#allocation19 + $0x100] sm:$0xff]
    %v3639 = vld [vmem:[#allocation19 + $0x108] sm:$0xff]
    %v3640 = vld [vmem:[#allocation19 + $0x110] sm:$0xff]
    %v3641 = vld [vmem:[#allocation19 + $0x118] sm:$0xff]
    %v3642 = vld [vmem:[#allocation19 + $0x120] sm:$0xff]
    %v3643 = vld [vmem:[#allocation19 + $0x128] sm:$0xff]
    %v3644 = vld [vmem:[#allocation19 + $0x130] sm:$0xff]
    %v3645 = vld [vmem:[#allocation19 + $0x138] sm:$0xff]
    %v3646 = vld [vmem:[#allocation19 + $0x140] sm:$0xff]
    %v3647 = vld [vmem:[#allocation19 + $0x148] sm:$0xff]
    %v3648 = vld [vmem:[#allocation19 + $0x150] sm:$0xff]
    %v3649 = vld [vmem:[#allocation19 + $0x158] sm:$0xff]
    %v3650 = vld [vmem:[#allocation19 + $0x160] sm:$0xff]
    %v3651 = vld [vmem:[#allocation19 + $0x168] sm:$0xff]
    %v3652 = vld [vmem:[#allocation19 + $0x170] sm:$0xff]
    %v3653 = vld [vmem:[#allocation19 + $0x178] sm:$0xff]
    %v3654 = vld [vmem:[#allocation19 + $0x180] sm:$0xff]
    %v3655 = vld [vmem:[#allocation19 + $0x188] sm:$0xff]
    %v3656 = vld [vmem:[#allocation19 + $0x190] sm:$0xff]
    %v3657 = vld [vmem:[#allocation19 + $0x198] sm:$0xff]
    %v3658 = vld [vmem:[#allocation19 + $0x1a0] sm:$0xff]
    %v3659 = vld [vmem:[#allocation19 + $0x1a8] sm:$0xff]
    %v3660 = vld [vmem:[#allocation19 + $0x1b0] sm:$0xff]
    %v3661 = vld [vmem:[#allocation19 + $0x1b8] sm:$0xff]
    %v3662 = vld [vmem:[#allocation19 + $0x1c0] sm:$0xff]
    %v3663 = vld [vmem:[#allocation19 + $0x1c8] sm:$0xff]
    %v3664 = vld [vmem:[#allocation19 + $0x1d0] sm:$0xff]
    %v3665 = vld [vmem:[#allocation19 + $0x1d8] sm:$0xff]
    %v3666 = vld [vmem:[#allocation19 + $0x1e0] sm:$0xff]
    %v3667 = vld [vmem:[#allocation19 + $0x1e8] sm:$0xff]
    %v3668 = vld [vmem:[#allocation19 + $0x1f0] sm:$0xff]
    %v3669 = vld [vmem:[#allocation19 + $0x1f8] sm:$0xff]
    %v3670 = vld [vmem:[#allocation19 + $0x200] sm:$0xff]
    %v3671 = vld [vmem:[#allocation19 + $0x208] sm:$0xff]
    %v3672 = vld [vmem:[#allocation19 + $0x210] sm:$0xff]
    %v3673 = vld [vmem:[#allocation19 + $0x218] sm:$0xff]
    %v3674 = vld [vmem:[#allocation19 + $0x220] sm:$0xff]
    %v3675 = vld [vmem:[#allocation19 + $0x228] sm:$0xff]
    %v3676 = vld [vmem:[#allocation19 + $0x230] sm:$0xff]
    %v3677 = vld [vmem:[#allocation19 + $0x238] sm:$0xff]
    %v3678 = vld [vmem:[#allocation19 + $0x240] sm:$0xff]
    %v3679 = vld [vmem:[#allocation19 + $0x248] sm:$0xff]
    %v3680 = vld [vmem:[#allocation19 + $0x250] sm:$0xff]
    %v3681 = vld [vmem:[#allocation19 + $0x258] sm:$0xff]
    %v3682 = vld [vmem:[#allocation19 + $0x260] sm:$0xff]
    %v3683 = vld [vmem:[#allocation19 + $0x268] sm:$0xff]
    %v3684 = vld [vmem:[#allocation19 + $0x270] sm:$0xff]
    %v3685 = vld [vmem:[#allocation19 + $0x278] sm:$0xff]
    %v3686 = vld [vmem:[#allocation19 + $0x280] sm:$0xff]
    %v3687 = vld [vmem:[#allocation19 + $0x288] sm:$0xff]
    %v3688 = vld [vmem:[#allocation19 + $0x290] sm:$0xff]
    %v3689 = vld [vmem:[#allocation19 + $0x298] sm:$0xff]
    %v3690 = vld [vmem:[#allocation19 + $0x2a0] sm:$0xff]
    %v3691 = vld [vmem:[#allocation19 + $0x2a8] sm:$0xff]
    %v3692 = vld [vmem:[#allocation19 + $0x2b0] sm:$0xff]
    %v3693 = vld [vmem:[#allocation19 + $0x2b8] sm:$0xff]
    %v3694 = vld [vmem:[#allocation19 + $0x2c0] sm:$0xff]
    %v3695 = vld [vmem:[#allocation19 + $0x2c8] sm:$0xff]
    %v3696 = vld [vmem:[#allocation19 + $0x2d0] sm:$0xff]
    %v3697 = vld [vmem:[#allocation19 + $0x2d8] sm:$0xff]
    %v3698 = vld [vmem:[#allocation19 + $0x2e0] sm:$0xff]
    %v3699 = vld [vmem:[#allocation19 + $0x2e8] sm:$0xff]
    %v3700 = vld [vmem:[#allocation19 + $0x2f0] sm:$0xff]
    %v3701 = vld [vmem:[#allocation19 + $0x2f8] sm:$0xff]
    %v3798 = vunpack.c.l.b16 %v3606
    %v3799 = vunpack.c.h.b16 %v3606
    %v3800 = vunpack.c.l.b16 %v3607
    %v3801 = vunpack.c.h.b16 %v3607
    %v3802 = vunpack.c.l.b16 %v3608
    %v3803 = vunpack.c.h.b16 %v3608
    %v3804 = vunpack.c.l.b16 %v3609
    %v3805 = vunpack.c.h.b16 %v3609
    %v3806 = vunpack.c.l.b16 %v3610
    %v3807 = vunpack.c.h.b16 %v3610
    %v3808 = vunpack.c.l.b16 %v3611
    %v3809 = vunpack.c.h.b16 %v3611
    %v3810 = vunpack.c.l.b16 %v3612
    %v3811 = vunpack.c.h.b16 %v3612
    %v3812 = vunpack.c.l.b16 %v3613
    %v3813 = vunpack.c.h.b16 %v3613
    %v3814 = vunpack.c.l.b16 %v3614
    %v3815 = vunpack.c.h.b16 %v3614
    %v3816 = vunpack.c.l.b16 %v3615
    %v3817 = vunpack.c.h.b16 %v3615
    %v3818 = vunpack.c.l.b16 %v3616
    %v3819 = vunpack.c.h.b16 %v3616
    %v3820 = vunpack.c.l.b16 %v3617
    %v3821 = vunpack.c.h.b16 %v3617
    %v3822 = vunpack.c.l.b16 %v3618
    %v3823 = vunpack.c.h.b16 %v3618
    %v3824 = vunpack.c.l.b16 %v3619
    %v3825 = vunpack.c.h.b16 %v3619
    %v3826 = vunpack.c.l.b16 %v3620
    %v3827 = vunpack.c.h.b16 %v3620
    %v3828 = vunpack.c.l.b16 %v3621
    %v3829 = vunpack.c.h.b16 %v3621
    %v3830 = vunpack.c.l.b16 %v3622
    %v3831 = vunpack.c.h.b16 %v3622
    %v3832 = vunpack.c.l.b16 %v3623
    %v3833 = vunpack.c.h.b16 %v3623
    %v3834 = vunpack.c.l.b16 %v3624
    %v3835 = vunpack.c.h.b16 %v3624
    %v3836 = vunpack.c.l.b16 %v3625
    %v3837 = vunpack.c.h.b16 %v3625
    %v3838 = vunpack.c.l.b16 %v3626
    %v3839 = vunpack.c.h.b16 %v3626
    %v3840 = vunpack.c.l.b16 %v3627
    %v3841 = vunpack.c.h.b16 %v3627
    %v3842 = vunpack.c.l.b16 %v3628
    %v3843 = vunpack.c.h.b16 %v3628
    %v3844 = vunpack.c.l.b16 %v3629
    %v3845 = vunpack.c.h.b16 %v3629
    %v3846 = vunpack.c.l.b16 %v3630
    %v3847 = vunpack.c.h.b16 %v3630
    %v3848 = vunpack.c.l.b16 %v3631
    %v3849 = vunpack.c.h.b16 %v3631
    %v3850 = vunpack.c.l.b16 %v3632
    %v3851 = vunpack.c.h.b16 %v3632
    %v3852 = vunpack.c.l.b16 %v3633
    %v3853 = vunpack.c.h.b16 %v3633
    %v3854 = vunpack.c.l.b16 %v3634
    %v3855 = vunpack.c.h.b16 %v3634
    %v3856 = vunpack.c.l.b16 %v3635
    %v3857 = vunpack.c.h.b16 %v3635
    %v3858 = vunpack.c.l.b16 %v3636
    %v3859 = vunpack.c.h.b16 %v3636
    %v3860 = vunpack.c.l.b16 %v3637
    %v3861 = vunpack.c.h.b16 %v3637
    %v3862 = vunpack.c.l.b16 %v3638
    %v3863 = vunpack.c.h.b16 %v3638
    %v3864 = vunpack.c.l.b16 %v3639
    %v3865 = vunpack.c.h.b16 %v3639
    %v3866 = vunpack.c.l.b16 %v3640
    %v3867 = vunpack.c.h.b16 %v3640
    %v3868 = vunpack.c.l.b16 %v3641
    %v3869 = vunpack.c.h.b16 %v3641
    %v3870 = vunpack.c.l.b16 %v3642
    %v3871 = vunpack.c.h.b16 %v3642
    %v3872 = vunpack.c.l.b16 %v3643
    %v3873 = vunpack.c.h.b16 %v3643
    %v3874 = vunpack.c.l.b16 %v3644
    %v3875 = vunpack.c.h.b16 %v3644
    %v3876 = vunpack.c.l.b16 %v3645
    %v3877 = vunpack.c.h.b16 %v3645
    %v3878 = vunpack.c.l.b16 %v3646
    %v3879 = vunpack.c.h.b16 %v3646
    %v3880 = vunpack.c.l.b16 %v3647
    %v3881 = vunpack.c.h.b16 %v3647
    %v3882 = vunpack.c.l.b16 %v3648
    %v3883 = vunpack.c.h.b16 %v3648
    %v3884 = vunpack.c.l.b16 %v3649
    %v3885 = vunpack.c.h.b16 %v3649
    %v3886 = vunpack.c.l.b16 %v3650
    %v3887 = vunpack.c.h.b16 %v3650
    %v3888 = vunpack.c.l.b16 %v3651
    %v3889 = vunpack.c.h.b16 %v3651
    %v3890 = vunpack.c.l.b16 %v3652
    %v3891 = vunpack.c.h.b16 %v3652
    %v3892 = vunpack.c.l.b16 %v3653
    %v3893 = vunpack.c.h.b16 %v3653
    %v3894 = vunpack.c.l.b16 %v3654
    %v3895 = vunpack.c.h.b16 %v3654
    %v3896 = vunpack.c.l.b16 %v3655
    %v3897 = vunpack.c.h.b16 %v3655
    %v3898 = vunpack.c.l.b16 %v3656
    %v3899 = vunpack.c.h.b16 %v3656
    %v3900 = vunpack.c.l.b16 %v3657
    %v3901 = vunpack.c.h.b16 %v3657
    %v3902 = vunpack.c.l.b16 %v3658
    %v3903 = vunpack.c.h.b16 %v3658
    %v3904 = vunpack.c.l.b16 %v3659
    %v3905 = vunpack.c.h.b16 %v3659
    %v3906 = vunpack.c.l.b16 %v3660
    %v3907 = vunpack.c.h.b16 %v3660
    %v3908 = vunpack.c.l.b16 %v3661
    %v3909 = vunpack.c.h.b16 %v3661
    %v3910 = vunpack.c.l.b16 %v3662
    %v3911 = vunpack.c.h.b16 %v3662
    %v3912 = vunpack.c.l.b16 %v3663
    %v3913 = vunpack.c.h.b16 %v3663
    %v3914 = vunpack.c.l.b16 %v3664
    %v3915 = vunpack.c.h.b16 %v3664
    %v3916 = vunpack.c.l.b16 %v3665
    %v3917 = vunpack.c.h.b16 %v3665
    %v3918 = vunpack.c.l.b16 %v3666
    %v3919 = vunpack.c.h.b16 %v3666
    %v3920 = vunpack.c.l.b16 %v3667
    %v3921 = vunpack.c.h.b16 %v3667
    %v3922 = vunpack.c.l.b16 %v3668
    %v3923 = vunpack.c.h.b16 %v3668
    %v3924 = vunpack.c.l.b16 %v3669
    %v3925 = vunpack.c.h.b16 %v3669
    %v3926 = vunpack.c.l.b16 %v3670
    %v3927 = vunpack.c.h.b16 %v3670
    %v3928 = vunpack.c.l.b16 %v3671
    %v3929 = vunpack.c.h.b16 %v3671
    %v3930 = vunpack.c.l.b16 %v3672
    %v3931 = vunpack.c.h.b16 %v3672
    %v3932 = vunpack.c.l.b16 %v3673
    %v3933 = vunpack.c.h.b16 %v3673
    %v3934 = vunpack.c.l.b16 %v3674
    %v3935 = vunpack.c.h.b16 %v3674
    %v3936 = vunpack.c.l.b16 %v3675
    %v3937 = vunpack.c.h.b16 %v3675
    %v3938 = vunpack.c.l.b16 %v3676
    %v3939 = vunpack.c.h.b16 %v3676
    %v3940 = vunpack.c.l.b16 %v3677
    %v3941 = vunpack.c.h.b16 %v3677
    %v3942 = vunpack.c.l.b16 %v3678
    %v3943 = vunpack.c.h.b16 %v3678
    %v3944 = vunpack.c.l.b16 %v3679
    %v3945 = vunpack.c.h.b16 %v3679
    %v3946 = vunpack.c.l.b16 %v3680
    %v3947 = vunpack.c.h.b16 %v3680
    %v3948 = vunpack.c.l.b16 %v3681
    %v3949 = vunpack.c.h.b16 %v3681
    %v3950 = vunpack.c.l.b16 %v3682
    %v3951 = vunpack.c.h.b16 %v3682
    %v3952 = vunpack.c.l.b16 %v3683
    %v3953 = vunpack.c.h.b16 %v3683
    %v3954 = vunpack.c.l.b16 %v3684
    %v3955 = vunpack.c.h.b16 %v3684
    %v3956 = vunpack.c.l.b16 %v3685
    %v3957 = vunpack.c.h.b16 %v3685
    %v3958 = vunpack.c.l.b16 %v3686
    %v3959 = vunpack.c.h.b16 %v3686
    %v3960 = vunpack.c.l.b16 %v3687
    %v3961 = vunpack.c.h.b16 %v3687
    %v3962 = vunpack.c.l.b16 %v3688
    %v3963 = vunpack.c.h.b16 %v3688
    %v3964 = vunpack.c.l.b16 %v3689
    %v3965 = vunpack.c.h.b16 %v3689
    %v3966 = vunpack.c.l.b16 %v3690
    %v3967 = vunpack.c.h.b16 %v3690
    %v3968 = vunpack.c.l.b16 %v3691
    %v3969 = vunpack.c.h.b16 %v3691
    %v3970 = vunpack.c.l.b16 %v3692
    %v3971 = vunpack.c.h.b16 %v3692
    %v3972 = vunpack.c.l.b16 %v3693
    %v3973 = vunpack.c.h.b16 %v3693
    %v3974 = vunpack.c.l.b16 %v3694
    %v3975 = vunpack.c.h.b16 %v3694
    %v3976 = vunpack.c.l.b16 %v3695
    %v3977 = vunpack.c.h.b16 %v3695
    %v3978 = vunpack.c.l.b16 %v3696
    %v3979 = vunpack.c.h.b16 %v3696
    %v3980 = vunpack.c.l.b16 %v3697
    %v3981 = vunpack.c.h.b16 %v3697
    %v3982 = vunpack.c.l.b16 %v3698
    %v3983 = vunpack.c.h.b16 %v3698
    %v3984 = vunpack.c.l.b16 %v3699
    %v3985 = vunpack.c.h.b16 %v3699
    %v3986 = vunpack.c.l.b16 %v3700
    %v3987 = vunpack.c.h.b16 %v3700
    %v3988 = vunpack.c.l.b16 %v3701
    %v3989 = vunpack.c.h.b16 %v3701
    %v3990 = vpack.c.b16 %v3804, %v3798
    %v3991 = vpack.c.b16 %v3805, %v3799
    %v3992 = vpack.c.b16 %v3806, %v3800
    %v3993 = vpack.c.b16 %v3807, %v3801
    %v3994 = vpack.c.b16 %v3808, %v3802
    %v3995 = vpack.c.b16 %v3809, %v3803
    %v3996 = vpack.c.b16 %v3816, %v3810
    %v3997 = vpack.c.b16 %v3817, %v3811
    %v3998 = vpack.c.b16 %v3818, %v3812
    %v3999 = vpack.c.b16 %v3819, %v3813
    %v4000 = vpack.c.b16 %v3820, %v3814
    %v4001 = vpack.c.b16 %v3821, %v3815
    %v4002 = vpack.c.b16 %v3828, %v3822
    %v4003 = vpack.c.b16 %v3829, %v3823
    %v4004 = vpack.c.b16 %v3830, %v3824
    %v4005 = vpack.c.b16 %v3831, %v3825
    %v4006 = vpack.c.b16 %v3832, %v3826
    %v4007 = vpack.c.b16 %v3833, %v3827
    %v4008 = vpack.c.b16 %v3840, %v3834
    %v4009 = vpack.c.b16 %v3841, %v3835
    %v4010 = vpack.c.b16 %v3842, %v3836
    %v4011 = vpack.c.b16 %v3843, %v3837
    %v4012 = vpack.c.b16 %v3844, %v3838
    %v4013 = vpack.c.b16 %v3845, %v3839
    %v4014 = vpack.c.b16 %v3852, %v3846
    %v4015 = vpack.c.b16 %v3853, %v3847
    %v4016 = vpack.c.b16 %v3854, %v3848
    %v4017 = vpack.c.b16 %v3855, %v3849
    %v4018 = vpack.c.b16 %v3856, %v3850
    %v4019 = vpack.c.b16 %v3857, %v3851
    %v4020 = vpack.c.b16 %v3864, %v3858
    %v4021 = vpack.c.b16 %v3865, %v3859
    %v4022 = vpack.c.b16 %v3866, %v3860
    %v4023 = vpack.c.b16 %v3867, %v3861
    %v4024 = vpack.c.b16 %v3868, %v3862
    %v4025 = vpack.c.b16 %v3869, %v3863
    %v4026 = vpack.c.b16 %v3876, %v3870
    %v4027 = vpack.c.b16 %v3877, %v3871
    %v4028 = vpack.c.b16 %v3878, %v3872
    %v4029 = vpack.c.b16 %v3879, %v3873
    %v4030 = vpack.c.b16 %v3880, %v3874
    %v4031 = vpack.c.b16 %v3881, %v3875
    %v4032 = vpack.c.b16 %v3888, %v3882
    %v4033 = vpack.c.b16 %v3889, %v3883
    %v4034 = vpack.c.b16 %v3890, %v3884
    %v4035 = vpack.c.b16 %v3891, %v3885
    %v4036 = vpack.c.b16 %v3892, %v3886
    %v4037 = vpack.c.b16 %v3893, %v3887
    %v4038 = vpack.c.b16 %v3900, %v3894
    %v4039 = vpack.c.b16 %v3901, %v3895
    %v4040 = vpack.c.b16 %v3902, %v3896
    %v4041 = vpack.c.b16 %v3903, %v3897
    %v4042 = vpack.c.b16 %v3904, %v3898
    %v4043 = vpack.c.b16 %v3905, %v3899
    %v4044 = vpack.c.b16 %v3912, %v3906
    %v4045 = vpack.c.b16 %v3913, %v3907
    %v4046 = vpack.c.b16 %v3914, %v3908
    %v4047 = vpack.c.b16 %v3915, %v3909
    %v4048 = vpack.c.b16 %v3916, %v3910
    %v4049 = vpack.c.b16 %v3917, %v3911
    %v4050 = vpack.c.b16 %v3924, %v3918
    %v4051 = vpack.c.b16 %v3925, %v3919
    %v4052 = vpack.c.b16 %v3926, %v3920
    %v4053 = vpack.c.b16 %v3927, %v3921
    %v4054 = vpack.c.b16 %v3928, %v3922
    %v4055 = vpack.c.b16 %v3929, %v3923
    %v4056 = vpack.c.b16 %v3936, %v3930
    %v4057 = vpack.c.b16 %v3937, %v3931
    %v4058 = vpack.c.b16 %v3938, %v3932
    %v4059 = vpack.c.b16 %v3939, %v3933
    %v4060 = vpack.c.b16 %v3940, %v3934
    %v4061 = vpack.c.b16 %v3941, %v3935
    %v4062 = vpack.c.b16 %v3948, %v3942
    %v4063 = vpack.c.b16 %v3949, %v3943
    %v4064 = vpack.c.b16 %v3950, %v3944
    %v4065 = vpack.c.b16 %v3951, %v3945
    %v4066 = vpack.c.b16 %v3952, %v3946
    %v4067 = vpack.c.b16 %v3953, %v3947
    %v4068 = vpack.c.b16 %v3960, %v3954
    %v4069 = vpack.c.b16 %v3961, %v3955
    %v4070 = vpack.c.b16 %v3962, %v3956
    %v4071 = vpack.c.b16 %v3963, %v3957
    %v4072 = vpack.c.b16 %v3964, %v3958
    %v4073 = vpack.c.b16 %v3965, %v3959
    %v4074 = vpack.c.b16 %v3972, %v3966
    %v4075 = vpack.c.b16 %v3973, %v3967
    %v4076 = vpack.c.b16 %v3974, %v3968
    %v4077 = vpack.c.b16 %v3975, %v3969
    %v4078 = vpack.c.b16 %v3976, %v3970
    %v4079 = vpack.c.b16 %v3977, %v3971
    %v4080 = vpack.c.b16 %v3984, %v3978
    %v4081 = vpack.c.b16 %v3985, %v3979
    %v4082 = vpack.c.b16 %v3986, %v3980
    %v4083 = vpack.c.b16 %v3987, %v3981
    %v4084 = vpack.c.b16 %v3988, %v3982
    %v4085 = vpack.c.b16 %v3989, %v3983
    %4182 = vmatprep.subr.bf16.mxu0 %v3991
    %4183 = vmatpush1.bf16.msra.mxu0 %v3990
    %4184 = vmatprep.subr.bf16.mxu0 %v3997
    %4185 = vmatpush1.bf16.msra.mxu0 %v3996
    %4186 = vmatprep.subr.bf16.mxu0 %v4003
    %4187 = vmatpush1.bf16.msra.mxu0 %v4002
    %4188 = vmatprep.subr.bf16.mxu0 %v4009
    %4189 = vmatpush1.bf16.msra.mxu0 %v4008
    %4190 = vmatprep.subr.bf16.mxu0 %v4015
    %4191 = vmatpush1.bf16.msra.mxu0 %v4014
    %4192 = vmatprep.subr.bf16.mxu0 %v4021
    %4193 = vmatpush1.bf16.msra.mxu0 %v4020
    %4194 = vmatprep.subr.bf16.mxu0 %v4027
    %4195 = vmatpush1.bf16.msra.mxu0 %v4026
    %4196 = vmatprep.subr.bf16.mxu0 %v4033
    %4197 = vmatpush1.bf16.msra.mxu0 %v4032
    %4198 = vmatprep.subr.bf16.mxu0 %v4039
    %4199 = vmatpush1.bf16.msra.mxu0 %v4038
    %4200 = vmatprep.subr.bf16.mxu0 %v4045
    %4201 = vmatpush1.bf16.msra.mxu0 %v4044
    %4202 = vmatprep.subr.bf16.mxu0 %v4051
    %4203 = vmatpush1.bf16.msra.mxu0 %v4050
    %4204 = vmatprep.subr.bf16.mxu0 %v4057
    %4205 = vmatpush1.bf16.msra.mxu0 %v4056
    %4206 = vmatprep.subr.bf16.mxu0 %v4063
    %4207 = vmatpush1.bf16.msra.mxu0 %v4062
    %4208 = vmatprep.subr.bf16.mxu0 %v4069
    %4209 = vmatpush1.bf16.msra.mxu0 %v4068
    %4210 = vmatprep.subr.bf16.mxu0 %v4075
    %4211 = vmatpush1.bf16.msra.mxu0 %v4074
    %4212 = vmatprep.subr.bf16.mxu0 %v4081
    %4213 = vmatpush1.bf16.msra.mxu0 %v4080
    %4214 = vmatprep.mubr.bf16.mxu0 %v3603
    %4215 = vmatmul.mubr.bf16.gmra.mrb[0].mxu0 %v3602
    %v4216 = vpop.f32.mrb[0].mxu0
    %v4217 = vadd.f32 0.0, %v4216
    %v4218 = vpop.f32.mrb[0].mxu0
    %v4219 = vadd.f32 0.0, %v4218
    %v4220 = vpop.f32.mrb[0].mxu0
    %v4221 = vadd.f32 0.0, %v4220
    %v4222 = vpop.f32.mrb[0].mxu0
    %v4223 = vadd.f32 0.0, %v4222
    %4224 = vmatprep.mubr.bf16.mxu0 %v3605
    %4225 = vmatmul.mubr.bf16.gmra.mrb[0].mxu0 %v3604
    %v4226 = vpop.f32.mrb[0].mxu0
    %v4227 = vadd.f32 0.0, %v4226
    %v4228 = vpop.f32.mrb[0].mxu0
    %v4229 = vadd.f32 0.0, %v4228
    %v4230 = vpop.f32.mrb[0].mxu0
    %v4231 = vadd.f32 0.0, %v4230
    %v4232 = vpop.f32.mrb[0].mxu0
    %v4233 = vadd.f32 0.0, %v4232
    %4234 = vdwg.mxu0
    %4235 = vmatprep.subr.bf16.mxu0 %v3993
    %4236 = vmatpush1.bf16.msra.mxu0 %v3992
    %4237 = vmatprep.subr.bf16.mxu0 %v3999
    %4238 = vmatpush1.bf16.msra.mxu0 %v3998
    %4239 = vmatprep.subr.bf16.mxu0 %v4005
    %4240 = vmatpush1.bf16.msra.mxu0 %v4004
    %4241 = vmatprep.subr.bf16.mxu0 %v4011
    %4242 = vmatpush1.bf16.msra.mxu0 %v4010
    %4243 = vmatprep.subr.bf16.mxu0 %v4017
    %4244 = vmatpush1.bf16.msra.mxu0 %v4016
    %4245 = vmatprep.subr.bf16.mxu0 %v4023
    %4246 = vmatpush1.bf16.msra.mxu0 %v4022
    %4247 = vmatprep.subr.bf16.mxu0 %v4029
    %4248 = vmatpush1.bf16.msra.mxu0 %v4028
    %4249 = vmatprep.subr.bf16.mxu0 %v4035
    %4250 = vmatpush1.bf16.msra.mxu0 %v4034
    %4251 = vmatprep.subr.bf16.mxu0 %v4041
    %4252 = vmatpush1.bf16.msra.mxu0 %v4040
    %4253 = vmatprep.subr.bf16.mxu0 %v4047
    %4254 = vmatpush1.bf16.msra.mxu0 %v4046
    %4255 = vmatprep.subr.bf16.mxu0 %v4053
    %4256 = vmatpush1.bf16.msra.mxu0 %v4052
    %4257 = vmatprep.subr.bf16.mxu0 %v4059
    %4258 = vmatpush1.bf16.msra.mxu0 %v4058
    %4259 = vmatprep.subr.bf16.mxu0 %v4065
    %4260 = vmatpush1.bf16.msra.mxu0 %v4064
    %4261 = vmatprep.subr.bf16.mxu0 %v4071
    %4262 = vmatpush1.bf16.msra.mxu0 %v4070
    %4263 = vmatprep.subr.bf16.mxu0 %v4077
    %4264 = vmatpush1.bf16.msra.mxu0 %v4076
    %4265 = vmatprep.subr.bf16.mxu0 %v4083
    %4266 = vmatpush1.bf16.msra.mxu0 %v4082
    %4267 = vmatprep.mubr.bf16.mxu0 %v3603
    %4268 = vmatmul.mubr.bf16.gmra.mrb[0].mxu0 %v3602
    %v4269 = vpop.f32.mrb[0].mxu0
    %v4270 = vadd.f32 0.0, %v4269
    %v4271 = vpop.f32.mrb[0].mxu0
    %v4272 = vadd.f32 0.0, %v4271
    %v4273 = vpop.f32.mrb[0].mxu0
    %v4274 = vadd.f32 0.0, %v4273
    %v4275 = vpop.f32.mrb[0].mxu0
    %v4276 = vadd.f32 0.0, %v4275
    %4277 = vmatprep.mubr.bf16.mxu0 %v3605
    %4278 = vmatmul.mubr.bf16.gmra.mrb[0].mxu0 %v3604
    %v4279 = vpop.f32.mrb[0].mxu0
    %v4280 = vadd.f32 0.0, %v4279
    %v4281 = vpop.f32.mrb[0].mxu0
    %v4282 = vadd.f32 0.0, %v4281
    %v4283 = vpop.f32.mrb[0].mxu0
    %v4284 = vadd.f32 0.0, %v4283
    %v4285 = vpop.f32.mrb[0].mxu0
    %v4286 = vadd.f32 0.0, %v4285
    %4287 = vdwg.mxu0
    %4288 = vmatprep.subr.bf16.mxu0 %v3995
    %4289 = vmatpush1.bf16.msra.mxu0 %v3994
    %4290 = vmatprep.subr.bf16.mxu0 %v4001
    %4291 = vmatpush1.bf16.msra.mxu0 %v4000
    %4292 = vmatprep.subr.bf16.mxu0 %v4007
    %4293 = vmatpush1.bf16.msra.mxu0 %v4006
    %4294 = vmatprep.subr.bf16.mxu0 %v4013
    %4295 = vmatpush1.bf16.msra.mxu0 %v4012
    %4296 = vmatprep.subr.bf16.mxu0 %v4019
    %4297 = vmatpush1.bf16.msra.mxu0 %v4018
    %4298 = vmatprep.subr.bf16.mxu0 %v4025
    %4299 = vmatpush1.bf16.msra.mxu0 %v4024
    %4300 = vmatprep.subr.bf16.mxu0 %v4031
    %4301 = vmatpush1.bf16.msra.mxu0 %v4030
    %4302 = vmatprep.subr.bf16.mxu0 %v4037
    %4303 = vmatpush1.bf16.msra.mxu0 %v4036
    %4304 = vmatprep.subr.bf16.mxu0 %v4043
    %4305 = vmatpush1.bf16.msra.mxu0 %v4042
    %4306 = vmatprep.subr.bf16.mxu0 %v4049
    %4307 = vmatpush1.bf16.msra.mxu0 %v4048
    %4308 = vmatprep.subr.bf16.mxu0 %v4055
    %4309 = vmatpush1.bf16.msra.mxu0 %v4054
    %4310 = vmatprep.subr.bf16.mxu0 %v4061
    %4311 = vmatpush1.bf16.msra.mxu0 %v4060
    %4312 = vmatprep.subr.bf16.mxu0 %v4067
    %4313 = vmatpush1.bf16.msra.mxu0 %v4066
    %4314 = vmatprep.subr.bf16.mxu0 %v4073
    %4315 = vmatpush1.bf16.msra.mxu0 %v4072
    %4316 = vmatprep.subr.bf16.mxu0 %v4079
    %4317 = vmatpush1.bf16.msra.mxu0 %v4078
    %4318 = vmatprep.subr.bf16.mxu0 %v4085
    %4319 = vmatpush1.bf16.msra.mxu0 %v4084
    %4320 = vmatprep.mubr.bf16.mxu0 %v3603
    %4321 = vmatmul.mubr.bf16.gmra.mrb[0].mxu0 %v3602
    %v4322 = vpop.f32.mrb[0].mxu0
    %v4323 = vadd.f32 0.0, %v4322
    %v4324 = vpop.f32.mrb[0].mxu0
    %v4325 = vadd.f32 0.0, %v4324
    %v4326 = vpop.f32.mrb[0].mxu0
    %v4327 = vadd.f32 0.0, %v4326
    %v4328 = vpop.f32.mrb[0].mxu0
    %v4329 = vadd.f32 0.0, %v4328
    %4330 = vmatprep.mubr.bf16.mxu0 %v3605
    %4331 = vmatmul.mubr.bf16.gmra.mrb[0].mxu0 %v3604
    %v4332 = vpop.f32.mrb[0].mxu0
    %v4333 = vadd.f32 0.0, %v4332
    %v4334 = vpop.f32.mrb[0].mxu0
    %v4335 = vadd.f32 0.0, %v4334
    %v4336 = vpop.f32.mrb[0].mxu0
    %v4337 = vadd.f32 0.0, %v4336
    %v4338 = vpop.f32.mrb[0].mxu0
    %v4339 = vadd.f32 0.0, %v4338
    %4340 = vdwg.mxu0
    %4341 = vst [vmem:[#allocation3] sm:$0xff] %v4217
    %4342 = vst [vmem:[#allocation3 + $0x8] sm:$0xff] %v4219
    %4343 = vst [vmem:[#allocation3 + $0x10] sm:$0xff] %v4221
    %4344 = vst [vmem:[#allocation3 + $0x18] sm:$0xff] %v4223
    %4345 = vst [vmem:[#allocation3 + $0x20] sm:$0xff] %v4227
    %4346 = vst [vmem:[#allocation3 + $0x28] sm:$0xff] %v4229
    %4347 = vst [vmem:[#allocation3 + $0x30] sm:$0x3f] %v4231
    %4348 = vst [vmem:[#allocation3 + $0x38] sm:$0x3f] %v4233
    %v4357 = vrot.slane %v4270, 2
    %v4358 = vrot.slane %v4272, 2
    %v4359 = vrot.slane %v4274, 2
    %v4360 = vsel %vm2068, %v4357, %v4359
    %v4361 = vrot.slane %v4276, 2
    %v4362 = vsel %vm2068, %v4358, %v4361
    %v4363 = vrot.slane %v4280, 2
    %v4364 = vsel %vm2068, %v4359, %v4363
    %v4365 = vrot.slane %v4282, 2
    %v4366 = vsel %vm2068, %v4361, %v4365
    %v4367 = vrot.slane %v4284, 2
    %v4368 = vsel %vm2068, %v4363, %v4367
    %v4369 = vrot.slane %v4286, 2
    %v4370 = vsel %vm2068, %v4365, %v4369
    %4381 = vst [vmem:[#allocation3 + $0x30] sm:$0xc0] %v4357
    %4382 = vst [vmem:[#allocation3 + $0x38] sm:$0xc0] %v4358
    %4383 = vst [vmem:[#allocation3 + $0x40] sm:$0xff] %v4360
    %4384 = vst [vmem:[#allocation3 + $0x48] sm:$0xff] %v4362
    %4385 = vst [vmem:[#allocation3 + $0x50] sm:$0xff] %v4364
    %4386 = vst [vmem:[#allocation3 + $0x58] sm:$0xff] %v4366
    %4387 = vst [vmem:[#allocation3 + $0x60] sm:$0xff] %v4368
    %4388 = vst [vmem:[#allocation3 + $0x68] sm:$0xff] %v4370
    %4389 = vst [vmem:[#allocation3 + $0x70] sm:$0xf] %v4367
    %4390 = vst [vmem:[#allocation3 + $0x78] sm:$0xf] %v4369
    %v4399 = vrot.slane %v4323, 4
    %v4400 = vrot.slane %v4325, 4
    %v4401 = vrot.slane %v4327, 4
    %v4402 = vsel %vm3115, %v4399, %v4401
    %v4403 = vrot.slane %v4329, 4
    %v4404 = vsel %vm3115, %v4400, %v4403
    %v4405 = vrot.slane %v4333, 4
    %v4406 = vsel %vm3115, %v4401, %v4405
    %v4407 = vrot.slane %v4335, 4
    %v4408 = vsel %vm3115, %v4403, %v4407
    %v4409 = vrot.slane %v4337, 4
    %v4410 = vsel %vm3115, %v4405, %v4409
    %v4411 = vrot.slane %v4339, 4
    %v4412 = vsel %vm3115, %v4407, %v4411
    %4423 = vst [vmem:[#allocation3 + $0x70] sm:$0xf0] %v4399
    %4424 = vst [vmem:[#allocation3 + $0x78] sm:$0xf0] %v4400
    %4425 = vst [vmem:[#allocation3 + $0x80] sm:$0xff] %v4402
    %4426 = vst [vmem:[#allocation3 + $0x88] sm:$0xff] %v4404
    %4427 = vst [vmem:[#allocation3 + $0x90] sm:$0xff] %v4406
    %4428 = vst [vmem:[#allocation3 + $0x98] sm:$0xff] %v4408
    %4429 = vst [vmem:[#allocation3 + $0xa0] sm:$0xff] %v4410
    %4430 = vst [vmem:[#allocation3 + $0xa8] sm:$0xff] %v4412
    %4431 = vst [vmem:[#allocation3 + $0xb0] sm:$0x3] %v4409
    %4432 = vst [vmem:[#allocation3 + $0xb8] sm:$0x3] %v4411
    %v4433 = vld [vmem:[#allocation3] sm:$0xff]
    %v4434 = vld [vmem:[#allocation3 + $0x8] sm:$0xff]
    %v4435 = vld [vmem:[#allocation3 + $0x10] sm:$0xff]
    %v4436 = vld [vmem:[#allocation3 + $0x18] sm:$0xff]
    %v4437 = vld [vmem:[#allocation3 + $0x20] sm:$0xff]
    %v4438 = vld [vmem:[#allocation3 + $0x28] sm:$0xff]
    %v4439 = vld [vmem:[#allocation3 + $0x30] sm:$0xff]
    %v4440 = vld [vmem:[#allocation3 + $0x38] sm:$0xff]
    %v4441 = vld [vmem:[#allocation3 + $0x40] sm:$0xff]
    %v4442 = vld [vmem:[#allocation3 + $0x48] sm:$0xff]
    %v4443 = vld [vmem:[#allocation3 + $0x50] sm:$0xff]
    %v4444 = vld [vmem:[#allocation3 + $0x58] sm:$0xff]
    %v4445 = vld [vmem:[#allocation3 + $0x60] sm:$0xff]
    %v4446 = vld [vmem:[#allocation3 + $0x68] sm:$0xff]
    %v4447 = vld [vmem:[#allocation3 + $0x70] sm:$0xff]
    %v4448 = vld [vmem:[#allocation3 + $0x78] sm:$0xff]
    %v4449 = vld [vmem:[#allocation3 + $0x80] sm:$0xff]
    %v4450 = vld [vmem:[#allocation3 + $0x88] sm:$0xff]
    %v4451 = vld [vmem:[#allocation3 + $0x90] sm:$0xff]
    %v4452 = vld [vmem:[#allocation3 + $0x98] sm:$0xff]
    %v4453 = vld [vmem:[#allocation3 + $0xa0] sm:$0xff]
    %v4454 = vld [vmem:[#allocation3 + $0xa8] sm:$0xff]
    %v4455 = vld [vmem:[#allocation3 + $0xb0] sm:$0x3]
    %v4456 = vld [vmem:[#allocation3 + $0xb8] sm:$0x3]
    %v4457 = vld [vmem:[%s41] sm:$0xff]
    %v4458 = vld [vmem:[%s41 + $0x8] sm:$0xff]
    %v4459 = vld [vmem:[%s41 + $0x10] sm:$0xff]
    %v4460 = vld [vmem:[%s41 + $0x18] sm:$0xff]
    %v4461 = vld [vmem:[%s41 + $0x20] sm:$0xff]
    %v4462 = vld [vmem:[%s41 + $0x28] sm:$0xff]
    %v4463 = vld [vmem:[%s41 + $0x30] sm:$0xff]
    %v4464 = vld [vmem:[%s41 + $0x38] sm:$0xff]
    %v4465 = vld [vmem:[%s43] sm:$0x3]
    %v4467 = vlaneseq
    %v4468 = vshrl.u32 %v4467, 7
    %v4469 = vsub.s32 0, %v4468
    %v4470 = vrot.slane %v4465, %v4469
    %v4471 = vlaneseq
    %v4472 = vshrl.u32 %v4471, 7
    %v4473 = vsub.s32 1, %v4472
    %v4474 = vrot.slane %v4465, %v4473
    %vm4477 = vcmask 736256
    %v4479 = vsel %vm4477, %v4457, 0
    %v4482 = vsel %vm4477, %v4458, 0
    %v4485 = vsel %vm4477, %v4459, 0
    %v4488 = vsel %vm4477, %v4460, 0
    %v4491 = vsel %vm4477, %v4461, 0
    %v4494 = vsel %vm4477, %v4462, 0
    %v4497 = vsel %vm4477, %v4463, 0
    %v4500 = vsel %vm4477, %v4464, 0
    %v4503 = vsel %vm1984, %v4455, 0
    %v4506 = vsel %vm1984, %v4456, 0
    %4508 = vmatprep.subr.mxu0 %v4434
    %4509 = vmatpush1.msra.mxu0 %v4433
    %4510 = vmatprep.subr.mxu0 %v4436
    %4511 = vmatpush1.msra.mxu0 %v4435
    %4512 = vmatprep.subr.mxu0 %v4438
    %4513 = vmatpush1.msra.mxu0 %v4437
    %4514 = vmatprep.subr.mxu0 %v4440
    %4515 = vmatpush1.msra.mxu0 %v4439
    %4516 = vmatprep.subr.mxu0 %v4442
    %4517 = vmatpush1.msra.mxu0 %v4441
    %4518 = vmatprep.subr.mxu0 %v4444
    %4519 = vmatpush1.msra.mxu0 %v4443
    %4520 = vmatprep.subr.mxu0 %v4446
    %4521 = vmatpush1.msra.mxu0 %v4445
    %4522 = vmatprep.subr.mxu0 %v4448
    %4523 = vmatpush1.msra.mxu0 %v4447
    %4524 = vmatprep.subr.mxu0 %v4450
    %4525 = vmatpush1.msra.mxu0 %v4449
    %4526 = vmatprep.subr.mxu0 %v4452
    %4527 = vmatpush1.msra.mxu0 %v4451
    %4528 = vmatprep.subr.mxu0 %v4454
    %4529 = vmatpush1.msra.mxu0 %v4453
    %4530 = vmatprep.subr.mxu0 %v4506
    %4531 = vmatpush1.msra.mxu0 %v4503
    %4532 = vmatprep.subr.mxu0 0.0
    %4533 = vmatpush1.msra.mxu0 0.0
    %4534 = vmatprep.subr.mxu0 0.0
    %4535 = vmatpush1.msra.mxu0 0.0
    %4536 = vmatprep.subr.mxu0 0.0
    %4537 = vmatpush1.msra.mxu0 0.0
    %4538 = vmatprep.subr.mxu0 0.0
    %4539 = vmatpush1.msra.mxu0 0.0
    %4540 = vmatprep.subr.mxu0 0.0
    %4541 = vmatpush1.msra.mxu0 0.0
    %4542 = vmatprep.subr.mxu0 0.0
    %4543 = vmatpush1.msra.mxu0 0.0
    %4544 = vmatprep.subr.mxu0 0.0
    %4545 = vmatpush1.msra.mxu0 0.0
    %4546 = vmatprep.subr.mxu0 0.0
    %4547 = vmatpush1.msra.mxu0 0.0
    %4548 = vmatprep.subr.mxu0 0.0
    %4549 = vmatpush1.msra.mxu0 0.0
    %4550 = vmatprep.subr.mxu0 0.0
    %4551 = vmatpush1.msra.mxu0 0.0
    %4552 = vmatprep.subr.mxu0 0.0
    %4553 = vmatpush1.msra.mxu0 0.0
    %4554 = vmatprep.subr.mxu0 0.0
    %4555 = vmatpush1.msra.mxu0 0.0
    %4556 = vmatprep.subr.mxu0 0.0
    %4557 = vmatpush1.msra.mxu0 0.0
    %4558 = vmatprep.subr.mxu0 0.0
    %4559 = vmatpush1.msra.mxu0 0.0
    %4560 = vmatprep.subr.mxu0 0.0
    %4561 = vmatpush1.msra.mxu0 0.0
    %4562 = vmatprep.subr.mxu0 0.0
    %4563 = vmatpush1.msra.mxu0 0.0
    %4564 = vmatprep.subr.mxu0 0.0
    %4565 = vmatpush1.msra.mxu0 0.0
    %4566 = vmatprep.subr.mxu0 0.0
    %4567 = vmatpush1.msra.mxu0 0.0
    %4568 = vmatprep.subr.mxu0 0.0
    %4569 = vmatpush1.msra.mxu0 0.0
    %4570 = vmatprep.subr.mxu0 0.0
    %4571 = vmatpush1.msra.mxu0 0.0
    %4572 = vmatprep.mubr.f32.mxu0 0.0
    %4573 = vmatmul.mubr.f32.gmra.mrb[0].mxu0 %v4479
    %v4574 = vpop.f32.mrb[0].mxu0
    %v4575 = vadd.f32 %v4470, %v4574
    %v4576 = vpop.f32.mrb[0].mxu0
    %v4577 = vadd.f32 %v4474, %v4576
    %4578 = vmatprep.mubr.f32.mxu0 0.0
    %4579 = vmatmul.mubr.f32.gmra.mrb[0].mxu0 %v4482
    %v4580 = vpop.f32.mrb[0].mxu0
    %v4581 = vadd.f32 %v4470, %v4580
    %v4582 = vpop.f32.mrb[0].mxu0
    %v4583 = vadd.f32 %v4474, %v4582
    %4584 = vmatprep.mubr.f32.mxu0 0.0
    %4585 = vmatmul.mubr.f32.gmra.mrb[0].mxu0 %v4485
    %v4586 = vpop.f32.mrb[0].mxu0
    %v4587 = vadd.f32 %v4470, %v4586
    %v4588 = vpop.f32.mrb[0].mxu0
    %v4589 = vadd.f32 %v4474, %v4588
    %4590 = vmatprep.mubr.f32.mxu0 0.0
    %4591 = vmatmul.mubr.f32.gmra.mrb[0].mxu0 %v4488
    %v4592 = vpop.f32.mrb[0].mxu0
    %v4593 = vadd.f32 %v4470, %v4592
    %v4594 = vpop.f32.mrb[0].mxu0
    %v4595 = vadd.f32 %v4474, %v4594
    %4596 = vmatprep.mubr.f32.mxu0 0.0
    %4597 = vmatmul.mubr.f32.gmra.mrb[0].mxu0 %v4491
    %v4598 = vpop.f32.mrb[0].mxu0
    %v4599 = vadd.f32 %v4470, %v4598
    %v4600 = vpop.f32.mrb[0].mxu0
    %v4601 = vadd.f32 %v4474, %v4600
    %4602 = vmatprep.mubr.f32.mxu0 0.0
    %4603 = vmatmul.mubr.f32.gmra.mrb[0].mxu0 %v4494
    %v4604 = vpop.f32.mrb[0].mxu0
    %v4605 = vadd.f32 %v4470, %v4604
    %v4606 = vpop.f32.mrb[0].mxu0
    %v4607 = vadd.f32 %v4474, %v4606
    %4608 = vmatprep.mubr.f32.mxu0 0.0
    %4609 = vmatmul.mubr.f32.gmra.mrb[0].mxu0 %v4497
    %v4610 = vpop.f32.mrb[0].mxu0
    %v4611 = vadd.f32 %v4470, %v4610
    %v4612 = vpop.f32.mrb[0].mxu0
    %v4613 = vadd.f32 %v4474, %v4612
    %4614 = vmatprep.mubr.f32.mxu0 0.0
    %4615 = vmatmul.mubr.f32.gmra.mrb[0].mxu0 %v4500
    %v4616 = vpop.f32.mrb[0].mxu0
    %v4617 = vadd.f32 %v4470, %v4616
    %v4618 = vpop.f32.mrb[0].mxu0
    %v4619 = vadd.f32 %v4474, %v4618
    %4620 = vdwg.mxu0
    %v4621 = vadd.f32 %v4575, %v4581
    %v4622 = vadd.f32 %v4621, %v4587
    %v4623 = vadd.f32 %v4622, %v4593
    %v4624 = vadd.f32 %v4623, %v4599
    %v4625 = vadd.f32 %v4624, %v4605
    %v4626 = vadd.f32 %v4625, %v4611
    %v4627 = vadd.f32 %v4626, %v4617
    %v4628 = vrot.slane %v4627, 4
    %v4629 = vadd.f32 %v4627, %v4628
    %v4630 = vrot.slane %v4629, 2
    %v4631 = vadd.f32 %v4629, %v4630
    %v4632 = vrot.slane %v4631, 1
    %v4633 = vadd.f32 %v4631, %v4632
    %v4634 = vadd.f32 %v4577, %v4583
    %v4635 = vadd.f32 %v4634, %v4589
    %v4636 = vadd.f32 %v4635, %v4595
    %v4637 = vadd.f32 %v4636, %v4601
    %v4638 = vadd.f32 %v4637, %v4607
    %v4639 = vadd.f32 %v4638, %v4613
    %v4640 = vadd.f32 %v4639, %v4619
    %v4641 = vrot.slane %v4640, 4
    %v4642 = vadd.f32 %v4640, %v4641
    %v4643 = vrot.slane %v4642, 2
    %v4644 = vadd.f32 %v4642, %v4643
    %v4645 = vrot.slane %v4644, 1
    %v4646 = vadd.f32 %v4644, %v4645
    %v4647 = vmul.f32 %v4575, %v4575
    %v4648 = vmul.f32 %v4577, %v4577
    %v4649 = vmul.f32 %v4581, %v4581
    %v4650 = vmul.f32 %v4583, %v4583
    %v4651 = vmul.f32 %v4587, %v4587
    %v4652 = vmul.f32 %v4589, %v4589
    %v4653 = vmul.f32 %v4593, %v4593
    %v4654 = vmul.f32 %v4595, %v4595
    %v4655 = vmul.f32 %v4599, %v4599
    %v4656 = vmul.f32 %v4601, %v4601
    %v4657 = vmul.f32 %v4605, %v4605
    %v4658 = vmul.f32 %v4607, %v4607
    %v4659 = vmul.f32 %v4611, %v4611
    %v4660 = vmul.f32 %v4613, %v4613
    %v4661 = vmul.f32 %v4617, %v4617
    %v4662 = vmul.f32 %v4619, %v4619
    %v4663 = vadd.f32 %v4647, %v4649
    %v4664 = vadd.f32 %v4663, %v4651
    %v4665 = vadd.f32 %v4664, %v4653
    %v4666 = vadd.f32 %v4665, %v4655
    %v4667 = vadd.f32 %v4666, %v4657
    %v4668 = vadd.f32 %v4667, %v4659
    %v4669 = vadd.f32 %v4668, %v4661
    %v4670 = vrot.slane %v4669, 4
    %v4671 = vadd.f32 %v4669, %v4670
    %v4672 = vrot.slane %v4671, 2
    %v4673 = vadd.f32 %v4671, %v4672
    %v4674 = vrot.slane %v4673, 1
    %v4675 = vadd.f32 %v4673, %v4674
    %v4676 = vadd.f32 %v4648, %v4650
    %v4677 = vadd.f32 %v4676, %v4652
    %v4678 = vadd.f32 %v4677, %v4654
    %v4679 = vadd.f32 %v4678, %v4656
    %v4680 = vadd.f32 %v4679, %v4658
    %v4681 = vadd.f32 %v4680, %v4660
    %v4682 = vadd.f32 %v4681, %v4662
    %v4683 = vrot.slane %v4682, 4
    %v4684 = vadd.f32 %v4682, %v4683
    %v4685 = vrot.slane %v4684, 2
    %v4686 = vadd.f32 %v4684, %v4685
    %v4687 = vrot.slane %v4686, 1
    %v4688 = vadd.f32 %v4686, %v4687
    %v4689 = vsel %vm2105, %v4633, %v4675
    %v4690 = vsel %vm2105, %v4646, %v4688
    %v4691 = vld [vmem:[#allocation21] sm:$0xff]
    %v4692 = vld [vmem:[#allocation21 + $0x8] sm:$0xff]
    %v4693 = vld [vmem:[#allocation21 + $0x10] sm:$0xff]
    %v4694 = vld [vmem:[#allocation21 + $0x18] sm:$0xff]
    %v4695 = vld [vmem:[#allocation21 + $0x20] sm:$0xff]
    %v4696 = vld [vmem:[#allocation21 + $0x28] sm:$0xff]
    %v4697 = vld [vmem:[#allocation21 + $0x30] sm:$0xff]
    %v4698 = vld [vmem:[#allocation21 + $0x38] sm:$0xff]
    %v4699 = vld [vmem:[#allocation21 + $0x40] sm:$0xff]
    %v4700 = vld [vmem:[#allocation21 + $0x48] sm:$0xff]
    %v4701 = vld [vmem:[#allocation21 + $0x50] sm:$0xff]
    %v4702 = vld [vmem:[#allocation21 + $0x58] sm:$0xff]
    %v4703 = vld [vmem:[#allocation21 + $0x60] sm:$0xff]
    %v4704 = vld [vmem:[#allocation21 + $0x68] sm:$0xff]
    %v4705 = vld [vmem:[#allocation21 + $0x70] sm:$0xff]
    %v4706 = vld [vmem:[#allocation21 + $0x78] sm:$0xff]
    %v4707 = vld [vmem:[#allocation21 + $0x80] sm:$0xff]
    %v4708 = vld [vmem:[#allocation21 + $0x88] sm:$0xff]
    %v4709 = vld [vmem:[#allocation21 + $0x90] sm:$0xff]
    %v4710 = vld [vmem:[#allocation21 + $0x98] sm:$0xff]
    %v4711 = vld [vmem:[#allocation21 + $0xa0] sm:$0xff]
    %v4712 = vld [vmem:[#allocation21 + $0xa8] sm:$0xff]
    %v4713 = vld [vmem:[#allocation21 + $0xb0] sm:$0xff]
    %v4714 = vld [vmem:[#allocation21 + $0xb8] sm:$0xff]
    %v4715 = vld [vmem:[#allocation21 + $0xc0] sm:$0xff]
    %v4716 = vld [vmem:[#allocation21 + $0xc8] sm:$0xff]
    %v4717 = vld [vmem:[#allocation21 + $0xd0] sm:$0xff]
    %v4718 = vld [vmem:[#allocation21 + $0xd8] sm:$0xff]
    %v4719 = vld [vmem:[#allocation21 + $0xe0] sm:$0xff]
    %v4720 = vld [vmem:[#allocation21 + $0xe8] sm:$0xff]
    %v4721 = vld [vmem:[#allocation21 + $0xf0] sm:$0xff]
    %v4722 = vld [vmem:[#allocation21 + $0xf8] sm:$0xff]
    %4723 = vmatprep.subr.mxu0 0.0
    %4724 = vmatpush1.msra.mxu0 %v4691
    %4725 = vmatprep.subr.mxu0 0.0
    %4726 = vmatpush1.msra.mxu0 %v4692
    %4727 = vmatprep.subr.mxu0 0.0
    %4728 = vmatpush1.msra.mxu0 %v4693
    %4729 = vmatprep.subr.mxu0 0.0
    %4730 = vmatpush1.msra.mxu0 %v4694
    %4731 = vmatprep.subr.mxu0 0.0
    %4732 = vmatpush1.msra.mxu0 %v4695
    %4733 = vmatprep.subr.mxu0 0.0
    %4734 = vmatpush1.msra.mxu0 %v4696
    %4735 = vmatprep.subr.mxu0 0.0
    %4736 = vmatpush1.msra.mxu0 %v4697
    %4737 = vmatprep.subr.mxu0 0.0
    %4738 = vmatpush1.msra.mxu0 %v4698
    %4739 = vmatprep.subr.mxu0 0.0
    %4740 = vmatpush1.msra.mxu0 %v4699
    %4741 = vmatprep.subr.mxu0 0.0
    %4742 = vmatpush1.msra.mxu0 %v4700
    %4743 = vmatprep.subr.mxu0 0.0
    %4744 = vmatpush1.msra.mxu0 %v4701
    %4745 = vmatprep.subr.mxu0 0.0
    %4746 = vmatpush1.msra.mxu0 %v4702
    %4747 = vmatprep.subr.mxu0 0.0
    %4748 = vmatpush1.msra.mxu0 %v4703
    %4749 = vmatprep.subr.mxu0 0.0
    %4750 = vmatpush1.msra.mxu0 %v4704
    %4751 = vmatprep.subr.mxu0 0.0
    %4752 = vmatpush1.msra.mxu0 %v4705
    %4753 = vmatprep.subr.mxu0 0.0
    %4754 = vmatpush1.msra.mxu0 %v4706
    %4755 = vmatprep.subr.mxu0 0.0
    %4756 = vmatpush1.msra.mxu0 %v4707
    %4757 = vmatprep.subr.mxu0 0.0
    %4758 = vmatpush1.msra.mxu0 %v4708
    %4759 = vmatprep.subr.mxu0 0.0
    %4760 = vmatpush1.msra.mxu0 %v4709
    %4761 = vmatprep.subr.mxu0 0.0
    %4762 = vmatpush1.msra.mxu0 %v4710
    %4763 = vmatprep.subr.mxu0 0.0
    %4764 = vmatpush1.msra.mxu0 %v4711
    %4765 = vmatprep.subr.mxu0 0.0
    %4766 = vmatpush1.msra.mxu0 %v4712
    %4767 = vmatprep.subr.mxu0 0.0
    %4768 = vmatpush1.msra.mxu0 %v4713
    %4769 = vmatprep.subr.mxu0 0.0
    %4770 = vmatpush1.msra.mxu0 %v4714
    %4771 = vmatprep.subr.mxu0 0.0
    %4772 = vmatpush1.msra.mxu0 %v4715
    %4773 = vmatprep.subr.mxu0 0.0
    %4774 = vmatpush1.msra.mxu0 %v4716
    %4775 = vmatprep.subr.mxu0 0.0
    %4776 = vmatpush1.msra.mxu0 %v4717
    %4777 = vmatprep.subr.mxu0 0.0
    %4778 = vmatpush1.msra.mxu0 %v4718
    %4779 = vmatprep.subr.mxu0 0.0
    %4780 = vmatpush1.msra.mxu0 %v4719
    %4781 = vmatprep.subr.mxu0 0.0
    %4782 = vmatpush1.msra.mxu0 %v4720
    %4783 = vmatprep.subr.mxu0 0.0
    %4784 = vmatpush1.msra.mxu0 %v4721
    %4785 = vmatprep.subr.mxu0 0.0
    %4786 = vmatpush1.msra.mxu0 %v4722
    %4787 = vmatprep.mubr.f32.mxu0 %v4690
    %4788 = vmatmul.mubr.f32.gmra.mrb[0].mxu0 %v4689
    %v4789 = vpop.f32.mrb[0].mxu0
    %v4790 = vadd.f32 0.0, %v4789
    %v4791 = vpop.f32.mrb[0].mxu0
    %4792 = vdwg.mxu0
    %v4793 = vmul.f32 %v4790, 0.00048828125
    %v4794 = vmul.f32 %v4793, %v4793
    %v4796 = vrot.slane %v4794, 7
    %v4798 = vsub.f32 %v4793, %v4796
    %v4799 = vld [vmem:[#allocation24] sm:$0x1]
    %v4800 = vadd.f32 %v4798, 1e-05
    %v4801 = vrsqrt.pop %v4800
    %v4804 = vunpack.c.l.s4 1966171168
    %v4805 = vunpack.c.0.s8 %v4804
    %v4806 = vlaneseq
    %v4807 = vshrl.u32 %v4806, 7
    %v4808 = vsub.s32 %v4805, %v4807
    %v4809 = vrot.slane %v4801, %v4808
    %v4810 = vcombine.high %v4809, %v4809
    %v4812 = vunpack.c.l.s4 1966171168
    %v4813 = vunpack.c.0.s8 %v4812
    %v4814 = vlaneseq
    %v4815 = vshrl.u32 %v4814, 7
    %v4816 = vsub.s32 %v4813, %v4815
    %v4817 = vrot.slane %v4810, %v4816
    %v4819 = vmul.f32 %v4799, %v4817
    %v4820 = vld [vmem:[#allocation25] sm:$0x1]
    %v4821 = vmul.f32 %v4793, %v4819
    %v4822 = vsub.f32 %v4820, %v4821
    %v4824 = vlaneseq
    %v4825 = vshrl.u32 %v4824, 7
    %v4826 = vsub.s32 0, %v4825
    %v4827 = vrot.slane %v4822, %v4826
    %v4829 = vsel %vm2105, %v4819, %v4827
    %v4830 = vld [vmem:[#allocation22] sm:$0xff]
    %v4831 = vld [vmem:[#allocation22 + $0x8] sm:$0xff]
    %v4832 = vld [vmem:[#allocation22 + $0x10] sm:$0xff]
    %v4833 = vld [vmem:[#allocation22 + $0x18] sm:$0xff]
    %v4834 = vld [vmem:[#allocation22 + $0x20] sm:$0xff]
    %v4835 = vld [vmem:[#allocation22 + $0x28] sm:$0xff]
    %v4836 = vld [vmem:[#allocation22 + $0x30] sm:$0xff]
    %v4837 = vld [vmem:[#allocation22 + $0x38] sm:$0xff]
    %v4838 = vld [vmem:[#allocation22 + $0x40] sm:$0xff]
    %v4839 = vld [vmem:[#allocation22 + $0x48] sm:$0xff]
    %v4840 = vld [vmem:[#allocation22 + $0x50] sm:$0xff]
    %v4841 = vld [vmem:[#allocation22 + $0x58] sm:$0xff]
    %v4842 = vld [vmem:[#allocation22 + $0x60] sm:$0xff]
    %v4843 = vld [vmem:[#allocation22 + $0x68] sm:$0xff]
    %v4844 = vld [vmem:[#allocation22 + $0x70] sm:$0xff]
    %v4845 = vld [vmem:[#allocation22 + $0x78] sm:$0xff]
    %v4846 = vld [vmem:[#allocation22 + $0x80] sm:$0xff]
    %v4847 = vld [vmem:[#allocation22 + $0x88] sm:$0xff]
    %v4848 = vld [vmem:[#allocation22 + $0x90] sm:$0xff]
    %v4849 = vld [vmem:[#allocation22 + $0x98] sm:$0xff]
    %v4850 = vld [vmem:[#allocation22 + $0xa0] sm:$0xff]
    %v4851 = vld [vmem:[#allocation22 + $0xa8] sm:$0xff]
    %v4852 = vld [vmem:[#allocation22 + $0xb0] sm:$0xff]
    %v4853 = vld [vmem:[#allocation22 + $0xb8] sm:$0xff]
    %v4854 = vld [vmem:[#allocation22 + $0xc0] sm:$0xff]
    %v4855 = vld [vmem:[#allocation22 + $0xc8] sm:$0xff]
    %v4856 = vld [vmem:[#allocation22 + $0xd0] sm:$0xff]
    %v4857 = vld [vmem:[#allocation22 + $0xd8] sm:$0xff]
    %v4858 = vld [vmem:[#allocation22 + $0xe0] sm:$0xff]
    %v4859 = vld [vmem:[#allocation22 + $0xe8] sm:$0xff]
    %v4860 = vld [vmem:[#allocation22 + $0xf0] sm:$0xff]
    %v4861 = vld [vmem:[#allocation22 + $0xf8] sm:$0xff]
    %4862 = vmatprep.subr.mxu0 %v4831
    %4863 = vmatpush1.msra.mxu0 %v4830
    %4864 = vmatprep.subr.mxu0 %v4833
    %4865 = vmatpush1.msra.mxu0 %v4832
    %4866 = vmatprep.subr.mxu0 %v4835
    %4867 = vmatpush1.msra.mxu0 %v4834
    %4868 = vmatprep.subr.mxu0 %v4837
    %4869 = vmatpush1.msra.mxu0 %v4836
    %4870 = vmatprep.subr.mxu0 %v4839
    %4871 = vmatpush1.msra.mxu0 %v4838
    %4872 = vmatprep.subr.mxu0 %v4841
    %4873 = vmatpush1.msra.mxu0 %v4840
    %4874 = vmatprep.subr.mxu0 %v4843
    %4875 = vmatpush1.msra.mxu0 %v4842
    %4876 = vmatprep.subr.mxu0 %v4845
    %4877 = vmatpush1.msra.mxu0 %v4844
    %4878 = vmatprep.subr.mxu0 %v4847
    %4879 = vmatpush1.msra.mxu0 %v4846
    %4880 = vmatprep.subr.mxu0 %v4849
    %4881 = vmatpush1.msra.mxu0 %v4848
    %4882 = vmatprep.subr.mxu0 %v4851
    %4883 = vmatpush1.msra.mxu0 %v4850
    %4884 = vmatprep.subr.mxu0 %v4853
    %4885 = vmatpush1.msra.mxu0 %v4852
    %4886 = vmatprep.subr.mxu0 %v4855
    %4887 = vmatpush1.msra.mxu0 %v4854
    %4888 = vmatprep.subr.mxu0 %v4857
    %4889 = vmatpush1.msra.mxu0 %v4856
    %4890 = vmatprep.subr.mxu0 %v4859
    %4891 = vmatpush1.msra.mxu0 %v4858
    %4892 = vmatprep.subr.mxu0 %v4861
    %4893 = vmatpush1.msra.mxu0 %v4860
    %4894 = vmatprep.subr.mxu0 0.0
    %4895 = vmatpush1.msra.mxu0 0.0
    %4896 = vmatprep.subr.mxu0 0.0
    %4897 = vmatpush1.msra.mxu0 0.0
    %4898 = vmatprep.subr.mxu0 0.0
    %4899 = vmatpush1.msra.mxu0 0.0
    %4900 = vmatprep.subr.mxu0 0.0
    %4901 = vmatpush1.msra.mxu0 0.0
    %4902 = vmatprep.subr.mxu0 0.0
    %4903 = vmatpush1.msra.mxu0 0.0
    %4904 = vmatprep.subr.mxu0 0.0
    %4905 = vmatpush1.msra.mxu0 0.0
    %4906 = vmatprep.subr.mxu0 0.0
    %4907 = vmatpush1.msra.mxu0 0.0
    %4908 = vmatprep.subr.mxu0 0.0
    %4909 = vmatpush1.msra.mxu0 0.0
    %4910 = vmatprep.subr.mxu0 0.0
    %4911 = vmatpush1.msra.mxu0 0.0
    %4912 = vmatprep.subr.mxu0 0.0
    %4913 = vmatpush1.msra.mxu0 0.0
    %4914 = vmatprep.subr.mxu0 0.0
    %4915 = vmatpush1.msra.mxu0 0.0
    %4916 = vmatprep.subr.mxu0 0.0
    %4917 = vmatpush1.msra.mxu0 0.0
    %4918 = vmatprep.subr.mxu0 0.0
    %4919 = vmatpush1.msra.mxu0 0.0
    %4920 = vmatprep.subr.mxu0 0.0
    %4921 = vmatpush1.msra.mxu0 0.0
    %4922 = vmatprep.subr.mxu0 0.0
    %4923 = vmatpush1.msra.mxu0 0.0
    %4924 = vmatprep.subr.mxu0 0.0
    %4925 = vmatpush1.msra.mxu0 0.0
    %4926 = vmatprep.mubr.f32.mxu0 0.0
    %4927 = vmatmul.mubr.f32.gmra.mrb[0].mxu0 %v4829
    %v4928 = vpop.f32.mrb[0].mxu0
    %v4929 = vadd.f32 0.0, %v4928
    %v4930 = vpop.f32.mrb[0].mxu0
    %v4931 = vadd.f32 0.0, %v4930
    %4932 = vdwg.mxu0
    %v4933 = vlaneseq
    %v4934 = vshrl.u32 %v4933, 7
    %v4935 = vsub.s32 0, %v4934
    %v4936 = vrot.slane %v4929, %v4935
    %v4937 = vlaneseq
    %v4938 = vshrl.u32 %v4937, 7
    %v4939 = vsub.s32 0, %v4938
    %v4940 = vrot.slane %v4931, %v4939
    %v4941 = vmul.f32 %v4575, %v4936
    %v4942 = vmul.f32 %v4577, %v4940
    %v4943 = vmul.f32 %v4581, %v4936
    %v4944 = vmul.f32 %v4583, %v4940
    %v4945 = vmul.f32 %v4587, %v4936
    %v4946 = vmul.f32 %v4589, %v4940
    %v4947 = vmul.f32 %v4593, %v4936
    %v4948 = vmul.f32 %v4595, %v4940
    %v4949 = vmul.f32 %v4599, %v4936
    %v4950 = vmul.f32 %v4601, %v4940
    %v4951 = vmul.f32 %v4605, %v4936
    %v4952 = vmul.f32 %v4607, %v4940
    %v4953 = vmul.f32 %v4611, %v4936
    %v4954 = vmul.f32 %v4613, %v4940
    %v4955 = vmul.f32 %v4617, %v4936
    %v4956 = vmul.f32 %v4619, %v4940
    %v4957 = vlaneseq
    %v4958 = vshrl.u32 %v4957, 7
    %v4959 = vsub.s32 1, %v4958
    %v4960 = vrot.slane %v4929, %v4959
    %v4961 = vlaneseq
    %v4962 = vshrl.u32 %v4961, 7
    %v4963 = vsub.s32 1, %v4962
    %v4964 = vrot.slane %v4931, %v4963
    %v4965 = vadd.f32 %v4941, %v4960
    %v4966 = vadd.f32 %v4942, %v4964
    %v4967 = vadd.f32 %v4943, %v4960
    %v4968 = vadd.f32 %v4944, %v4964
    %v4969 = vadd.f32 %v4945, %v4960
    %v4970 = vadd.f32 %v4946, %v4964
    %v4971 = vadd.f32 %v4947, %v4960
    %v4972 = vadd.f32 %v4948, %v4964
    %v4973 = vadd.f32 %v4949, %v4960
    %v4974 = vadd.f32 %v4950, %v4964
    %v4975 = vadd.f32 %v4951, %v4960
    %v4976 = vadd.f32 %v4952, %v4964
    %v4977 = vadd.f32 %v4953, %v4960
    %v4978 = vadd.f32 %v4954, %v4964
    %v4979 = vadd.f32 %v4955, %v4960
    %v4980 = vadd.f32 %v4956, %v4964
    %v4981 = vmax.f32 %v4965, 0.0
    %v4982 = vmax.f32 %v4966, 0.0
    %v4983 = vmax.f32 %v4967, 0.0
    %v4984 = vmax.f32 %v4968, 0.0
    %v4985 = vmax.f32 %v4969, 0.0
    %v4986 = vmax.f32 %v4970, 0.0
    %v4987 = vmax.f32 %v4971, 0.0
    %v4988 = vmax.f32 %v4972, 0.0
    %v4989 = vmax.f32 %v4973, 0.0
    %v4990 = vmax.f32 %v4974, 0.0
    %v4991 = vmax.f32 %v4975, 0.0
    %v4992 = vmax.f32 %v4976, 0.0
    %v4993 = vmax.f32 %v4977, 0.0
    %v4994 = vmax.f32 %v4978, 0.0
    %v4995 = vmax.f32 %v4979, 0.0
    %v4996 = vmax.f32 %v4980, 0.0
    %v4997 = vpack.c.bf16 %v4983, %v4981
    %v4998 = vpack.c.bf16 %v4984, %v4982
    %v4999 = vpack.c.bf16 %v4987, %v4985
    %v5000 = vpack.c.bf16 %v4988, %v4986
    %v5001 = vpack.c.bf16 %v4991, %v4989
    %v5002 = vpack.c.bf16 %v4992, %v4990
    %v5003 = vpack.c.bf16 %v4995, %v4993
    %v5004 = vpack.c.bf16 %v4996, %v4994
    %v5005 = vld [vmem:[%s53] sm:$0xff]
    %v5006 = vld [vmem:[%s53 + $0x8] sm:$0xf]
    %v5007 = vld [vmem:[%s53 + $0xc] sm:$0xff]
    %v5008 = vld [vmem:[%s53 + $0x14] sm:$0xf]
    %v5009 = vld [vmem:[%s53 + $0x18] sm:$0xff]
    %v5010 = vld [vmem:[%s53 + $0x20] sm:$0xf]
    %v5011 = vld [vmem:[%s53 + $0x24] sm:$0xff]
    %v5012 = vld [vmem:[%s53 + $0x2c] sm:$0xf]
    %v5013 = vld [vmem:[%s53 + $0x30] sm:$0xff]
    %v5014 = vld [vmem:[%s53 + $0x38] sm:$0xf]
    %v5015 = vld [vmem:[%s53 + $0x3c] sm:$0xff]
    %v5016 = vld [vmem:[%s53 + $0x44] sm:$0xf]
    %v5017 = vld [vmem:[%s53 + $0x48] sm:$0xff]
    %v5018 = vld [vmem:[%s53 + $0x50] sm:$0xf]
    %v5019 = vld [vmem:[%s53 + $0x54] sm:$0xff]
    %v5020 = vld [vmem:[%s53 + $0x5c] sm:$0xf]
    %v5021 = vld [vmem:[%s53 + $0x60] sm:$0xff]
    %v5022 = vld [vmem:[%s53 + $0x68] sm:$0xf]
    %v5023 = vld [vmem:[%s53 + $0x6c] sm:$0xff]
    %v5024 = vld [vmem:[%s53 + $0x74] sm:$0xf]
    %v5025 = vld [vmem:[%s53 + $0x78] sm:$0xff]
    %v5026 = vld [vmem:[%s53 + $0x80] sm:$0xf]
    %v5027 = vld [vmem:[%s53 + $0x84] sm:$0xff]
    %v5028 = vld [vmem:[%s53 + $0x8c] sm:$0xf]
    %v5029 = vld [vmem:[%s53 + $0x90] sm:$0xff]
    %v5030 = vld [vmem:[%s53 + $0x98] sm:$0xf]
    %v5031 = vld [vmem:[%s53 + $0x9c] sm:$0xff]
    %v5032 = vld [vmem:[%s53 + $0xa4] sm:$0xf]
    %v5033 = vld [vmem:[%s53 + $0xa8] sm:$0xff]
    %v5034 = vld [vmem:[%s53 + $0xb0] sm:$0xf]
    %v5035 = vld [vmem:[%s53 + $0xb4] sm:$0xff]
    %v5036 = vld [vmem:[%s53 + $0xbc] sm:$0xf]
    %v5037 = vld [vmem:[%s53 + $0xc0] sm:$0xff]
    %v5038 = vld [vmem:[%s53 + $0xc8] sm:$0xf]
    %v5039 = vld [vmem:[%s53 + $0xcc] sm:$0xff]
    %v5040 = vld [vmem:[%s53 + $0xd4] sm:$0xf]
    %v5041 = vld [vmem:[%s53 + $0xd8] sm:$0xff]
    %v5042 = vld [vmem:[%s53 + $0xe0] sm:$0xf]
    %v5043 = vld [vmem:[%s53 + $0xe4] sm:$0xff]
    %v5044 = vld [vmem:[%s53 + $0xec] sm:$0xf]
    %v5045 = vld [vmem:[%s53 + $0xf0] sm:$0xff]
    %v5046 = vld [vmem:[%s53 + $0xf8] sm:$0xf]
    %v5047 = vld [vmem:[%s53 + $0xfc] sm:$0xff]
    %v5048 = vld [vmem:[%s53 + $0x104] sm:$0xf]
    %v5049 = vld [vmem:[%s53 + $0x108] sm:$0xff]
    %v5050 = vld [vmem:[%s53 + $0x110] sm:$0xf]
    %v5051 = vld [vmem:[%s53 + $0x114] sm:$0xff]
    %v5052 = vld [vmem:[%s53 + $0x11c] sm:$0xf]
    %v5053 = vld [vmem:[%s53 + $0x120] sm:$0xff]
    %v5054 = vld [vmem:[%s53 + $0x128] sm:$0xf]
    %v5055 = vld [vmem:[%s53 + $0x12c] sm:$0xff]
    %v5056 = vld [vmem:[%s53 + $0x134] sm:$0xf]
    %v5057 = vld [vmem:[%s53 + $0x138] sm:$0xff]
    %v5058 = vld [vmem:[%s53 + $0x140] sm:$0xf]
    %v5059 = vld [vmem:[%s53 + $0x144] sm:$0xff]
    %v5060 = vld [vmem:[%s53 + $0x14c] sm:$0xf]
    %v5061 = vld [vmem:[%s53 + $0x150] sm:$0xff]
    %v5062 = vld [vmem:[%s53 + $0x158] sm:$0xf]
    %v5063 = vld [vmem:[%s53 + $0x15c] sm:$0xff]
    %v5064 = vld [vmem:[%s53 + $0x164] sm:$0xf]
    %v5065 = vld [vmem:[%s53 + $0x168] sm:$0xff]
    %v5066 = vld [vmem:[%s53 + $0x170] sm:$0xf]
    %v5067 = vld [vmem:[%s53 + $0x174] sm:$0xff]
    %v5068 = vld [vmem:[%s53 + $0x17c] sm:$0xf]
    %v5133 = vunpack.c.l.b16 %v5005
    %v5134 = vunpack.c.h.b16 %v5005
    %v5135 = vunpack.c.l.b16 %v5006
    %v5136 = vunpack.c.l.b16 %v5007
    %v5137 = vunpack.c.h.b16 %v5007
    %v5138 = vunpack.c.l.b16 %v5008
    %v5139 = vunpack.c.l.b16 %v5009
    %v5140 = vunpack.c.h.b16 %v5009
    %v5141 = vunpack.c.l.b16 %v5010
    %v5142 = vunpack.c.l.b16 %v5011
    %v5143 = vunpack.c.h.b16 %v5011
    %v5144 = vunpack.c.l.b16 %v5012
    %v5145 = vunpack.c.l.b16 %v5013
    %v5146 = vunpack.c.h.b16 %v5013
    %v5147 = vunpack.c.l.b16 %v5014
    %v5148 = vunpack.c.l.b16 %v5015
    %v5149 = vunpack.c.h.b16 %v5015
    %v5150 = vunpack.c.l.b16 %v5016
    %v5151 = vunpack.c.l.b16 %v5017
    %v5152 = vunpack.c.h.b16 %v5017
    %v5153 = vunpack.c.l.b16 %v5018
    %v5154 = vunpack.c.l.b16 %v5019
    %v5155 = vunpack.c.h.b16 %v5019
    %v5156 = vunpack.c.l.b16 %v5020
    %v5157 = vunpack.c.l.b16 %v5021
    %v5158 = vunpack.c.h.b16 %v5021
    %v5159 = vunpack.c.l.b16 %v5022
    %v5160 = vunpack.c.l.b16 %v5023
    %v5161 = vunpack.c.h.b16 %v5023
    %v5162 = vunpack.c.l.b16 %v5024
    %v5163 = vunpack.c.l.b16 %v5025
    %v5164 = vunpack.c.h.b16 %v5025
    %v5165 = vunpack.c.l.b16 %v5026
    %v5166 = vunpack.c.l.b16 %v5027
    %v5167 = vunpack.c.h.b16 %v5027
    %v5168 = vunpack.c.l.b16 %v5028
    %v5169 = vunpack.c.l.b16 %v5029
    %v5170 = vunpack.c.h.b16 %v5029
    %v5171 = vunpack.c.l.b16 %v5030
    %v5172 = vunpack.c.l.b16 %v5031
    %v5173 = vunpack.c.h.b16 %v5031
    %v5174 = vunpack.c.l.b16 %v5032
    %v5175 = vunpack.c.l.b16 %v5033
    %v5176 = vunpack.c.h.b16 %v5033
    %v5177 = vunpack.c.l.b16 %v5034
    %v5178 = vunpack.c.l.b16 %v5035
    %v5179 = vunpack.c.h.b16 %v5035
    %v5180 = vunpack.c.l.b16 %v5036
    %v5181 = vunpack.c.l.b16 %v5037
    %v5182 = vunpack.c.h.b16 %v5037
    %v5183 = vunpack.c.l.b16 %v5038
    %v5184 = vunpack.c.l.b16 %v5039
    %v5185 = vunpack.c.h.b16 %v5039
    %v5186 = vunpack.c.l.b16 %v5040
    %v5187 = vunpack.c.l.b16 %v5041
    %v5188 = vunpack.c.h.b16 %v5041
    %v5189 = vunpack.c.l.b16 %v5042
    %v5190 = vunpack.c.l.b16 %v5043
    %v5191 = vunpack.c.h.b16 %v5043
    %v5192 = vunpack.c.l.b16 %v5044
    %v5193 = vunpack.c.l.b16 %v5045
    %v5194 = vunpack.c.h.b16 %v5045
    %v5195 = vunpack.c.l.b16 %v5046
    %v5196 = vunpack.c.l.b16 %v5047
    %v5197 = vunpack.c.h.b16 %v5047
    %v5198 = vunpack.c.l.b16 %v5048
    %v5199 = vunpack.c.l.b16 %v5049
    %v5200 = vunpack.c.h.b16 %v5049
    %v5201 = vunpack.c.l.b16 %v5050
    %v5202 = vunpack.c.l.b16 %v5051
    %v5203 = vunpack.c.h.b16 %v5051
    %v5204 = vunpack.c.l.b16 %v5052
    %v5205 = vunpack.c.l.b16 %v5053
    %v5206 = vunpack.c.h.b16 %v5053
    %v5207 = vunpack.c.l.b16 %v5054
    %v5208 = vunpack.c.l.b16 %v5055
    %v5209 = vunpack.c.h.b16 %v5055
    %v5210 = vunpack.c.l.b16 %v5056
    %v5211 = vunpack.c.l.b16 %v5057
    %v5212 = vunpack.c.h.b16 %v5057
    %v5213 = vunpack.c.l.b16 %v5058
    %v5214 = vunpack.c.l.b16 %v5059
    %v5215 = vunpack.c.h.b16 %v5059
    %v5216 = vunpack.c.l.b16 %v5060
    %v5217 = vunpack.c.l.b16 %v5061
    %v5218 = vunpack.c.h.b16 %v5061
    %v5219 = vunpack.c.l.b16 %v5062
    %v5220 = vunpack.c.l.b16 %v5063
    %v5221 = vunpack.c.h.b16 %v5063
    %v5222 = vunpack.c.l.b16 %v5064
    %v5223 = vunpack.c.l.b16 %v5065
    %v5224 = vunpack.c.h.b16 %v5065
    %v5225 = vunpack.c.l.b16 %v5066
    %v5226 = vunpack.c.l.b16 %v5067
    %v5227 = vunpack.c.h.b16 %v5067
    %v5228 = vunpack.c.l.b16 %v5068
    %v5229 = vpack.c.b16 %v5136, %v5133
    %v5230 = vpack.c.b16 %v5137, %v5134
    %v5231 = vpack.c.b16 %v5138, %v5135
    %v5232 = vpack.c.b16 %v5142, %v5139
    %v5233 = vpack.c.b16 %v5143, %v5140
    %v5234 = vpack.c.b16 %v5144, %v5141
    %v5235 = vpack.c.b16 %v5148, %v5145
    %v5236 = vpack.c.b16 %v5149, %v5146
    %v5237 = vpack.c.b16 %v5150, %v5147
    %v5238 = vpack.c.b16 %v5154, %v5151
    %v5239 = vpack.c.b16 %v5155, %v5152
    %v5240 = vpack.c.b16 %v5156, %v5153
    %v5241 = vpack.c.b16 %v5160, %v5157
    %v5242 = vpack.c.b16 %v5161, %v5158
    %v5243 = vpack.c.b16 %v5162, %v5159
    %v5244 = vpack.c.b16 %v5166, %v5163
    %v5245 = vpack.c.b16 %v5167, %v5164
    %v5246 = vpack.c.b16 %v5168, %v5165
    %v5247 = vpack.c.b16 %v5172, %v5169
    %v5248 = vpack.c.b16 %v5173, %v5170
    %v5249 = vpack.c.b16 %v5174, %v5171
    %v5250 = vpack.c.b16 %v5178, %v5175
    %v5251 = vpack.c.b16 %v5179, %v5176
    %v5252 = vpack.c.b16 %v5180, %v5177
    %v5253 = vpack.c.b16 %v5184, %v5181
    %v5254 = vpack.c.b16 %v5185, %v5182
    %v5255 = vpack.c.b16 %v5186, %v5183
    %v5256 = vpack.c.b16 %v5190, %v5187
    %v5257 = vpack.c.b16 %v5191, %v5188
    %v5258 = vpack.c.b16 %v5192, %v5189
    %v5259 = vpack.c.b16 %v5196, %v5193
    %v5260 = vpack.c.b16 %v5197, %v5194
    %v5261 = vpack.c.b16 %v5198, %v5195
    %v5262 = vpack.c.b16 %v5202, %v5199
    %v5263 = vpack.c.b16 %v5203, %v5200
    %v5264 = vpack.c.b16 %v5204, %v5201
    %v5265 = vpack.c.b16 %v5208, %v5205
    %v5266 = vpack.c.b16 %v5209, %v5206
    %v5267 = vpack.c.b16 %v5210, %v5207
    %v5268 = vpack.c.b16 %v5214, %v5211
    %v5269 = vpack.c.b16 %v5215, %v5212
    %v5270 = vpack.c.b16 %v5216, %v5213
    %v5271 = vpack.c.b16 %v5220, %v5217
    %v5272 = vpack.c.b16 %v5221, %v5218
    %v5273 = vpack.c.b16 %v5222, %v5219
    %v5274 = vpack.c.b16 %v5226, %v5223
    %v5275 = vpack.c.b16 %v5227, %v5224
    %v5276 = vpack.c.b16 %v5228, %v5225
    %5325 = vmatprep.subr.bf16.mxu0 %v5230
    %5326 = vmatpush1.bf16.msra.mxu0 %v5229
    %5327 = vmatprep.subr.bf16.mxu0 %v5233
    %5328 = vmatpush1.bf16.msra.mxu0 %v5232
    %5329 = vmatprep.subr.bf16.mxu0 %v5236
    %5330 = vmatpush1.bf16.msra.mxu0 %v5235
    %5331 = vmatprep.subr.bf16.mxu0 %v5239
    %5332 = vmatpush1.bf16.msra.mxu0 %v5238
    %5333 = vmatprep.subr.bf16.mxu0 %v5242
    %5334 = vmatpush1.bf16.msra.mxu0 %v5241
    %5335 = vmatprep.subr.bf16.mxu0 %v5245
    %5336 = vmatpush1.bf16.msra.mxu0 %v5244
    %5337 = vmatprep.subr.bf16.mxu0 %v5248
    %5338 = vmatpush1.bf16.msra.mxu0 %v5247
    %5339 = vmatprep.subr.bf16.mxu0 %v5251
    %5340 = vmatpush1.bf16.msra.mxu0 %v5250
    %5341 = vmatprep.subr.bf16.mxu0 %v5254
    %5342 = vmatpush1.bf16.msra.mxu0 %v5253
    %5343 = vmatprep.subr.bf16.mxu0 %v5257
    %5344 = vmatpush1.bf16.msra.mxu0 %v5256
    %5345 = vmatprep.subr.bf16.mxu0 %v5260
    %5346 = vmatpush1.bf16.msra.mxu0 %v5259
    %5347 = vmatprep.subr.bf16.mxu0 %v5263
    %5348 = vmatpush1.bf16.msra.mxu0 %v5262
    %5349 = vmatprep.subr.bf16.mxu0 %v5266
    %5350 = vmatpush1.bf16.msra.mxu0 %v5265
    %5351 = vmatprep.subr.bf16.mxu0 %v5269
    %5352 = vmatpush1.bf16.msra.mxu0 %v5268
    %5353 = vmatprep.subr.bf16.mxu0 %v5272
    %5354 = vmatpush1.bf16.msra.mxu0 %v5271
    %5355 = vmatprep.subr.bf16.mxu0 %v5275
    %5356 = vmatpush1.bf16.msra.mxu0 %v5274
    %5357 = vmatprep.mubr.bf16.mxu0 %v4998
    %5358 = vmatmul.mubr.bf16.gmra.mrb[0].mxu0 %v4997
    %v5359 = vpop.f32.mrb[0].mxu0
    %v5360 = vadd.f32 0.0, %v5359
    %v5361 = vpop.f32.mrb[0].mxu0
    %v5362 = vadd.f32 0.0, %v5361
    %v5363 = vpop.f32.mrb[0].mxu0
    %v5364 = vadd.f32 0.0, %v5363
    %v5365 = vpop.f32.mrb[0].mxu0
    %v5366 = vadd.f32 0.0, %v5365
    %5367 = vmatprep.mubr.bf16.mxu0 %v5000
    %5368 = vmatmul.mubr.bf16.gmra.mrb[0].mxu0 %v4999
    %v5369 = vpop.f32.mrb[0].mxu0
    %v5370 = vadd.f32 0.0, %v5369
    %v5371 = vpop.f32.mrb[0].mxu0
    %v5372 = vadd.f32 0.0, %v5371
    %v5373 = vpop.f32.mrb[0].mxu0
    %v5374 = vadd.f32 0.0, %v5373
    %v5375 = vpop.f32.mrb[0].mxu0
    %v5376 = vadd.f32 0.0, %v5375
    %5377 = vmatprep.mubr.bf16.mxu0 %v5002
    %5378 = vmatmul.mubr.bf16.gmra.mrb[0].mxu0 %v5001
    %v5379 = vpop.f32.mrb[0].mxu0
    %v5380 = vadd.f32 0.0, %v5379
    %v5381 = vpop.f32.mrb[0].mxu0
    %v5382 = vadd.f32 0.0, %v5381
    %v5383 = vpop.f32.mrb[0].mxu0
    %v5384 = vadd.f32 0.0, %v5383
    %v5385 = vpop.f32.mrb[0].mxu0
    %v5386 = vadd.f32 0.0, %v5385
    %5387 = vmatprep.mubr.bf16.mxu0 %v5004
    %5388 = vmatmul.mubr.bf16.gmra.mrb[0].mxu0 %v5003
    %v5389 = vpop.f32.mrb[0].mxu0
    %v5390 = vadd.f32 0.0, %v5389
    %v5391 = vpop.f32.mrb[0].mxu0
    %v5392 = vadd.f32 0.0, %v5391
    %v5393 = vpop.f32.mrb[0].mxu0
    %v5394 = vadd.f32 0.0, %v5393
    %v5395 = vpop.f32.mrb[0].mxu0
    %v5396 = vadd.f32 0.0, %v5395
    %5397 = vdwg.mxu0
    %5398 = vmatprep.subr.bf16.mxu0 0
    %5399 = vmatpush1.bf16.msra.mxu0 %v5231
    %5400 = vmatprep.subr.bf16.mxu0 0
    %5401 = vmatpush1.bf16.msra.mxu0 %v5234
    %5402 = vmatprep.subr.bf16.mxu0 0
    %5403 = vmatpush1.bf16.msra.mxu0 %v5237
    %5404 = vmatprep.subr.bf16.mxu0 0
    %5405 = vmatpush1.bf16.msra.mxu0 %v5240
    %5406 = vmatprep.subr.bf16.mxu0 0
    %5407 = vmatpush1.bf16.msra.mxu0 %v5243
    %5408 = vmatprep.subr.bf16.mxu0 0
    %5409 = vmatpush1.bf16.msra.mxu0 %v5246
    %5410 = vmatprep.subr.bf16.mxu0 0
    %5411 = vmatpush1.bf16.msra.mxu0 %v5249
    %5412 = vmatprep.subr.bf16.mxu0 0
    %5413 = vmatpush1.bf16.msra.mxu0 %v5252
    %5414 = vmatprep.subr.bf16.mxu0 0
    %5415 = vmatpush1.bf16.msra.mxu0 %v5255
    %5416 = vmatprep.subr.bf16.mxu0 0
    %5417 = vmatpush1.bf16.msra.mxu0 %v5258
    %5418 = vmatprep.subr.bf16.mxu0 0
    %5419 = vmatpush1.bf16.msra.mxu0 %v5261
    %5420 = vmatprep.subr.bf16.mxu0 0
    %5421 = vmatpush1.bf16.msra.mxu0 %v5264
    %5422 = vmatprep.subr.bf16.mxu0 0
    %5423 = vmatpush1.bf16.msra.mxu0 %v5267
    %5424 = vmatprep.subr.bf16.mxu0 0
    %5425 = vmatpush1.bf16.msra.mxu0 %v5270
    %5426 = vmatprep.subr.bf16.mxu0 0
    %5427 = vmatpush1.bf16.msra.mxu0 %v5273
    %5428 = vmatprep.subr.bf16.mxu0 0
    %5429 = vmatpush1.bf16.msra.mxu0 %v5276
    %5430 = vmatprep.mubr.bf16.mxu0 %v4998
    %5431 = vmatmul.mubr.bf16.gmra.mrb[0].mxu0 %v4997
    %v5432 = vpop.f32.mrb[0].mxu0
    %v5433 = vadd.f32 0.0, %v5432
    %v5434 = vpop.f32.mrb[0].mxu0
    %v5435 = vpop.f32.mrb[0].mxu0
    %v5436 = vadd.f32 0.0, %v5435
    %v5437 = vpop.f32.mrb[0].mxu0
    %5438 = vmatprep.mubr.bf16.mxu0 %v5000
    %5439 = vmatmul.mubr.bf16.gmra.mrb[0].mxu0 %v4999
    %v5440 = vpop.f32.mrb[0].mxu0
    %v5441 = vadd.f32 0.0, %v5440
    %v5442 = vpop.f32.mrb[0].mxu0
    %v5443 = vpop.f32.mrb[0].mxu0
    %v5444 = vadd.f32 0.0, %v5443
    %v5445 = vpop.f32.mrb[0].mxu0
    %5446 = vmatprep.mubr.bf16.mxu0 %v5002
    %5447 = vmatmul.mubr.bf16.gmra.mrb[0].mxu0 %v5001
    %v5448 = vpop.f32.mrb[0].mxu0
    %v5449 = vadd.f32 0.0, %v5448
    %v5450 = vpop.f32.mrb[0].mxu0
    %v5451 = vpop.f32.mrb[0].mxu0
    %v5452 = vadd.f32 0.0, %v5451
    %v5453 = vpop.f32.mrb[0].mxu0
    %5454 = vmatprep.mubr.bf16.mxu0 %v5004
    %5455 = vmatmul.mubr.bf16.gmra.mrb[0].mxu0 %v5003
    %v5456 = vpop.f32.mrb[0].mxu0
    %v5457 = vadd.f32 0.0, %v5456
    %v5458 = vpop.f32.mrb[0].mxu0
    %v5459 = vpop.f32.mrb[0].mxu0
    %v5460 = vadd.f32 0.0, %v5459
    %v5461 = vpop.f32.mrb[0].mxu0
    %5462 = vdwg.mxu0
    %5463 = vst [vmem:[#allocation3] sm:$0xff] %v5360
    %5464 = vst [vmem:[#allocation3 + $0x10] sm:$0xff] %v5364
    %5465 = vst [vmem:[#allocation3 + $0x20] sm:$0xff] %v5370
    %5466 = vst [vmem:[#allocation3 + $0x30] sm:$0xff] %v5374
    %5467 = vst [vmem:[#allocation3 + $0x40] sm:$0xff] %v5380
    %5468 = vst [vmem:[#allocation3 + $0x50] sm:$0xff] %v5384
    %5469 = vst [vmem:[#allocation3 + $0x60] sm:$0xff] %v5390
    %5470 = vst [vmem:[#allocation3 + $0x70] sm:$0xff] %v5394
    %5471 = vst [vmem:[#allocation3 + $0x80] sm:$0xff] %v5362
    %5472 = vst [vmem:[#allocation3 + $0x90] sm:$0xff] %v5366
    %5473 = vst [vmem:[#allocation3 + $0xa0] sm:$0xff] %v5372
    %5474 = vst [vmem:[#allocation3 + $0xb0] sm:$0xff] %v5376
    %5475 = vst [vmem:[#allocation3 + $0xc0] sm:$0xff] %v5382
    %5476 = vst [vmem:[#allocation3 + $0xd0] sm:$0xff] %v5386
    %5477 = vst [vmem:[#allocation3 + $0xe0] sm:$0xff] %v5392
    %5478 = vst [vmem:[#allocation3 + $0xf0] sm:$0xff] %v5396
    %5479 = vst [vmem:[#allocation3 + $0x100] sm:$0xff] %v5433
    %5480 = vst [vmem:[#allocation3 + $0x110] sm:$0xff] %v5436
    %5481 = vst [vmem:[#allocation3 + $0x120] sm:$0xff] %v5441
    %5482 = vst [vmem:[#allocation3 + $0x130] sm:$0xff] %v5444
    %5483 = vst [vmem:[#allocation3 + $0x140] sm:$0xff] %v5449
    %5484 = vst [vmem:[#allocation3 + $0x150] sm:$0xff] %v5452
    %5485 = vst [vmem:[#allocation3 + $0x160] sm:$0xff] %v5457
    %5486 = vst [vmem:[#allocation3 + $0x170] sm:$0xff] %v5460
    %v5487 = vld [vmem:[#allocation3] sm:$0xff]
    %v5488 = vld [vmem:[#allocation3 + $0x10] sm:$0xff]
    %v5489 = vld [vmem:[#allocation3 + $0x20] sm:$0xff]
    %v5490 = vld [vmem:[#allocation3 + $0x30] sm:$0xff]
    %v5491 = vld [vmem:[#allocation3 + $0x40] sm:$0xff]
    %v5492 = vld [vmem:[#allocation3 + $0x50] sm:$0xff]
    %v5493 = vld [vmem:[#allocation3 + $0x60] sm:$0xff]
    %v5494 = vld [vmem:[#allocation3 + $0x70] sm:$0xff]
    %v5495 = vld [vmem:[#allocation3 + $0x80] sm:$0xff]
    %v5496 = vld [vmem:[#allocation3 + $0x90] sm:$0xff]
    %v5497 = vld [vmem:[#allocation3 + $0xa0] sm:$0xff]
    %v5498 = vld [vmem:[#allocation3 + $0xb0] sm:$0xff]
    %v5499 = vld [vmem:[#allocation3 + $0xc0] sm:$0xff]
    %v5500 = vld [vmem:[#allocation3 + $0xd0] sm:$0xff]
    %v5501 = vld [vmem:[#allocation3 + $0xe0] sm:$0xff]
    %v5502 = vld [vmem:[#allocation3 + $0xf0] sm:$0xff]
    %v5503 = vld [vmem:[#allocation3 + $0x100] sm:$0xff]
    %v5504 = vld [vmem:[#allocation3 + $0x110] sm:$0xff]
    %v5505 = vld [vmem:[#allocation3 + $0x120] sm:$0xff]
    %v5506 = vld [vmem:[#allocation3 + $0x130] sm:$0xff]
    %v5507 = vld [vmem:[#allocation3 + $0x140] sm:$0xff]
    %v5508 = vld [vmem:[#allocation3 + $0x150] sm:$0xff]
    %v5509 = vld [vmem:[#allocation3 + $0x160] sm:$0xff]
    %v5510 = vld [vmem:[#allocation3 + $0x170] sm:$0xff]
    %v5511 = vld [vmem:[%s55] sm:$0xff]
    %v5512 = vld [vmem:[%s55 + $0x8] sm:$0xff]
    %v5513 = vld [vmem:[%s55 + $0x10] sm:$0xff]
    %v5514 = vld [vmem:[%s55 + $0x18] sm:$0xff]
    %v5515 = vld [vmem:[%s55 + $0x20] sm:$0xff]
    %v5516 = vld [vmem:[%s55 + $0x28] sm:$0xff]
    %v5517 = vld [vmem:[%s55 + $0x30] sm:$0xff]
    %v5518 = vld [vmem:[%s55 + $0x38] sm:$0xff]
    %v5519 = vld [vmem:[%s55 + $0x40] sm:$0xff]
    %v5520 = vld [vmem:[%s55 + $0x48] sm:$0xff]
    %v5521 = vld [vmem:[%s55 + $0x50] sm:$0xff]
    %v5522 = vld [vmem:[%s55 + $0x58] sm:$0xff]
    %v5523 = vld [vmem:[%s55 + $0x60] sm:$0xff]
    %v5524 = vld [vmem:[%s55 + $0x68] sm:$0xff]
    %v5525 = vld [vmem:[%s55 + $0x70] sm:$0xff]
    %v5526 = vld [vmem:[%s55 + $0x78] sm:$0xff]
    %v5527 = vld [vmem:[%s55 + $0x80] sm:$0xff]
    %v5528 = vld [vmem:[%s55 + $0x88] sm:$0xff]
    %v5529 = vld [vmem:[%s55 + $0x90] sm:$0xff]
    %v5530 = vld [vmem:[%s55 + $0x98] sm:$0xff]
    %v5531 = vld [vmem:[%s55 + $0xa0] sm:$0xff]
    %v5532 = vld [vmem:[%s55 + $0xa8] sm:$0xff]
    %v5533 = vld [vmem:[%s55 + $0xb0] sm:$0xff]
    %v5534 = vld [vmem:[%s55 + $0xb8] sm:$0xff]
    %v5535 = vld [vmem:[%s55 + $0xc0] sm:$0xff]
    %v5536 = vld [vmem:[%s55 + $0xc8] sm:$0xff]
    %v5537 = vld [vmem:[%s55 + $0xd0] sm:$0xff]
    %v5538 = vld [vmem:[%s55 + $0xd8] sm:$0xff]
    %v5539 = vld [vmem:[%s55 + $0xe0] sm:$0xff]
    %v5540 = vld [vmem:[%s55 + $0xe8] sm:$0xff]
    %v5541 = vld [vmem:[%s55 + $0xf0] sm:$0xff]
    %v5542 = vld [vmem:[%s55 + $0xf8] sm:$0xff]
    %v5543 = vld [vmem:[%s57] sm:$0x1]
    %v5545 = vlaneseq
    %v5546 = vshrl.u32 %v5545, 7
    %v5547 = vsub.s32 0, %v5546
    %v5548 = vrot.slane %v5543, %v5547
    %vm5550 = vcmask 523264
    %v5552 = vsel %vm5550, %v5512, 0
    %v5555 = vsel %vm5550, %v5514, 0
    %v5558 = vsel %vm5550, %v5516, 0
    %v5561 = vsel %vm5550, %v5518, 0
    %v5564 = vsel %vm5550, %v5520, 0
    %v5567 = vsel %vm5550, %v5522, 0
    %v5570 = vsel %vm5550, %v5524, 0
    %v5573 = vsel %vm5550, %v5526, 0
    %v5576 = vsel %vm5550, %v5528, 0
    %v5579 = vsel %vm5550, %v5530, 0
    %v5582 = vsel %vm5550, %v5532, 0
    %v5585 = vsel %vm5550, %v5534, 0
    %v5588 = vsel %vm5550, %v5536, 0
    %v5591 = vsel %vm5550, %v5538, 0
    %v5594 = vsel %vm5550, %v5540, 0
    %v5597 = vsel %vm5550, %v5542, 0
    %5599 = vmatprep.subr.mxu0 0.0
    %5600 = vmatpush1.msra.mxu0 %v5487
    %5601 = vmatprep.subr.mxu0 0.0
    %5602 = vmatpush1.msra.mxu0 %v5488
    %5603 = vmatprep.subr.mxu0 0.0
    %5604 = vmatpush1.msra.mxu0 %v5489
    %5605 = vmatprep.subr.mxu0 0.0
    %5606 = vmatpush1.msra.mxu0 %v5490
    %5607 = vmatprep.subr.mxu0 0.0
    %5608 = vmatpush1.msra.mxu0 %v5491
    %5609 = vmatprep.subr.mxu0 0.0
    %5610 = vmatpush1.msra.mxu0 %v5492
    %5611 = vmatprep.subr.mxu0 0.0
    %5612 = vmatpush1.msra.mxu0 %v5493
    %5613 = vmatprep.subr.mxu0 0.0
    %5614 = vmatpush1.msra.mxu0 %v5494
    %5615 = vmatprep.subr.mxu0 0.0
    %5616 = vmatpush1.msra.mxu0 %v5495
    %5617 = vmatprep.subr.mxu0 0.0
    %5618 = vmatpush1.msra.mxu0 %v5496
    %5619 = vmatprep.subr.mxu0 0.0
    %5620 = vmatpush1.msra.mxu0 %v5497
    %5621 = vmatprep.subr.mxu0 0.0
    %5622 = vmatpush1.msra.mxu0 %v5498
    %5623 = vmatprep.subr.mxu0 0.0
    %5624 = vmatpush1.msra.mxu0 %v5499
    %5625 = vmatprep.subr.mxu0 0.0
    %5626 = vmatpush1.msra.mxu0 %v5500
    %5627 = vmatprep.subr.mxu0 0.0
    %5628 = vmatpush1.msra.mxu0 %v5501
    %5629 = vmatprep.subr.mxu0 0.0
    %5630 = vmatpush1.msra.mxu0 %v5502
    %5631 = vmatprep.subr.mxu0 0.0
    %5632 = vmatpush1.msra.mxu0 %v5503
    %5633 = vmatprep.subr.mxu0 0.0
    %5634 = vmatpush1.msra.mxu0 %v5504
    %5635 = vmatprep.subr.mxu0 0.0
    %5636 = vmatpush1.msra.mxu0 %v5505
    %5637 = vmatprep.subr.mxu0 0.0
    %5638 = vmatpush1.msra.mxu0 %v5506
    %5639 = vmatprep.subr.mxu0 0.0
    %5640 = vmatpush1.msra.mxu0 %v5507
    %5641 = vmatprep.subr.mxu0 0.0
    %5642 = vmatpush1.msra.mxu0 %v5508
    %5643 = vmatprep.subr.mxu0 0.0
    %5644 = vmatpush1.msra.mxu0 %v5509
    %5645 = vmatprep.subr.mxu0 0.0
    %5646 = vmatpush1.msra.mxu0 %v5510
    %5647 = vmatprep.subr.mxu0 0.0
    %5648 = vmatpush1.msra.mxu0 0.0
    %5649 = vmatprep.subr.mxu0 0.0
    %5650 = vmatpush1.msra.mxu0 0.0
    %5651 = vmatprep.subr.mxu0 0.0
    %5652 = vmatpush1.msra.mxu0 0.0
    %5653 = vmatprep.subr.mxu0 0.0
    %5654 = vmatpush1.msra.mxu0 0.0
    %5655 = vmatprep.subr.mxu0 0.0
    %5656 = vmatpush1.msra.mxu0 0.0
    %5657 = vmatprep.subr.mxu0 0.0
    %5658 = vmatpush1.msra.mxu0 0.0
    %5659 = vmatprep.subr.mxu0 0.0
    %5660 = vmatpush1.msra.mxu0 0.0
    %5661 = vmatprep.subr.mxu0 0.0
    %5662 = vmatpush1.msra.mxu0 0.0
    %5663 = vmatprep.mubr.f32.mxu0 %v5552
    %5664 = vmatmul.mubr.f32.gmra.mrb[0].mxu0 %v5511
    %v5665 = vpop.f32.mrb[0].mxu0
    %v5666 = vadd.f32 %v5548, %v5665
    %v5667 = vpop.f32.mrb[0].mxu0
    %5668 = vmatprep.mubr.f32.mxu0 %v5555
    %5669 = vmatmul.mubr.f32.gmra.mrb[0].mxu0 %v5513
    %v5670 = vpop.f32.mrb[0].mxu0
    %v5671 = vadd.f32 %v5548, %v5670
    %v5672 = vpop.f32.mrb[0].mxu0
    %5673 = vmatprep.mubr.f32.mxu0 %v5558
    %5674 = vmatmul.mubr.f32.gmra.mrb[0].mxu0 %v5515
    %v5675 = vpop.f32.mrb[0].mxu0
    %v5676 = vadd.f32 %v5548, %v5675
    %v5677 = vpop.f32.mrb[0].mxu0
    %5678 = vmatprep.mubr.f32.mxu0 %v5561
    %5679 = vmatmul.mubr.f32.gmra.mrb[0].mxu0 %v5517
    %v5680 = vpop.f32.mrb[0].mxu0
    %v5681 = vadd.f32 %v5548, %v5680
    %v5682 = vpop.f32.mrb[0].mxu0
    %5683 = vmatprep.mubr.f32.mxu0 %v5564
    %5684 = vmatmul.mubr.f32.gmra.mrb[0].mxu0 %v5519
    %v5685 = vpop.f32.mrb[0].mxu0
    %v5686 = vadd.f32 %v5548, %v5685
    %v5687 = vpop.f32.mrb[0].mxu0
    %5688 = vmatprep.mubr.f32.mxu0 %v5567
    %5689 = vmatmul.mubr.f32.gmra.mrb[0].mxu0 %v5521
    %v5690 = vpop.f32.mrb[0].mxu0
    %v5691 = vadd.f32 %v5548, %v5690
    %v5692 = vpop.f32.mrb[0].mxu0
    %5693 = vmatprep.mubr.f32.mxu0 %v5570
    %5694 = vmatmul.mubr.f32.gmra.mrb[0].mxu0 %v5523
    %v5695 = vpop.f32.mrb[0].mxu0
    %v5696 = vadd.f32 %v5548, %v5695
    %v5697 = vpop.f32.mrb[0].mxu0
    %5698 = vmatprep.mubr.f32.mxu0 %v5573
    %5699 = vmatmul.mubr.f32.gmra.mrb[0].mxu0 %v5525
    %v5700 = vpop.f32.mrb[0].mxu0
    %v5701 = vadd.f32 %v5548, %v5700
    %v5702 = vpop.f32.mrb[0].mxu0
    %5703 = vmatprep.mubr.f32.mxu0 %v5576
    %5704 = vmatmul.mubr.f32.gmra.mrb[0].mxu0 %v5527
    %v5705 = vpop.f32.mrb[0].mxu0
    %v5706 = vadd.f32 %v5548, %v5705
    %v5707 = vpop.f32.mrb[0].mxu0
    %5708 = vmatprep.mubr.f32.mxu0 %v5579
    %5709 = vmatmul.mubr.f32.gmra.mrb[0].mxu0 %v5529
    %v5710 = vpop.f32.mrb[0].mxu0
    %v5711 = vadd.f32 %v5548, %v5710
    %v5712 = vpop.f32.mrb[0].mxu0
    %5713 = vmatprep.mubr.f32.mxu0 %v5582
    %5714 = vmatmul.mubr.f32.gmra.mrb[0].mxu0 %v5531
    %v5715 = vpop.f32.mrb[0].mxu0
    %v5716 = vadd.f32 %v5548, %v5715
    %v5717 = vpop.f32.mrb[0].mxu0
    %5718 = vmatprep.mubr.f32.mxu0 %v5585
    %5719 = vmatmul.mubr.f32.gmra.mrb[0].mxu0 %v5533
    %v5720 = vpop.f32.mrb[0].mxu0
    %v5721 = vadd.f32 %v5548, %v5720
    %v5722 = vpop.f32.mrb[0].mxu0
    %5723 = vmatprep.mubr.f32.mxu0 %v5588
    %5724 = vmatmul.mubr.f32.gmra.mrb[0].mxu0 %v5535
    %v5725 = vpop.f32.mrb[0].mxu0
    %v5726 = vadd.f32 %v5548, %v5725
    %v5727 = vpop.f32.mrb[0].mxu0
    %5728 = vmatprep.mubr.f32.mxu0 %v5591
    %5729 = vmatmul.mubr.f32.gmra.mrb[0].mxu0 %v5537
    %v5730 = vpop.f32.mrb[0].mxu0
    %v5731 = vadd.f32 %v5548, %v5730
    %v5732 = vpop.f32.mrb[0].mxu0
    %5733 = vmatprep.mubr.f32.mxu0 %v5594
    %5734 = vmatmul.mubr.f32.gmra.mrb[0].mxu0 %v5539
    %v5735 = vpop.f32.mrb[0].mxu0
    %v5736 = vadd.f32 %v5548, %v5735
    %v5737 = vpop.f32.mrb[0].mxu0
    %5738 = vmatprep.mubr.f32.mxu0 %v5597
    %5739 = vmatmul.mubr.f32.gmra.mrb[0].mxu0 %v5541
    %v5740 = vpop.f32.mrb[0].mxu0
    %v5741 = vadd.f32 %v5548, %v5740
    %v5742 = vpop.f32.mrb[0].mxu0
    %5743 = vdwg.mxu0
    %v5744 = vmul.f32 %v5666, 0.5
    %v5745 = vmul.f32 %v5671, 0.5
    %v5746 = vmul.f32 %v5676, 0.5
    %v5747 = vmul.f32 %v5681, 0.5
    %v5748 = vmul.f32 %v5686, 0.5
    %v5749 = vmul.f32 %v5691, 0.5
    %v5750 = vmul.f32 %v5696, 0.5
    %v5751 = vmul.f32 %v5701, 0.5
    %v5752 = vmul.f32 %v5706, 0.5
    %v5753 = vmul.f32 %v5711, 0.5
    %v5754 = vmul.f32 %v5716, 0.5
    %v5755 = vmul.f32 %v5721, 0.5
    %v5756 = vmul.f32 %v5726, 0.5
    %v5757 = vmul.f32 %v5731, 0.5
    %v5758 = vmul.f32 %v5736, 0.5
    %v5759 = vmul.f32 %v5741, 0.5
    %v5760 = vtanh.pop %v5744
    %v5761 = vtanh.pop %v5745
    %v5762 = vtanh.pop %v5746
    %v5763 = vtanh.pop %v5747
    %v5764 = vtanh.pop %v5748
    %v5765 = vtanh.pop %v5749
    %v5766 = vtanh.pop %v5750
    %v5767 = vtanh.pop %v5751
    %v5768 = vtanh.pop %v5752
    %v5769 = vtanh.pop %v5753
    %v5770 = vtanh.pop %v5754
    %v5771 = vtanh.pop %v5755
    %v5772 = vtanh.pop %v5756
    %v5773 = vtanh.pop %v5757
    %v5774 = vtanh.pop %v5758
    %v5775 = vtanh.pop %v5759
    %v5776 = vmul.f32 %v5760, 0.5
    %v5777 = vmul.f32 %v5761, 0.5
    %v5778 = vmul.f32 %v5762, 0.5
    %v5779 = vmul.f32 %v5763, 0.5
    %v5780 = vmul.f32 %v5764, 0.5
    %v5781 = vmul.f32 %v5765, 0.5
    %v5782 = vmul.f32 %v5766, 0.5
    %v5783 = vmul.f32 %v5767, 0.5
    %v5784 = vmul.f32 %v5768, 0.5
    %v5785 = vmul.f32 %v5769, 0.5
    %v5786 = vmul.f32 %v5770, 0.5
    %v5787 = vmul.f32 %v5771, 0.5
    %v5788 = vmul.f32 %v5772, 0.5
    %v5789 = vmul.f32 %v5773, 0.5
    %v5790 = vmul.f32 %v5774, 0.5
    %v5791 = vmul.f32 %v5775, 0.5
    %v5792 = vadd.f32 %v5776, 0.5
    %v5793 = vadd.f32 %v5777, 0.5
    %v5794 = vadd.f32 %v5778, 0.5
    %v5795 = vadd.f32 %v5779, 0.5
    %v5796 = vadd.f32 %v5780, 0.5
    %v5797 = vadd.f32 %v5781, 0.5
    %v5798 = vadd.f32 %v5782, 0.5
    %v5799 = vadd.f32 %v5783, 0.5
    %v5800 = vadd.f32 %v5784, 0.5
    %v5801 = vadd.f32 %v5785, 0.5
    %v5802 = vadd.f32 %v5786, 0.5
    %v5803 = vadd.f32 %v5787, 0.5
    %v5804 = vadd.f32 %v5788, 0.5
    %v5805 = vadd.f32 %v5789, 0.5
    %v5806 = vadd.f32 %v5790, 0.5
    %v5807 = vadd.f32 %v5791, 0.5
    %5808 = vst [vmem:[#allocation27] sm:$0xff] %v5792
    %5809 = vst [vmem:[#allocation27 + $0x8] sm:$0xff] %v5793
    %5810 = vst [vmem:[#allocation27 + $0x10] sm:$0xff] %v5794
    %5811 = vst [vmem:[#allocation27 + $0x18] sm:$0xff] %v5795
    %5812 = vst [vmem:[#allocation27 + $0x20] sm:$0xff] %v5796
    %5813 = vst [vmem:[#allocation27 + $0x28] sm:$0xff] %v5797
    %5814 = vst [vmem:[#allocation27 + $0x30] sm:$0xff] %v5798
    %5815 = vst [vmem:[#allocation27 + $0x38] sm:$0xff] %v5799
    %5816 = vst [vmem:[#allocation27 + $0x40] sm:$0xff] %v5800
    %5817 = vst [vmem:[#allocation27 + $0x48] sm:$0xff] %v5801
    %5818 = vst [vmem:[#allocation27 + $0x50] sm:$0xff] %v5802
    %5819 = vst [vmem:[#allocation27 + $0x58] sm:$0xff] %v5803
    %5820 = vst [vmem:[#allocation27 + $0x60] sm:$0xff] %v5804
    %5821 = vst [vmem:[#allocation27 + $0x68] sm:$0xff] %v5805
    %5822 = vst [vmem:[#allocation27 + $0x70] sm:$0xff] %v5806
    %5823 = vst [vmem:[#allocation27 + $0x78] sm:$0xff] %v5807
    // Predicated region
    $region174: #{decoder_ukbb_forward.1} parent=1 // pred_check
      _
    $region175: #{decoder_ukbb_forward.1} parent=1 // pred_check_branch
      %5825 = sbr.rel (0) target = $region177
    $region176: #{decoder_ukbb_forward.1} parent=1 // pred_region
      %s5827 = ssub.s32 2048, 2048
      %5828 = vsyncadd [#allocation6], %s5827
      %s5829 = sshll.u32 [#allocation27], 4
      %s5830 = int_to_ptr.vmem [resolvable:$true] %s5829
      %5835 = dma.vmem_to_hbm [thread:$0]  %s5830, 2048, %s59, [#allocation6], 128, 128, 8
    $region177: #{decoder_ukbb_forward.1} parent=1 // pred_fallthru
      _
    // Predicated region
    $region178: #{decoder_ukbb_forward.1} parent=1 // pred_check
      _
    $region179: #{decoder_ukbb_forward.1} parent=1 // pred_check_branch
      %5837 = sbr.rel (0) target = $region181
    $region180: #{decoder_ukbb_forward.1} parent=1 // pred_region
      %5838 = dma.done [#allocation6], 2048
    $region181: #{decoder_ukbb_forward.1} parent=1 // pred_fallthru
      _
    %5839 = vsyncpa [#allocation5], 1
    %5840 = vsyncpa [#allocation8], 1
    %5841 = vsyncpa [#allocation11], 1
    %5842 = vsyncpa [#allocation14], 1
    %5843 = vsyncpa [#allocation17], 1
    %5844 = vsyncpa [#allocation20], 1
    %5845 = vsyncpa [#allocation23], 1
    %5846 = vsyncpa [#allocation26], 1
    %5847 = vsyncpa [#allocation6], 1

</llo_original>
